<compile_context>
chip_gen: v5e
topology: v5e:2x2
jax: 0.10.0
libtpu: 0.0.40
codegen_flags: <defaults>
</compile_context>

<pallas_src>
import jax
import jax.numpy as jnp
from jax.experimental import pallas as pl
from jax.experimental.pallas import tpu as pltpu

# Hidden-layer widths from the module definition:
#   in_dim -> 128 -> 256 -> 256 -> 256 -> 128 -> 64 -> 32 -> 16 -> 10 (all ReLU)
#   then 10 -> out_dim (no ReLU)
HIDDEN_DIMS = (128, 256, 256, 256, 128, 64, 32, 16, 10)

LANE = 128                      # pad all feature dims to multiples of this
SUBLANE = 8                     # f32/bf16-friendly row granularity
MAX_BATCH_TILE = 1024           # large tiles amortize ~0.35us/step pipeline overhead
MIN_SPLIT_BATCH = 2 * LANE      # only force >=2 grid steps for batches this big
VMEM_TILE_BUDGET = 24 * 1024 * 1024  # cap for double-buffered x/out tiles


def _round_up(x, m):
    return (x + m - 1) // m * m


def _mlp_kernel(x_ref, *rest):
    """rest = (w0..w8 ReLU-layer weights, w_out, o_ref). Weights bf16, padded."""
    w_refs = rest[:-2]    # 9 ReLU layers
    wout_ref = rest[-2]   # final linear (no ReLU)
    o_ref = rest[-1]

    # Cast to bf16 on the VPU (hidden in MXU slack) so the wrapper never has to
    # materialize a padded/bf16 copy of x when in_dim is lane-aligned.
    h = x_ref[...].astype(jnp.bfloat16)
    # Unrolled at trace time: bf16 matmul, f32 accumulate, ReLU, back to bf16.
    # Zero-padded rows/cols keep padded lanes exactly zero throughout.
    for w_ref in w_refs:
        acc = jnp.dot(h, w_ref[...], preferred_element_type=jnp.float32)
        h = jnp.maximum(acc, 0.0).astype(jnp.bfloat16)
    # Final projection, no activation; lane-dense f32 store (out_pad = 128).
    o_ref[...] = jnp.dot(h, wout_ref[...], preferred_element_type=jnp.float32)


def _pad_weight_bf16(w):
    """Zero-pad (in, out) -> (round_up(in,128), round_up(out,128)), cast bf16."""
    i, o = w.shape
    ip, op = _round_up(i, LANE), _round_up(o, LANE)
    wp = jnp.zeros((ip, op), jnp.bfloat16)
    return wp.at[:i, :o].set(w.astype(jnp.bfloat16))


def prepare_weights(weights):
    """One-time pad+cast of all weights (hoisted out of the per-call path)."""
    return [_pad_weight_bf16(w) for w in weights]


def _choose_batch_tile(B, in_pad, out_pad, x_itemsize):
    """Pick (batch_tile, padded_batch) minimizing remainder padding."""
    # >=2 grid steps for big batches so the "parallel" axis can shard across
    # v7x's two TensorCores; tiny batches stay a single step.
    min_steps = 2 if B >= MIN_SPLIT_BATCH else 1
    steps = max(pl.cdiv(B, MAX_BATCH_TILE), min_steps)
    bt = _round_up(pl.cdiv(B, steps), SUBLANE)
    # Cap so the double-buffered x/out tiles stay well inside VMEM.
    row_bytes = in_pad * x_itemsize + out_pad * 4
    max_bt = max(SUBLANE, (VMEM_TILE_BUDGET // (2 * row_bytes)) // SUBLANE * SUBLANE)
    bt = min(bt, max_bt)
    return bt, _round_up(B, bt)


# Flipped off at runtime if pipeline_mode=Buffered(1) is unsupported.
_SINGLE_BUFFER_WEIGHTS = True


def _pallas_mlp(xp, wps, bt, out_pad, single_buffer_weights):
    b_pad, in_pad = xp.shape
    x_spec = pl.BlockSpec((bt, in_pad), lambda i: (i, 0))
    if single_buffer_weights:
        # Constant index_map -> one VMEM buffer per weight is enough.
        w_specs = [
            pl.BlockSpec(w.shape, lambda i: (0, 0), pipeline_mode=pl.Buffered(1))
            for w in wps
        ]
    else:
        w_specs = [pl.BlockSpec(w.shape, lambda i: (0, 0)) for w in wps]

    return pl.pallas_call(
        _mlp_kernel,
        out_shape=jax.ShapeDtypeStruct((b_pad, out_pad), jnp.float32),
        grid_spec=pltpu.PrefetchScalarGridSpec(
            num_scalar_prefetch=0,
            grid=(b_pad // bt,),
            in_specs=[x_spec] + w_specs,
            out_specs=pl.BlockSpec((bt, out_pad), lambda i: (i, 0)),
        ),
        compiler_params=pltpu.CompilerParams(
            # Batch axis is independent -> "parallel" (shards across the two
            # TensorCores on v7x; harmless on single-TC v5e/v6e).
            dimension_semantics=("parallel",),
            # Worst case (bt=1024, in_pad=1024 f32): ~8 MB x tiles + ~1 MB out
            # + ~1.6 MB weights; 32 MiB leaves ample headroom and is safe on
            # v7x's 64 MiB VMEM.
            vmem_limit_bytes=32 * 1024 * 1024,
        ),
    )(xp, *wps)


def mlp_forward(x_flat, padded_weights, out_dim):
    """x_flat: (B, in_dim) f32. padded_weights: output of prepare_weights()."""
    global _SINGLE_BUFFER_WEIGHTS
    B, in_dim = x_flat.shape
    in_pad = padded_weights[0].shape[0]
    out_pad = padded_weights[-1].shape[1]
    assert in_pad == _round_up(in_dim, LANE)

    lane_aligned = (in_dim % LANE == 0)
    x_dtype = x_flat.dtype if lane_aligned else jnp.bfloat16
    bt, b_pad = _choose_batch_tile(B, in_pad, out_pad, jnp.dtype(x_dtype).itemsize)

    if lane_aligned:
        # No lane padding needed: feed x straight to the kernel (f32 read once,
        # bf16 cast inside the kernel). Only pad the batch-row remainder.
        if b_pad == B:
            xp = x_flat
        else:
            xp = jnp.zeros((b_pad, in_pad), x_flat.dtype).at[:B].set(x_flat)
    else:
        # Lane padding required: materialize once as bf16 (halves pad traffic).
        xp = jnp.zeros((b_pad, in_pad), jnp.bfloat16)
        xp = xp.at[:B, :in_dim].set(x_flat.astype(jnp.bfloat16))

    if _SINGLE_BUFFER_WEIGHTS:
        try:
            out_padded = _pallas_mlp(xp, padded_weights, bt, out_pad, True)
        except Exception:
            # pipeline_mode=Buffered(1) not supported on this JAX/Mosaic build:
            # fall back to default double-buffered weight specs.
            _SINGLE_BUFFER_WEIGHTS = False
            out_padded = _pallas_mlp(xp, padded_weights, bt, out_pad, False)
    else:
        out_padded = _pallas_mlp(xp, padded_weights, bt, out_pad, False)

    # Strip batch + lane padding.
    return out_padded[:B, :out_dim]


def init_weights(key, in_dim, out_dim):
    """Deterministic weight init. Each W stored as (in_features, out_features)."""
    dims = (in_dim,) + HIDDEN_DIMS + (out_dim,)
    weights = []
    for i in range(len(dims) - 1):
        key, sub = jax.random.split(key)
        fan_in = dims[i]
        bound = 1.0 / jnp.sqrt(fan_in)
        w = jax.random.uniform(
            sub, (dims[i], dims[i + 1]), jnp.float32, minval=-bound, maxval=bound
        )
        weights.append(w)
    return weights


def reference_forward_f32(x_flat, weights):
    h = x_flat
    for w in weights[:-1]:
        h = jnp.maximum(h @ w, 0.0)
    return h @ weights[-1]


def reference_forward_bf16(x_flat, weights):
    """Same bf16-operand / f32-accumulate recipe as the kernel, in plain JAX."""
    h = x_flat.astype(jnp.bfloat16)
    for w in weights[:-1]:
        acc = jnp.dot(h, w.astype(jnp.bfloat16), preferred_element_type=jnp.float32)
        h = jnp.maximum(acc, 0.0).astype(jnp.bfloat16)
    return jnp.dot(h, weights[-1].astype(jnp.bfloat16),
                   preferred_element_type=jnp.float32)


if __name__ == "__main__":
    key = jax.random.PRNGKey(0)
    kx, kw, kx2 = jax.random.split(key, 3)

    # Example input consistent with the module's flatten(start_dim=1):
    # NCHW image (2, 4, 16, 16) -> in_dim = 4*16*16 = 1024.
    B, C, H, W = 2, 4, 16, 16
    in_dim = C * H * W
    out_dim = 10

    x = jax.random.normal(kx, (B, C, H, W), jnp.float32)
    x_flat = x.reshape(B, -1)          # glue: flatten(start_dim=1)

    weights = init_weights(kw, in_dim, out_dim)
    wps = prepare_weights(weights)     # one-time pad+cast (hoisted per review)

    out = jax.block_until_ready(mlp_forward(x_flat, wps, out_dim))
    assert out.shape == (B, out_dim)

    # Check against a plain-JAX version of the same bf16/f32 recipe, plus a
    # looser sanity check against the pure-f32 reference.
    ref_bf16 = reference_forward_bf16(x_flat, weights)
    ref_f32 = reference_forward_f32(x_flat, weights)
    assert jnp.allclose(out, ref_bf16, atol=2e-3, rtol=2e-3)
    assert jnp.allclose(out, ref_f32, atol=5e-2, rtol=5e-2)

    # Second shape: exercises the multi-step grid (>=2 steps -> both v7x TCs),
    # the batch-remainder padding path, and weight reuse across calls.
    B2 = 300
    x2 = jax.random.normal(kx2, (B2, in_dim), jnp.float32)
    out2 = jax.block_until_ready(mlp_forward(x2, wps, out_dim))
    assert out2.shape == (B2, out_dim)
    ref2 = reference_forward_bf16(x2, weights)
    assert jnp.allclose(out2, ref2, atol=2e-3, rtol=2e-3)

    print("KERNEL_OK")
</pallas_src>

<mosaic_0001>
module attributes {stable_mosaic.version = 11 : i64} {
  func.func @_mlp_kernel(%arg0: i32, %arg1: memref<8x1024xf32, #tpu.memory_space<vmem>>, %arg2: memref<1024x128xbf16, #tpu.memory_space<vmem>>, %arg3: memref<128x256xbf16, #tpu.memory_space<vmem>>, %arg4: memref<256x256xbf16, #tpu.memory_space<vmem>>, %arg5: memref<256x256xbf16, #tpu.memory_space<vmem>>, %arg6: memref<256x128xbf16, #tpu.memory_space<vmem>>, %arg7: memref<128x128xbf16, #tpu.memory_space<vmem>>, %arg8: memref<128x128xbf16, #tpu.memory_space<vmem>>, %arg9: memref<128x128xbf16, #tpu.memory_space<vmem>>, %arg10: memref<128x128xbf16, #tpu.memory_space<vmem>>, %arg11: memref<128x128xbf16, #tpu.memory_space<vmem>>, %arg12: memref<8x128xf32, #tpu.memory_space<vmem>>) attributes {dimension_semantics = [#tpu.dimension_semantics<parallel>], iteration_bounds = array<i64: 1>, scalar_prefetch = 0 : i64, scratch_operands = 0 : i64, tpu.core_type = #tpu.core_type<tc>, window_params = [{transform_indices = @transform_0, window_bounds = array<i64: 8, 1024>}, {pipeline_mode = #tpu.pipeline_mode<synchronous>, transform_indices = @transform_1, window_bounds = array<i64: 1024, 128>}, {pipeline_mode = #tpu.pipeline_mode<synchronous>, transform_indices = @transform_2, window_bounds = array<i64: 128, 256>}, {pipeline_mode = #tpu.pipeline_mode<synchronous>, transform_indices = @transform_3, window_bounds = array<i64: 256, 256>}, {pipeline_mode = #tpu.pipeline_mode<synchronous>, transform_indices = @transform_4, window_bounds = array<i64: 256, 256>}, {pipeline_mode = #tpu.pipeline_mode<synchronous>, transform_indices = @transform_5, window_bounds = array<i64: 256, 128>}, {pipeline_mode = #tpu.pipeline_mode<synchronous>, transform_indices = @transform_6, window_bounds = array<i64: 128, 128>}, {pipeline_mode = #tpu.pipeline_mode<synchronous>, transform_indices = @transform_7, window_bounds = array<i64: 128, 128>}, {pipeline_mode = #tpu.pipeline_mode<synchronous>, transform_indices = @transform_8, window_bounds = array<i64: 128, 128>}, {pipeline_mode = #tpu.pipeline_mode<synchronous>, transform_indices = @transform_9, window_bounds = array<i64: 128, 128>}, {pipeline_mode = #tpu.pipeline_mode<synchronous>, transform_indices = @transform_10, window_bounds = array<i64: 128, 128>}, {transform_indices = @transform_11, window_bounds = array<i64: 8, 128>}]} {
    %c0 = arith.constant 0 : index
    %c0_0 = arith.constant 0 : index
    %0 = vector.load %arg1[%c0, %c0_0] : memref<8x1024xf32, #tpu.memory_space<vmem>>, vector<8x1024xf32>
    %1 = arith.truncf %0 : vector<8x1024xf32> to vector<8x1024xbf16>
    %c0_1 = arith.constant 0 : index
    %c0_2 = arith.constant 0 : index
    %2 = vector.load %arg2[%c0_1, %c0_2] : memref<1024x128xbf16, #tpu.memory_space<vmem>>, vector<1024x128xbf16>
    %cst = arith.constant dense<0.000000e+00> : vector<8x128xf32>
    %3 = tpu.matmul %1, %2, %cst {dimension_numbers = #tpu.dot_dimension_numbers<[1], [0], [0], [1], [0, 0, 1, 1], [], []>} : vector<8x1024xbf16>, vector<1024x128xbf16>, vector<8x128xf32> -> vector<8x128xf32>
    %cst_3 = arith.constant 0.000000e+00 : f32
    %4 = vector.broadcast %cst_3 : f32 to vector<8x128xf32>
    %5 = arith.maximumf %3, %4 : vector<8x128xf32>
    %6 = arith.truncf %5 : vector<8x128xf32> to vector<8x128xbf16>
    %c0_4 = arith.constant 0 : index
    %c0_5 = arith.constant 0 : index
    %7 = vector.load %arg3[%c0_4, %c0_5] : memref<128x256xbf16, #tpu.memory_space<vmem>>, vector<128x256xbf16>
    %cst_6 = arith.constant dense<0.000000e+00> : vector<8x256xf32>
    %8 = tpu.matmul %6, %7, %cst_6 {dimension_numbers = #tpu.dot_dimension_numbers<[1], [0], [0], [1], [0, 0, 1, 1], [], []>} : vector<8x128xbf16>, vector<128x256xbf16>, vector<8x256xf32> -> vector<8x256xf32>
    %cst_7 = arith.constant 0.000000e+00 : f32
    %9 = vector.broadcast %cst_7 : f32 to vector<8x256xf32>
    %10 = arith.maximumf %8, %9 : vector<8x256xf32>
    %11 = arith.truncf %10 : vector<8x256xf32> to vector<8x256xbf16>
    %c0_8 = arith.constant 0 : index
    %c0_9 = arith.constant 0 : index
    %12 = vector.load %arg4[%c0_8, %c0_9] : memref<256x256xbf16, #tpu.memory_space<vmem>>, vector<256x256xbf16>
    %cst_10 = arith.constant dense<0.000000e+00> : vector<8x256xf32>
    %13 = tpu.matmul %11, %12, %cst_10 {dimension_numbers = #tpu.dot_dimension_numbers<[1], [0], [0], [1], [0, 0, 1, 1], [], []>} : vector<8x256xbf16>, vector<256x256xbf16>, vector<8x256xf32> -> vector<8x256xf32>
    %cst_11 = arith.constant 0.000000e+00 : f32
    %14 = vector.broadcast %cst_11 : f32 to vector<8x256xf32>
    %15 = arith.maximumf %13, %14 : vector<8x256xf32>
    %16 = arith.truncf %15 : vector<8x256xf32> to vector<8x256xbf16>
    %c0_12 = arith.constant 0 : index
    %c0_13 = arith.constant 0 : index
    %17 = vector.load %arg5[%c0_12, %c0_13] : memref<256x256xbf16, #tpu.memory_space<vmem>>, vector<256x256xbf16>
    %cst_14 = arith.constant dense<0.000000e+00> : vector<8x256xf32>
    %18 = tpu.matmul %16, %17, %cst_14 {dimension_numbers = #tpu.dot_dimension_numbers<[1], [0], [0], [1], [0, 0, 1, 1], [], []>} : vector<8x256xbf16>, vector<256x256xbf16>, vector<8x256xf32> -> vector<8x256xf32>
    %cst_15 = arith.constant 0.000000e+00 : f32
    %19 = vector.broadcast %cst_15 : f32 to vector<8x256xf32>
    %20 = arith.maximumf %18, %19 : vector<8x256xf32>
    %21 = arith.truncf %20 : vector<8x256xf32> to vector<8x256xbf16>
    %c0_16 = arith.constant 0 : index
    %c0_17 = arith.constant 0 : index
    %22 = vector.load %arg6[%c0_16, %c0_17] : memref<256x128xbf16, #tpu.memory_space<vmem>>, vector<256x128xbf16>
    %cst_18 = arith.constant dense<0.000000e+00> : vector<8x128xf32>
    %23 = tpu.matmul %21, %22, %cst_18 {dimension_numbers = #tpu.dot_dimension_numbers<[1], [0], [0], [1], [0, 0, 1, 1], [], []>} : vector<8x256xbf16>, vector<256x128xbf16>, vector<8x128xf32> -> vector<8x128xf32>
    %cst_19 = arith.constant 0.000000e+00 : f32
    %24 = vector.broadcast %cst_19 : f32 to vector<8x128xf32>
    %25 = arith.maximumf %23, %24 : vector<8x128xf32>
    %26 = arith.truncf %25 : vector<8x128xf32> to vector<8x128xbf16>
    %c0_20 = arith.constant 0 : index
    %c0_21 = arith.constant 0 : index
    %27 = vector.load %arg7[%c0_20, %c0_21] : memref<128x128xbf16, #tpu.memory_space<vmem>>, vector<128x128xbf16>
    %cst_22 = arith.constant dense<0.000000e+00> : vector<8x128xf32>
    %28 = tpu.matmul %26, %27, %cst_22 {dimension_numbers = #tpu.dot_dimension_numbers<[1], [0], [0], [1], [0, 0, 1, 1], [], []>} : vector<8x128xbf16>, vector<128x128xbf16>, vector<8x128xf32> -> vector<8x128xf32>
    %cst_23 = arith.constant 0.000000e+00 : f32
    %29 = vector.broadcast %cst_23 : f32 to vector<8x128xf32>
    %30 = arith.maximumf %28, %29 : vector<8x128xf32>
    %31 = arith.truncf %30 : vector<8x128xf32> to vector<8x128xbf16>
    %c0_24 = arith.constant 0 : index
    %c0_25 = arith.constant 0 : index
    %32 = vector.load %arg8[%c0_24, %c0_25] : memref<128x128xbf16, #tpu.memory_space<vmem>>, vector<128x128xbf16>
    %cst_26 = arith.constant dense<0.000000e+00> : vector<8x128xf32>
    %33 = tpu.matmul %31, %32, %cst_26 {dimension_numbers = #tpu.dot_dimension_numbers<[1], [0], [0], [1], [0, 0, 1, 1], [], []>} : vector<8x128xbf16>, vector<128x128xbf16>, vector<8x128xf32> -> vector<8x128xf32>
    %cst_27 = arith.constant 0.000000e+00 : f32
    %34 = vector.broadcast %cst_27 : f32 to vector<8x128xf32>
    %35 = arith.maximumf %33, %34 : vector<8x128xf32>
    %36 = arith.truncf %35 : vector<8x128xf32> to vector<8x128xbf16>
    %c0_28 = arith.constant 0 : index
    %c0_29 = arith.constant 0 : index
    %37 = vector.load %arg9[%c0_28, %c0_29] : memref<128x128xbf16, #tpu.memory_space<vmem>>, vector<128x128xbf16>
    %cst_30 = arith.constant dense<0.000000e+00> : vector<8x128xf32>
    %38 = tpu.matmul %36, %37, %cst_30 {dimension_numbers = #tpu.dot_dimension_numbers<[1], [0], [0], [1], [0, 0, 1, 1], [], []>} : vector<8x128xbf16>, vector<128x128xbf16>, vector<8x128xf32> -> vector<8x128xf32>
    %cst_31 = arith.constant 0.000000e+00 : f32
    %39 = vector.broadcast %cst_31 : f32 to vector<8x128xf32>
    %40 = arith.maximumf %38, %39 : vector<8x128xf32>
    %41 = arith.truncf %40 : vector<8x128xf32> to vector<8x128xbf16>
    %c0_32 = arith.constant 0 : index
    %c0_33 = arith.constant 0 : index
    %42 = vector.load %arg10[%c0_32, %c0_33] : memref<128x128xbf16, #tpu.memory_space<vmem>>, vector<128x128xbf16>
    %cst_34 = arith.constant dense<0.000000e+00> : vector<8x128xf32>
    %43 = tpu.matmul %41, %42, %cst_34 {dimension_numbers = #tpu.dot_dimension_numbers<[1], [0], [0], [1], [0, 0, 1, 1], [], []>} : vector<8x128xbf16>, vector<128x128xbf16>, vector<8x128xf32> -> vector<8x128xf32>
    %cst_35 = arith.constant 0.000000e+00 : f32
    %44 = vector.broadcast %cst_35 : f32 to vector<8x128xf32>
    %45 = arith.maximumf %43, %44 : vector<8x128xf32>
    %46 = arith.truncf %45 : vector<8x128xf32> to vector<8x128xbf16>
    %c0_36 = arith.constant 0 : index
    %c0_37 = arith.constant 0 : index
    %47 = vector.load %arg11[%c0_36, %c0_37] : memref<128x128xbf16, #tpu.memory_space<vmem>>, vector<128x128xbf16>
    %cst_38 = arith.constant dense<0.000000e+00> : vector<8x128xf32>
    %48 = tpu.matmul %46, %47, %cst_38 {dimension_numbers = #tpu.dot_dimension_numbers<[1], [0], [0], [1], [0, 0, 1, 1], [], []>} : vector<8x128xbf16>, vector<128x128xbf16>, vector<8x128xf32> -> vector<8x128xf32>
    %c0_39 = arith.constant 0 : index
    %c0_40 = arith.constant 0 : index
    %49 = vector.load %arg12[%c0_39, %c0_40] : memref<8x128xf32, #tpu.memory_space<vmem>>, vector<8x128xf32>
    tpu.vector_store %arg12[%c0_39, %c0_40], %48 {strides = array<i32>} : memref<8x128xf32, #tpu.memory_space<vmem>>, vector<8x128xf32>,
    return
  }
  func.func @transform_0(%arg0: i32) -> (i32, i32) {
    %c0_i32 = arith.constant 0 : i32
    %c0_i32_0 = arith.constant 0 : i32
    return %arg0, %c0_i32 : i32, i32
  }
  func.func @transform_1(%arg0: i32) -> (i32, i32) {
    %c0_i32 = arith.constant 0 : i32
    %c0_i32_0 = arith.constant 0 : i32
    %c0_i32_1 = arith.constant 0 : i32
    return %c0_i32, %c0_i32_0 : i32, i32
  }
  func.func @transform_2(%arg0: i32) -> (i32, i32) {
    %c0_i32 = arith.constant 0 : i32
    %c0_i32_0 = arith.constant 0 : i32
    %c0_i32_1 = arith.constant 0 : i32
    return %c0_i32, %c0_i32_0 : i32, i32
  }
  func.func @transform_3(%arg0: i32) -> (i32, i32) {
    %c0_i32 = arith.constant 0 : i32
    %c0_i32_0 = arith.constant 0 : i32
    %c0_i32_1 = arith.constant 0 : i32
    return %c0_i32, %c0_i32_0 : i32, i32
  }
  func.func @transform_4(%arg0: i32) -> (i32, i32) {
    %c0_i32 = arith.constant 0 : i32
    %c0_i32_0 = arith.constant 0 : i32
    %c0_i32_1 = arith.constant 0 : i32
    return %c0_i32, %c0_i32_0 : i32, i32
  }
  func.func @transform_5(%arg0: i32) -> (i32, i32) {
    %c0_i32 = arith.constant 0 : i32
    %c0_i32_0 = arith.constant 0 : i32
    %c0_i32_1 = arith.constant 0 : i32
    return %c0_i32, %c0_i32_0 : i32, i32
  }
  func.func @transform_6(%arg0: i32) -> (i32, i32) {
    %c0_i32 = arith.constant 0 : i32
    %c0_i32_0 = arith.constant 0 : i32
    %c0_i32_1 = arith.constant 0 : i32
    return %c0_i32, %c0_i32_0 : i32, i32
  }
  func.func @transform_7(%arg0: i32) -> (i32, i32) {
    %c0_i32 = arith.constant 0 : i32
    %c0_i32_0 = arith.constant 0 : i32
    %c0_i32_1 = arith.constant 0 : i32
    return %c0_i32, %c0_i32_0 : i32, i32
  }
  func.func @transform_8(%arg0: i32) -> (i32, i32) {
    %c0_i32 = arith.constant 0 : i32
    %c0_i32_0 = arith.constant 0 : i32
    %c0_i32_1 = arith.constant 0 : i32
    return %c0_i32, %c0_i32_0 : i32, i32
  }
  func.func @transform_9(%arg0: i32) -> (i32, i32) {
    %c0_i32 = arith.constant 0 : i32
    %c0_i32_0 = arith.constant 0 : i32
    %c0_i32_1 = arith.constant 0 : i32
    return %c0_i32, %c0_i32_0 : i32, i32
  }
  func.func @transform_10(%arg0: i32) -> (i32, i32) {
    %c0_i32 = arith.constant 0 : i32
    %c0_i32_0 = arith.constant 0 : i32
    %c0_i32_1 = arith.constant 0 : i32
    return %c0_i32, %c0_i32_0 : i32, i32
  }
  func.func @transform_11(%arg0: i32) -> (i32, i32) {
    %c0_i32 = arith.constant 0 : i32
    %c0_i32_0 = arith.constant 0 : i32
    return %arg0, %c0_i32 : i32, i32
  }
}

module attributes {stable_mosaic.version = 11 : i64} {
  func.func @_mlp_kernel(%arg0: i32, %arg1: memref<8x1024xf32, #tpu.memory_space<vmem>>, %arg2: memref<1024x128xbf16, #tpu.memory_space<vmem>>, %arg3: memref<128x256xbf16, #tpu.memory_space<vmem>>, %arg4: memref<256x256xbf16, #tpu.memory_space<vmem>>, %arg5: memref<256x256xbf16, #tpu.memory_space<vmem>>, %arg6: memref<256x128xbf16, #tpu.memory_space<vmem>>, %arg7: memref<128x128xbf16, #tpu.memory_space<vmem>>, %arg8: memref<128x128xbf16, #tpu.memory_space<vmem>>, %arg9: memref<128x128xbf16, #tpu.memory_space<vmem>>, %arg10: memref<128x128xbf16, #tpu.memory_space<vmem>>, %arg11: memref<128x128xbf16, #tpu.memory_space<vmem>>, %arg12: memref<8x128xf32, #tpu.memory_space<vmem>>) attributes {dimension_semantics = [#tpu.dimension_semantics<parallel>], iteration_bounds = array<i64: 1>, scalar_prefetch = 0 : i64, scratch_operands = 0 : i64, tpu.core_type = #tpu.core_type<tc>, window_params = [{transform_indices = @transform_0, window_bounds = array<i64: 8, 1024>}, {pipeline_mode = #tpu.pipeline_mode<synchronous>, transform_indices = @transform_1, window_bounds = array<i64: 1024, 128>}, {pipeline_mode = #tpu.pipeline_mode<synchronous>, transform_indices = @transform_2, window_bounds = array<i64: 128, 256>}, {pipeline_mode = #tpu.pipeline_mode<synchronous>, transform_indices = @transform_3, window_bounds = array<i64: 256, 256>}, {pipeline_mode = #tpu.pipeline_mode<synchronous>, transform_indices = @transform_4, window_bounds = array<i64: 256, 256>}, {pipeline_mode = #tpu.pipeline_mode<synchronous>, transform_indices = @transform_5, window_bounds = array<i64: 256, 128>}, {pipeline_mode = #tpu.pipeline_mode<synchronous>, transform_indices = @transform_6, window_bounds = array<i64: 128, 128>}, {pipeline_mode = #tpu.pipeline_mode<synchronous>, transform_indices = @transform_7, window_bounds = array<i64: 128, 128>}, {pipeline_mode = #tpu.pipeline_mode<synchronous>, transform_indices = @transform_8, window_bounds = array<i64: 128, 128>}, {pipeline_mode = #tpu.pipeline_mode<synchronous>, transform_indices = @transform_9, window_bounds = array<i64: 128, 128>}, {pipeline_mode = #tpu.pipeline_mode<synchronous>, transform_indices = @transform_10, window_bounds = array<i64: 128, 128>}, {transform_indices = @transform_11, window_bounds = array<i64: 8, 128>}]} {
    %c0 = arith.constant 0 : index
    %c0_0 = arith.constant 0 : index
    %0 = vector.load %arg1[%c0, %c0_0] : memref<8x1024xf32, #tpu.memory_space<vmem>>, vector<8x1024xf32>
    %1 = arith.truncf %0 : vector<8x1024xf32> to vector<8x1024xbf16>
    %c0_1 = arith.constant 0 : index
    %c0_2 = arith.constant 0 : index
    %2 = vector.load %arg2[%c0_1, %c0_2] : memref<1024x128xbf16, #tpu.memory_space<vmem>>, vector<1024x128xbf16>
    %cst = arith.constant dense<0.000000e+00> : vector<8x128xf32>
    %3 = tpu.matmul %1, %2, %cst {dimension_numbers = #tpu.dot_dimension_numbers<[1], [0], [0], [1], [0, 0, 1, 1], [], []>} : vector<8x1024xbf16>, vector<1024x128xbf16>, vector<8x128xf32> -> vector<8x128xf32>
    %cst_3 = arith.constant 0.000000e+00 : f32
    %4 = vector.broadcast %cst_3 : f32 to vector<8x128xf32>
    %5 = arith.maximumf %3, %4 : vector<8x128xf32>
    %6 = arith.truncf %5 : vector<8x128xf32> to vector<8x128xbf16>
    %c0_4 = arith.constant 0 : index
    %c0_5 = arith.constant 0 : index
    %7 = vector.load %arg3[%c0_4, %c0_5] : memref<128x256xbf16, #tpu.memory_space<vmem>>, vector<128x256xbf16>
    %cst_6 = arith.constant dense<0.000000e+00> : vector<8x256xf32>
    %8 = tpu.matmul %6, %7, %cst_6 {dimension_numbers = #tpu.dot_dimension_numbers<[1], [0], [0], [1], [0, 0, 1, 1], [], []>} : vector<8x128xbf16>, vector<128x256xbf16>, vector<8x256xf32> -> vector<8x256xf32>
    %cst_7 = arith.constant 0.000000e+00 : f32
    %9 = vector.broadcast %cst_7 : f32 to vector<8x256xf32>
    %10 = arith.maximumf %8, %9 : vector<8x256xf32>
    %11 = arith.truncf %10 : vector<8x256xf32> to vector<8x256xbf16>
    %c0_8 = arith.constant 0 : index
    %c0_9 = arith.constant 0 : index
    %12 = vector.load %arg4[%c0_8, %c0_9] : memref<256x256xbf16, #tpu.memory_space<vmem>>, vector<256x256xbf16>
    %cst_10 = arith.constant dense<0.000000e+00> : vector<8x256xf32>
    %13 = tpu.matmul %11, %12, %cst_10 {dimension_numbers = #tpu.dot_dimension_numbers<[1], [0], [0], [1], [0, 0, 1, 1], [], []>} : vector<8x256xbf16>, vector<256x256xbf16>, vector<8x256xf32> -> vector<8x256xf32>
    %cst_11 = arith.constant 0.000000e+00 : f32
    %14 = vector.broadcast %cst_11 : f32 to vector<8x256xf32>
    %15 = arith.maximumf %13, %14 : vector<8x256xf32>
    %16 = arith.truncf %15 : vector<8x256xf32> to vector<8x256xbf16>
    %c0_12 = arith.constant 0 : index
    %c0_13 = arith.constant 0 : index
    %17 = vector.load %arg5[%c0_12, %c0_13] : memref<256x256xbf16, #tpu.memory_space<vmem>>, vector<256x256xbf16>
    %cst_14 = arith.constant dense<0.000000e+00> : vector<8x256xf32>
    %18 = tpu.matmul %16, %17, %cst_14 {dimension_numbers = #tpu.dot_dimension_numbers<[1], [0], [0], [1], [0, 0, 1, 1], [], []>} : vector<8x256xbf16>, vector<256x256xbf16>, vector<8x256xf32> -> vector<8x256xf32>
    %cst_15 = arith.constant 0.000000e+00 : f32
    %19 = vector.broadcast %cst_15 : f32 to vector<8x256xf32>
    %20 = arith.maximumf %18, %19 : vector<8x256xf32>
    %21 = arith.truncf %20 : vector<8x256xf32> to vector<8x256xbf16>
    %c0_16 = arith.constant 0 : index
    %c0_17 = arith.constant 0 : index
    %22 = vector.load %arg6[%c0_16, %c0_17] : memref<256x128xbf16, #tpu.memory_space<vmem>>, vector<256x128xbf16>
    %cst_18 = arith.constant dense<0.000000e+00> : vector<8x128xf32>
    %23 = tpu.matmul %21, %22, %cst_18 {dimension_numbers = #tpu.dot_dimension_numbers<[1], [0], [0], [1], [0, 0, 1, 1], [], []>} : vector<8x256xbf16>, vector<256x128xbf16>, vector<8x128xf32> -> vector<8x128xf32>
    %cst_19 = arith.constant 0.000000e+00 : f32
    %24 = vector.broadcast %cst_19 : f32 to vector<8x128xf32>
    %25 = arith.maximumf %23, %24 : vector<8x128xf32>
    %26 = arith.truncf %25 : vector<8x128xf32> to vector<8x128xbf16>
    %c0_20 = arith.constant 0 : index
    %c0_21 = arith.constant 0 : index
    %27 = vector.load %arg7[%c0_20, %c0_21] : memref<128x128xbf16, #tpu.memory_space<vmem>>, vector<128x128xbf16>
    %cst_22 = arith.constant dense<0.000000e+00> : vector<8x128xf32>
    %28 = tpu.matmul %26, %27, %cst_22 {dimension_numbers = #tpu.dot_dimension_numbers<[1], [0], [0], [1], [0, 0, 1, 1], [], []>} : vector<8x128xbf16>, vector<128x128xbf16>, vector<8x128xf32> -> vector<8x128xf32>
    %cst_23 = arith.constant 0.000000e+00 : f32
    %29 = vector.broadcast %cst_23 : f32 to vector<8x128xf32>
    %30 = arith.maximumf %28, %29 : vector<8x128xf32>
    %31 = arith.truncf %30 : vector<8x128xf32> to vector<8x128xbf16>
    %c0_24 = arith.constant 0 : index
    %c0_25 = arith.constant 0 : index
    %32 = vector.load %arg8[%c0_24, %c0_25] : memref<128x128xbf16, #tpu.memory_space<vmem>>, vector<128x128xbf16>
    %cst_26 = arith.constant dense<0.000000e+00> : vector<8x128xf32>
    %33 = tpu.matmul %31, %32, %cst_26 {dimension_numbers = #tpu.dot_dimension_numbers<[1], [0], [0], [1], [0, 0, 1, 1], [], []>} : vector<8x128xbf16>, vector<128x128xbf16>, vector<8x128xf32> -> vector<8x128xf32>
    %cst_27 = arith.constant 0.000000e+00 : f32
    %34 = vector.broadcast %cst_27 : f32 to vector<8x128xf32>
    %35 = arith.maximumf %33, %34 : vector<8x128xf32>
    %36 = arith.truncf %35 : vector<8x128xf32> to vector<8x128xbf16>
    %c0_28 = arith.constant 0 : index
    %c0_29 = arith.constant 0 : index
    %37 = vector.load %arg9[%c0_28, %c0_29] : memref<128x128xbf16, #tpu.memory_space<vmem>>, vector<128x128xbf16>
    %cst_30 = arith.constant dense<0.000000e+00> : vector<8x128xf32>
    %38 = tpu.matmul %36, %37, %cst_30 {dimension_numbers = #tpu.dot_dimension_numbers<[1], [0], [0], [1], [0, 0, 1, 1], [], []>} : vector<8x128xbf16>, vector<128x128xbf16>, vector<8x128xf32> -> vector<8x128xf32>
    %cst_31 = arith.constant 0.000000e+00 : f32
    %39 = vector.broadcast %cst_31 : f32 to vector<8x128xf32>
    %40 = arith.maximumf %38, %39 : vector<8x128xf32>
    %41 = arith.truncf %40 : vector<8x128xf32> to vector<8x128xbf16>
    %c0_32 = arith.constant 0 : index
    %c0_33 = arith.constant 0 : index
    %42 = vector.load %arg10[%c0_32, %c0_33] : memref<128x128xbf16, #tpu.memory_space<vmem>>, vector<128x128xbf16>
    %cst_34 = arith.constant dense<0.000000e+00> : vector<8x128xf32>
    %43 = tpu.matmul %41, %42, %cst_34 {dimension_numbers = #tpu.dot_dimension_numbers<[1], [0], [0], [1], [0, 0, 1, 1], [], []>} : vector<8x128xbf16>, vector<128x128xbf16>, vector<8x128xf32> -> vector<8x128xf32>
    %cst_35 = arith.constant 0.000000e+00 : f32
    %44 = vector.broadcast %cst_35 : f32 to vector<8x128xf32>
    %45 = arith.maximumf %43, %44 : vector<8x128xf32>
    %46 = arith.truncf %45 : vector<8x128xf32> to vector<8x128xbf16>
    %c0_36 = arith.constant 0 : index
    %c0_37 = arith.constant 0 : index
    %47 = vector.load %arg11[%c0_36, %c0_37] : memref<128x128xbf16, #tpu.memory_space<vmem>>, vector<128x128xbf16>
    %cst_38 = arith.constant dense<0.000000e+00> : vector<8x128xf32>
    %48 = tpu.matmul %46, %47, %cst_38 {dimension_numbers = #tpu.dot_dimension_numbers<[1], [0], [0], [1], [0, 0, 1, 1], [], []>} : vector<8x128xbf16>, vector<128x128xbf16>, vector<8x128xf32> -> vector<8x128xf32>
    %c0_39 = arith.constant 0 : index
    %c0_40 = arith.constant 0 : index
    %49 = vector.load %arg12[%c0_39, %c0_40] : memref<8x128xf32, #tpu.memory_space<vmem>>, vector<8x128xf32>
    tpu.vector_store %arg12[%c0_39, %c0_40], %48 {strides = array<i32>} : memref<8x128xf32, #tpu.memory_space<vmem>>, vector<8x128xf32>,
    return
  }
  func.func @transform_0(%arg0: i32) -> (i32, i32) {
    %c0_i32 = arith.constant 0 : i32
    %c0_i32_0 = arith.constant 0 : i32
    return %arg0, %c0_i32 : i32, i32
  }
  func.func @transform_1(%arg0: i32) -> (i32, i32) {
    %c0_i32 = arith.constant 0 : i32
    %c0_i32_0 = arith.constant 0 : i32
    %c0_i32_1 = arith.constant 0 : i32
    return %c0_i32, %c0_i32_0 : i32, i32
  }
  func.func @transform_2(%arg0: i32) -> (i32, i32) {
    %c0_i32 = arith.constant 0 : i32
    %c0_i32_0 = arith.constant 0 : i32
    %c0_i32_1 = arith.constant 0 : i32
    return %c0_i32, %c0_i32_0 : i32, i32
  }
  func.func @transform_3(%arg0: i32) -> (i32, i32) {
    %c0_i32 = arith.constant 0 : i32
    %c0_i32_0 = arith.constant 0 : i32
    %c0_i32_1 = arith.constant 0 : i32
    return %c0_i32, %c0_i32_0 : i32, i32
  }
  func.func @transform_4(%arg0: i32) -> (i32, i32) {
    %c0_i32 = arith.constant 0 : i32
    %c0_i32_0 = arith.constant 0 : i32
    %c0_i32_1 = arith.constant 0 : i32
    return %c0_i32, %c0_i32_0 : i32, i32
  }
  func.func @transform_5(%arg0: i32) -> (i32, i32) {
    %c0_i32 = arith.constant 0 : i32
    %c0_i32_0 = arith.constant 0 : i32
    %c0_i32_1 = arith.constant 0 : i32
    return %c0_i32, %c0_i32_0 : i32, i32
  }
  func.func @transform_6(%arg0: i32) -> (i32, i32) {
    %c0_i32 = arith.constant 0 : i32
    %c0_i32_0 = arith.constant 0 : i32
    %c0_i32_1 = arith.constant 0 : i32
    return %c0_i32, %c0_i32_0 : i32, i32
  }
  func.func @transform_7(%arg0: i32) -> (i32, i32) {
    %c0_i32 = arith.constant 0 : i32
    %c0_i32_0 = arith.constant 0 : i32
    %c0_i32_1 = arith.constant 0 : i32
    return %c0_i32, %c0_i32_0 : i32, i32
  }
  func.func @transform_8(%arg0: i32) -> (i32, i32) {
    %c0_i32 = arith.constant 0 : i32
    %c0_i32_0 = arith.constant 0 : i32
    %c0_i32_1 = arith.constant 0 : i32
    return %c0_i32, %c0_i32_0 : i32, i32
  }
  func.func @transform_9(%arg0: i32) -> (i32, i32) {
    %c0_i32 = arith.constant 0 : i32
    %c0_i32_0 = arith.constant 0 : i32
    %c0_i32_1 = arith.constant 0 : i32
    return %c0_i32, %c0_i32_0 : i32, i32
  }
  func.func @transform_10(%arg0: i32) -> (i32, i32) {
    %c0_i32 = arith.constant 0 : i32
    %c0_i32_0 = arith.constant 0 : i32
    %c0_i32_1 = arith.constant 0 : i32
    return %c0_i32, %c0_i32_0 : i32, i32
  }
  func.func @transform_11(%arg0: i32) -> (i32, i32) {
    %c0_i32 = arith.constant 0 : i32
    %c0_i32_0 = arith.constant 0 : i32
    return %arg0, %c0_i32 : i32, i32
  }
}

</mosaic_0001>

<llo_original>
// kernel: tpu_custom_call.1
$region0: #{tpu_custom_call.1}
  #allocation0 [shape = 'u32[]', space=smem, size = 0x4, offset = 0x4, fixed_abs, tag = 'smem constant byte address 0x4 - core index']
  #allocation1 [shape = 'u32[72,128]{1,0:T(1,128)}', space=vmem, size = 0x9000, scoped, tag = 'internal scratch']
  %s0 = inlined_call_operand.hbm [shape: f32[8,1024], index: 0, kind: input, shape index: {}]
  %s1 = inlined_call_operand.hbm [shape: bf16[1024,128], index: 1, kind: input, shape index: {}]
  %s2 = inlined_call_operand.hbm [shape: bf16[128,256], index: 2, kind: input, shape index: {}]
  %s3 = inlined_call_operand.hbm [shape: bf16[256,256], index: 3, kind: input, shape index: {}]
  %s4 = inlined_call_operand.hbm [shape: bf16[256,256], index: 4, kind: input, shape index: {}]
  %s5 = inlined_call_operand.hbm [shape: bf16[256,128], index: 5, kind: input, shape index: {}]
  %s6 = inlined_call_operand.hbm [shape: bf16[128,128], index: 6, kind: input, shape index: {}]
  %s7 = inlined_call_operand.hbm [shape: bf16[128,128], index: 7, kind: input, shape index: {}]
  %s8 = inlined_call_operand.hbm [shape: bf16[128,128], index: 8, kind: input, shape index: {}]
  %s9 = inlined_call_operand.hbm [shape: bf16[128,128], index: 9, kind: input, shape index: {}]
  %s10 = inlined_call_operand.hbm [shape: bf16[128,128], index: 10, kind: input, shape index: {}]
  %s11 = inlined_call_operand.hbm [shape: f32[8,128], index: 11, kind: output, shape index: {}]
  %s12 = sld [smem:[#allocation0]]
  $region98: #{tpu_custom_call.1} parent=0
    _
  %s14 = ssub.s32 1, %s12
  %s15 = scalar_select 0, %s14, %s12
  $region1: #{tpu_custom_call.1} parent=0
    #allocation2 [shape = 'u8[32768]{0}', space=vmem, size = 0x8000, scoped, tag = 'input window, operand 0, single buffered']
    #allocation3 [shape = 's32[1]{0}', space=sflag, size = 0x4, scoped, tag = 'scoped memory for tpu_custom_call.1']
    #allocation4 [shape = 's32[1]{0}', space=sflag, size = 0x4, scoped, tag = 'scoped memory for tpu_custom_call.1']
    #allocation5 [shape = 'u8[262144]{0}', space=vmem, size = 0x40000, scoped, tag = 'input window, operand 1, single buffered']
    #allocation6 [shape = 's32[1]{0}', space=sflag, size = 0x4, scoped, tag = 'scoped memory for tpu_custom_call.1']
    #allocation7 [shape = 'u8[65536]{0}', space=vmem, size = 0x10000, scoped, tag = 'input window, operand 2, single buffered']
    #allocation8 [shape = 'u8[131072]{0}', space=vmem, size = 0x20000, scoped, tag = 'input window, operand 3, single buffered']
    #allocation9 [shape = 's32[1]{0}', space=sflag, size = 0x4, scoped, tag = 'scoped memory for tpu_custom_call.1']
    #allocation10 [shape = 'u8[131072]{0}', space=vmem, size = 0x20000, scoped, tag = 'input window, operand 4, single buffered']
    #allocation11 [shape = 'u8[65536]{0}', space=vmem, size = 0x10000, scoped, tag = 'input window, operand 5, single buffered']
    #allocation12 [shape = 's32[1]{0}', space=sflag, size = 0x4, scoped, tag = 'scoped memory for tpu_custom_call.1']
    #allocation13 [shape = 'u8[32768]{0}', space=vmem, size = 0x8000, scoped, tag = 'input window, operand 6, single buffered']
    #allocation14 [shape = 'u8[32768]{0}', space=vmem, size = 0x8000, scoped, tag = 'input window, operand 7, single buffered']
    #allocation15 [shape = 's32[1]{0}', space=sflag, size = 0x4, scoped, tag = 'scoped memory for tpu_custom_call.1']
    #allocation16 [shape = 'u8[32768]{0}', space=vmem, size = 0x8000, scoped, tag = 'input window, operand 8, single buffered']
    #allocation17 [shape = 'u8[32768]{0}', space=vmem, size = 0x8000, scoped, tag = 'input window, operand 9, single buffered']
    #allocation18 [shape = 's32[1]{0}', space=sflag, size = 0x4, scoped, tag = 'scoped memory for tpu_custom_call.1']
    #allocation19 [shape = 'u8[32768]{0}', space=vmem, size = 0x8000, scoped, tag = 'input window, operand 10, single buffered']
    #allocation20 [shape = 'u8[4096]{0}', space=vmem, size = 0x1000, scoped, tag = 'output window, operand 0, single buffered']
    %16 = vsyncpa [#allocation3], 0
    %17 = vsyncpa [#allocation6], 0
    %18 = vsyncpa [#allocation9], 0
    %19 = vsyncpa [#allocation12], 0
    %20 = vsyncpa [#allocation15], 0
    %21 = vsyncpa [#allocation18], 0
    %22 = vsyncpa [#allocation4], 0
    // Predicated region
    $region2: #{tpu_custom_call.1} parent=1 // pred_check
      _
    $region3: #{tpu_custom_call.1} parent=1 // pred_check_branch
      %24 = sbr.rel (0) target = $region5
    $region4: #{tpu_custom_call.1} parent=1 // pred_region
      %26 = vsyncadd [#allocation3], 0
      %s28 = sshll.u32 %s0, 4
      %s29 = int_to_ptr.hbm [resolvable:$true] %s28
      %s30 = sshll.u32 [#allocation2], 4
      %s31 = int_to_ptr.vmem [resolvable:$true] %s30
      %33 = dma.hbm_to_vmem [thread:$0]  %s29, 1024, %s31, [#allocation3]
    $region5: #{tpu_custom_call.1} parent=1 // pred_fallthru
      _
    // Predicated region
    $region6: #{tpu_custom_call.1} parent=1 // pred_check
      _
    $region7: #{tpu_custom_call.1} parent=1 // pred_check_branch
      %35 = sbr.rel (0) target = $region9
    $region8: #{tpu_custom_call.1} parent=1 // pred_region
      %37 = vsyncadd [#allocation6], 0
      %s38 = sshll.u32 %s1, 4
      %s39 = int_to_ptr.hbm [resolvable:$true] %s38
      %s40 = sshll.u32 [#allocation5], 4
      %s41 = int_to_ptr.vmem [resolvable:$true] %s40
      %46 = dma.hbm_to_vmem [thread:$0]  %s39, 8192, %s41, [#allocation6], 64, 64, 4
    $region9: #{tpu_custom_call.1} parent=1 // pred_fallthru
      _
    // Predicated region
    $region10: #{tpu_custom_call.1} parent=1 // pred_check
      _
    $region11: #{tpu_custom_call.1} parent=1 // pred_check_branch
      %48 = sbr.rel (0) target = $region13
    $region12: #{tpu_custom_call.1} parent=1 // pred_region
      %50 = vsyncadd [#allocation6], 0
      %s51 = sshll.u32 %s2, 4
      %s52 = int_to_ptr.hbm [resolvable:$true] %s51
      %s53 = sshll.u32 [#allocation7], 4
      %s54 = int_to_ptr.vmem [resolvable:$true] %s53
      %59 = dma.hbm_to_vmem [thread:$0]  %s52, 2048, %s54, [#allocation6], 128, 128, 8
    $region13: #{tpu_custom_call.1} parent=1 // pred_fallthru
      _
    // Predicated region
    $region14: #{tpu_custom_call.1} parent=1 // pred_check
      _
    $region15: #{tpu_custom_call.1} parent=1 // pred_check_branch
      %61 = sbr.rel (0) target = $region17
    $region16: #{tpu_custom_call.1} parent=1 // pred_region
      %63 = vsyncadd [#allocation9], 0
      %s64 = sshll.u32 %s3, 4
      %s65 = int_to_ptr.hbm [resolvable:$true] %s64
      %s66 = sshll.u32 [#allocation8], 4
      %s67 = int_to_ptr.vmem [resolvable:$true] %s66
      %72 = dma.hbm_to_vmem [thread:$0]  %s65, 4096, %s67, [#allocation9], 128, 128, 8
    $region17: #{tpu_custom_call.1} parent=1 // pred_fallthru
      _
    // Predicated region
    $region18: #{tpu_custom_call.1} parent=1 // pred_check
      _
    $region19: #{tpu_custom_call.1} parent=1 // pred_check_branch
      %74 = sbr.rel (0) target = $region21
    $region20: #{tpu_custom_call.1} parent=1 // pred_region
      %76 = vsyncadd [#allocation9], 0
      %s77 = sshll.u32 %s4, 4
      %s78 = int_to_ptr.hbm [resolvable:$true] %s77
      %s79 = sshll.u32 [#allocation10], 4
      %s80 = int_to_ptr.vmem [resolvable:$true] %s79
      %85 = dma.hbm_to_vmem [thread:$0]  %s78, 4096, %s80, [#allocation9], 128, 128, 8
    $region21: #{tpu_custom_call.1} parent=1 // pred_fallthru
      _
    // Predicated region
    $region22: #{tpu_custom_call.1} parent=1 // pred_check
      _
    $region23: #{tpu_custom_call.1} parent=1 // pred_check_branch
      %87 = sbr.rel (0) target = $region25
    $region24: #{tpu_custom_call.1} parent=1 // pred_region
      %89 = vsyncadd [#allocation12], 0
      %s90 = sshll.u32 %s5, 4
      %s91 = int_to_ptr.hbm [resolvable:$true] %s90
      %s92 = sshll.u32 [#allocation11], 4
      %s93 = int_to_ptr.vmem [resolvable:$true] %s92
      %98 = dma.hbm_to_vmem [thread:$0]  %s91, 2048, %s93, [#allocation12], 64, 64, 4
    $region25: #{tpu_custom_call.1} parent=1 // pred_fallthru
      _
    // Predicated region
    $region26: #{tpu_custom_call.1} parent=1 // pred_check
      _
    $region27: #{tpu_custom_call.1} parent=1 // pred_check_branch
      %100 = sbr.rel (0) target = $region29
    $region28: #{tpu_custom_call.1} parent=1 // pred_region
      %102 = vsyncadd [#allocation12], 0
      %s103 = sshll.u32 %s6, 4
      %s104 = int_to_ptr.hbm [resolvable:$true] %s103
      %s105 = sshll.u32 [#allocation13], 4
      %s106 = int_to_ptr.vmem [resolvable:$true] %s105
      %111 = dma.hbm_to_vmem [thread:$0]  %s104, 1024, %s106, [#allocation12], 64, 64, 4
    $region29: #{tpu_custom_call.1} parent=1 // pred_fallthru
      _
    // Predicated region
    $region30: #{tpu_custom_call.1} parent=1 // pred_check
      _
    $region31: #{tpu_custom_call.1} parent=1 // pred_check_branch
      %113 = sbr.rel (0) target = $region33
    $region32: #{tpu_custom_call.1} parent=1 // pred_region
      %115 = vsyncadd [#allocation15], 0
      %s116 = sshll.u32 %s7, 4
      %s117 = int_to_ptr.hbm [resolvable:$true] %s116
      %s118 = sshll.u32 [#allocation14], 4
      %s119 = int_to_ptr.vmem [resolvable:$true] %s118
      %124 = dma.hbm_to_vmem [thread:$0]  %s117, 1024, %s119, [#allocation15], 64, 64, 4
    $region33: #{tpu_custom_call.1} parent=1 // pred_fallthru
      _
    // Predicated region
    $region34: #{tpu_custom_call.1} parent=1 // pred_check
      _
    $region35: #{tpu_custom_call.1} parent=1 // pred_check_branch
      %126 = sbr.rel (0) target = $region37
    $region36: #{tpu_custom_call.1} parent=1 // pred_region
      %128 = vsyncadd [#allocation15], 0
      %s129 = sshll.u32 %s8, 4
      %s130 = int_to_ptr.hbm [resolvable:$true] %s129
      %s131 = sshll.u32 [#allocation16], 4
      %s132 = int_to_ptr.vmem [resolvable:$true] %s131
      %137 = dma.hbm_to_vmem [thread:$0]  %s130, 1024, %s132, [#allocation15], 64, 64, 4
    $region37: #{tpu_custom_call.1} parent=1 // pred_fallthru
      _
    // Predicated region
    $region38: #{tpu_custom_call.1} parent=1 // pred_check
      _
    $region39: #{tpu_custom_call.1} parent=1 // pred_check_branch
      %139 = sbr.rel (0) target = $region41
    $region40: #{tpu_custom_call.1} parent=1 // pred_region
      %141 = vsyncadd [#allocation18], 0
      %s142 = sshll.u32 %s9, 4
      %s143 = int_to_ptr.hbm [resolvable:$true] %s142
      %s144 = sshll.u32 [#allocation17], 4
      %s145 = int_to_ptr.vmem [resolvable:$true] %s144
      %150 = dma.hbm_to_vmem [thread:$0]  %s143, 1024, %s145, [#allocation18], 64, 64, 4
    $region41: #{tpu_custom_call.1} parent=1 // pred_fallthru
      _
    // Predicated region
    $region42: #{tpu_custom_call.1} parent=1 // pred_check
      _
    $region43: #{tpu_custom_call.1} parent=1 // pred_check_branch
      %152 = sbr.rel (0) target = $region45
    $region44: #{tpu_custom_call.1} parent=1 // pred_region
      %154 = vsyncadd [#allocation18], 0
      %s155 = sshll.u32 %s10, 4
      %s156 = int_to_ptr.hbm [resolvable:$true] %s155
      %s157 = sshll.u32 [#allocation19], 4
      %s158 = int_to_ptr.vmem [resolvable:$true] %s157
      %163 = dma.hbm_to_vmem [thread:$0]  %s156, 1024, %s158, [#allocation18], 64, 64, 4
    $region45: #{tpu_custom_call.1} parent=1 // pred_fallthru
      _
    // Predicated region
    $region46: #{tpu_custom_call.1} parent=1 // pred_check
      _
    $region47: #{tpu_custom_call.1} parent=1 // pred_check_branch
      %165 = sbr.rel (0) target = $region49
    $region48: #{tpu_custom_call.1} parent=1 // pred_region
      %167 = dma.done [#allocation3], 1024
    $region49: #{tpu_custom_call.1} parent=1 // pred_fallthru
      _
    // Predicated region
    $region50: #{tpu_custom_call.1} parent=1 // pred_check
      _
    $region51: #{tpu_custom_call.1} parent=1 // pred_check_branch
      %169 = sbr.rel (0) target = $region53
    $region52: #{tpu_custom_call.1} parent=1 // pred_region
      %171 = dma.done [#allocation6], 8192
    $region53: #{tpu_custom_call.1} parent=1 // pred_fallthru
      _
    // Predicated region
    $region54: #{tpu_custom_call.1} parent=1 // pred_check
      _
    $region55: #{tpu_custom_call.1} parent=1 // pred_check_branch
      %173 = sbr.rel (0) target = $region57
    $region56: #{tpu_custom_call.1} parent=1 // pred_region
      %175 = dma.done [#allocation6], 2048
    $region57: #{tpu_custom_call.1} parent=1 // pred_fallthru
      _
    // Predicated region
    $region58: #{tpu_custom_call.1} parent=1 // pred_check
      _
    $region59: #{tpu_custom_call.1} parent=1 // pred_check_branch
      %177 = sbr.rel (0) target = $region61
    $region60: #{tpu_custom_call.1} parent=1 // pred_region
      %179 = dma.done [#allocation9], 4096
    $region61: #{tpu_custom_call.1} parent=1 // pred_fallthru
      _
    // Predicated region
    $region62: #{tpu_custom_call.1} parent=1 // pred_check
      _
    $region63: #{tpu_custom_call.1} parent=1 // pred_check_branch
      %181 = sbr.rel (0) target = $region65
    $region64: #{tpu_custom_call.1} parent=1 // pred_region
      %183 = dma.done [#allocation9], 4096
    $region65: #{tpu_custom_call.1} parent=1 // pred_fallthru
      _
    // Predicated region
    $region66: #{tpu_custom_call.1} parent=1 // pred_check
      _
    $region67: #{tpu_custom_call.1} parent=1 // pred_check_branch
      %185 = sbr.rel (0) target = $region69
    $region68: #{tpu_custom_call.1} parent=1 // pred_region
      %187 = dma.done [#allocation12], 2048
    $region69: #{tpu_custom_call.1} parent=1 // pred_fallthru
      _
    // Predicated region
    $region70: #{tpu_custom_call.1} parent=1 // pred_check
      _
    $region71: #{tpu_custom_call.1} parent=1 // pred_check_branch
      %189 = sbr.rel (0) target = $region73
    $region72: #{tpu_custom_call.1} parent=1 // pred_region
      %191 = dma.done [#allocation12], 1024
    $region73: #{tpu_custom_call.1} parent=1 // pred_fallthru
      _
    // Predicated region
    $region74: #{tpu_custom_call.1} parent=1 // pred_check
      _
    $region75: #{tpu_custom_call.1} parent=1 // pred_check_branch
      %193 = sbr.rel (0) target = $region77
    $region76: #{tpu_custom_call.1} parent=1 // pred_region
      %195 = dma.done [#allocation15], 1024
    $region77: #{tpu_custom_call.1} parent=1 // pred_fallthru
      _
    // Predicated region
    $region78: #{tpu_custom_call.1} parent=1 // pred_check
      _
    $region79: #{tpu_custom_call.1} parent=1 // pred_check_branch
      %197 = sbr.rel (0) target = $region81
    $region80: #{tpu_custom_call.1} parent=1 // pred_region
      %199 = dma.done [#allocation15], 1024
    $region81: #{tpu_custom_call.1} parent=1 // pred_fallthru
      _
    // Predicated region
    $region82: #{tpu_custom_call.1} parent=1 // pred_check
      _
    $region83: #{tpu_custom_call.1} parent=1 // pred_check_branch
      %201 = sbr.rel (0) target = $region85
    $region84: #{tpu_custom_call.1} parent=1 // pred_region
      %203 = dma.done [#allocation18], 1024
    $region85: #{tpu_custom_call.1} parent=1 // pred_fallthru
      _
    // Predicated region
    $region86: #{tpu_custom_call.1} parent=1 // pred_check
      _
    $region87: #{tpu_custom_call.1} parent=1 // pred_check_branch
      %205 = sbr.rel (0) target = $region89
    $region88: #{tpu_custom_call.1} parent=1 // pred_region
      %207 = dma.done [#allocation18], 1024
    $region89: #{tpu_custom_call.1} parent=1 // pred_fallthru
      _
    %v208 = vld [vmem:[#allocation2] sm:$0xff]
    %v209 = vld [vmem:[#allocation2 + $0x8] sm:$0xff]
    %v210 = vld [vmem:[#allocation2 + $0x10] sm:$0xff]
    %v211 = vld [vmem:[#allocation2 + $0x18] sm:$0xff]
    %v212 = vld [vmem:[#allocation2 + $0x20] sm:$0xff]
    %v213 = vld [vmem:[#allocation2 + $0x28] sm:$0xff]
    %v214 = vld [vmem:[#allocation2 + $0x30] sm:$0xff]
    %v215 = vld [vmem:[#allocation2 + $0x38] sm:$0xff]
    %v216 = vpack.c.bf16 %v208, %v208
    %v217 = vpack.c.bf16 %v209, %v209
    %v218 = vpack.c.bf16 %v210, %v210
    %v219 = vpack.c.bf16 %v211, %v211
    %v220 = vpack.c.bf16 %v212, %v212
    %v221 = vpack.c.bf16 %v213, %v213
    %v222 = vpack.c.bf16 %v214, %v214
    %v223 = vpack.c.bf16 %v215, %v215
    %v224 = vld [vmem:[#allocation5] sm:$0xf]
    %v225 = vld [vmem:[#allocation5 + $0x4] sm:$0xf]
    %v226 = vld [vmem:[#allocation5 + $0x8] sm:$0xf]
    %v227 = vld [vmem:[#allocation5 + $0xc] sm:$0xf]
    %v228 = vld [vmem:[#allocation5 + $0x10] sm:$0xf]
    %v229 = vld [vmem:[#allocation5 + $0x14] sm:$0xf]
    %v230 = vld [vmem:[#allocation5 + $0x18] sm:$0xf]
    %v231 = vld [vmem:[#allocation5 + $0x1c] sm:$0xf]
    %v232 = vld [vmem:[#allocation5 + $0x20] sm:$0xf]
    %v233 = vld [vmem:[#allocation5 + $0x24] sm:$0xf]
    %v234 = vld [vmem:[#allocation5 + $0x28] sm:$0xf]
    %v235 = vld [vmem:[#allocation5 + $0x2c] sm:$0xf]
    %v236 = vld [vmem:[#allocation5 + $0x30] sm:$0xf]
    %v237 = vld [vmem:[#allocation5 + $0x34] sm:$0xf]
    %v238 = vld [vmem:[#allocation5 + $0x38] sm:$0xf]
    %v239 = vld [vmem:[#allocation5 + $0x3c] sm:$0xf]
    %v240 = vld [vmem:[#allocation5 + $0x40] sm:$0xf]
    %v241 = vld [vmem:[#allocation5 + $0x44] sm:$0xf]
    %v242 = vld [vmem:[#allocation5 + $0x48] sm:$0xf]
    %v243 = vld [vmem:[#allocation5 + $0x4c] sm:$0xf]
    %v244 = vld [vmem:[#allocation5 + $0x50] sm:$0xf]
    %v245 = vld [vmem:[#allocation5 + $0x54] sm:$0xf]
    %v246 = vld [vmem:[#allocation5 + $0x58] sm:$0xf]
    %v247 = vld [vmem:[#allocation5 + $0x5c] sm:$0xf]
    %v248 = vld [vmem:[#allocation5 + $0x60] sm:$0xf]
    %v249 = vld [vmem:[#allocation5 + $0x64] sm:$0xf]
    %v250 = vld [vmem:[#allocation5 + $0x68] sm:$0xf]
    %v251 = vld [vmem:[#allocation5 + $0x6c] sm:$0xf]
    %v252 = vld [vmem:[#allocation5 + $0x70] sm:$0xf]
    %v253 = vld [vmem:[#allocation5 + $0x74] sm:$0xf]
    %v254 = vld [vmem:[#allocation5 + $0x78] sm:$0xf]
    %v255 = vld [vmem:[#allocation5 + $0x7c] sm:$0xf]
    %v256 = vld [vmem:[#allocation5 + $0x80] sm:$0xf]
    %v257 = vld [vmem:[#allocation5 + $0x84] sm:$0xf]
    %v258 = vld [vmem:[#allocation5 + $0x88] sm:$0xf]
    %v259 = vld [vmem:[#allocation5 + $0x8c] sm:$0xf]
    %v260 = vld [vmem:[#allocation5 + $0x90] sm:$0xf]
    %v261 = vld [vmem:[#allocation5 + $0x94] sm:$0xf]
    %v262 = vld [vmem:[#allocation5 + $0x98] sm:$0xf]
    %v263 = vld [vmem:[#allocation5 + $0x9c] sm:$0xf]
    %v264 = vld [vmem:[#allocation5 + $0xa0] sm:$0xf]
    %v265 = vld [vmem:[#allocation5 + $0xa4] sm:$0xf]
    %v266 = vld [vmem:[#allocation5 + $0xa8] sm:$0xf]
    %v267 = vld [vmem:[#allocation5 + $0xac] sm:$0xf]
    %v268 = vld [vmem:[#allocation5 + $0xb0] sm:$0xf]
    %v269 = vld [vmem:[#allocation5 + $0xb4] sm:$0xf]
    %v270 = vld [vmem:[#allocation5 + $0xb8] sm:$0xf]
    %v271 = vld [vmem:[#allocation5 + $0xbc] sm:$0xf]
    %v272 = vld [vmem:[#allocation5 + $0xc0] sm:$0xf]
    %v273 = vld [vmem:[#allocation5 + $0xc4] sm:$0xf]
    %v274 = vld [vmem:[#allocation5 + $0xc8] sm:$0xf]
    %v275 = vld [vmem:[#allocation5 + $0xcc] sm:$0xf]
    %v276 = vld [vmem:[#allocation5 + $0xd0] sm:$0xf]
    %v277 = vld [vmem:[#allocation5 + $0xd4] sm:$0xf]
    %v278 = vld [vmem:[#allocation5 + $0xd8] sm:$0xf]
    %v279 = vld [vmem:[#allocation5 + $0xdc] sm:$0xf]
    %v280 = vld [vmem:[#allocation5 + $0xe0] sm:$0xf]
    %v281 = vld [vmem:[#allocation5 + $0xe4] sm:$0xf]
    %v282 = vld [vmem:[#allocation5 + $0xe8] sm:$0xf]
    %v283 = vld [vmem:[#allocation5 + $0xec] sm:$0xf]
    %v284 = vld [vmem:[#allocation5 + $0xf0] sm:$0xf]
    %v285 = vld [vmem:[#allocation5 + $0xf4] sm:$0xf]
    %v286 = vld [vmem:[#allocation5 + $0xf8] sm:$0xf]
    %v287 = vld [vmem:[#allocation5 + $0xfc] sm:$0xf]
    %v288 = vld [vmem:[#allocation5 + $0x100] sm:$0xf]
    %v289 = vld [vmem:[#allocation5 + $0x104] sm:$0xf]
    %v290 = vld [vmem:[#allocation5 + $0x108] sm:$0xf]
    %v291 = vld [vmem:[#allocation5 + $0x10c] sm:$0xf]
    %v292 = vld [vmem:[#allocation5 + $0x110] sm:$0xf]
    %v293 = vld [vmem:[#allocation5 + $0x114] sm:$0xf]
    %v294 = vld [vmem:[#allocation5 + $0x118] sm:$0xf]
    %v295 = vld [vmem:[#allocation5 + $0x11c] sm:$0xf]
    %v296 = vld [vmem:[#allocation5 + $0x120] sm:$0xf]
    %v297 = vld [vmem:[#allocation5 + $0x124] sm:$0xf]
    %v298 = vld [vmem:[#allocation5 + $0x128] sm:$0xf]
    %v299 = vld [vmem:[#allocation5 + $0x12c] sm:$0xf]
    %v300 = vld [vmem:[#allocation5 + $0x130] sm:$0xf]
    %v301 = vld [vmem:[#allocation5 + $0x134] sm:$0xf]
    %v302 = vld [vmem:[#allocation5 + $0x138] sm:$0xf]
    %v303 = vld [vmem:[#allocation5 + $0x13c] sm:$0xf]
    %v304 = vld [vmem:[#allocation5 + $0x140] sm:$0xf]
    %v305 = vld [vmem:[#allocation5 + $0x144] sm:$0xf]
    %v306 = vld [vmem:[#allocation5 + $0x148] sm:$0xf]
    %v307 = vld [vmem:[#allocation5 + $0x14c] sm:$0xf]
    %v308 = vld [vmem:[#allocation5 + $0x150] sm:$0xf]
    %v309 = vld [vmem:[#allocation5 + $0x154] sm:$0xf]
    %v310 = vld [vmem:[#allocation5 + $0x158] sm:$0xf]
    %v311 = vld [vmem:[#allocation5 + $0x15c] sm:$0xf]
    %v312 = vld [vmem:[#allocation5 + $0x160] sm:$0xf]
    %v313 = vld [vmem:[#allocation5 + $0x164] sm:$0xf]
    %v314 = vld [vmem:[#allocation5 + $0x168] sm:$0xf]
    %v315 = vld [vmem:[#allocation5 + $0x16c] sm:$0xf]
    %v316 = vld [vmem:[#allocation5 + $0x170] sm:$0xf]
    %v317 = vld [vmem:[#allocation5 + $0x174] sm:$0xf]
    %v318 = vld [vmem:[#allocation5 + $0x178] sm:$0xf]
    %v319 = vld [vmem:[#allocation5 + $0x17c] sm:$0xf]
    %v320 = vld [vmem:[#allocation5 + $0x180] sm:$0xf]
    %v321 = vld [vmem:[#allocation5 + $0x184] sm:$0xf]
    %v322 = vld [vmem:[#allocation5 + $0x188] sm:$0xf]
    %v323 = vld [vmem:[#allocation5 + $0x18c] sm:$0xf]
    %v324 = vld [vmem:[#allocation5 + $0x190] sm:$0xf]
    %v325 = vld [vmem:[#allocation5 + $0x194] sm:$0xf]
    %v326 = vld [vmem:[#allocation5 + $0x198] sm:$0xf]
    %v327 = vld [vmem:[#allocation5 + $0x19c] sm:$0xf]
    %v328 = vld [vmem:[#allocation5 + $0x1a0] sm:$0xf]
    %v329 = vld [vmem:[#allocation5 + $0x1a4] sm:$0xf]
    %v330 = vld [vmem:[#allocation5 + $0x1a8] sm:$0xf]
    %v331 = vld [vmem:[#allocation5 + $0x1ac] sm:$0xf]
    %v332 = vld [vmem:[#allocation5 + $0x1b0] sm:$0xf]
    %v333 = vld [vmem:[#allocation5 + $0x1b4] sm:$0xf]
    %v334 = vld [vmem:[#allocation5 + $0x1b8] sm:$0xf]
    %v335 = vld [vmem:[#allocation5 + $0x1bc] sm:$0xf]
    %v336 = vld [vmem:[#allocation5 + $0x1c0] sm:$0xf]
    %v337 = vld [vmem:[#allocation5 + $0x1c4] sm:$0xf]
    %v338 = vld [vmem:[#allocation5 + $0x1c8] sm:$0xf]
    %v339 = vld [vmem:[#allocation5 + $0x1cc] sm:$0xf]
    %v340 = vld [vmem:[#allocation5 + $0x1d0] sm:$0xf]
    %v341 = vld [vmem:[#allocation5 + $0x1d4] sm:$0xf]
    %v342 = vld [vmem:[#allocation5 + $0x1d8] sm:$0xf]
    %v343 = vld [vmem:[#allocation5 + $0x1dc] sm:$0xf]
    %v344 = vld [vmem:[#allocation5 + $0x1e0] sm:$0xf]
    %v345 = vld [vmem:[#allocation5 + $0x1e4] sm:$0xf]
    %v346 = vld [vmem:[#allocation5 + $0x1e8] sm:$0xf]
    %v347 = vld [vmem:[#allocation5 + $0x1ec] sm:$0xf]
    %v348 = vld [vmem:[#allocation5 + $0x1f0] sm:$0xf]
    %v349 = vld [vmem:[#allocation5 + $0x1f4] sm:$0xf]
    %v350 = vld [vmem:[#allocation5 + $0x1f8] sm:$0xf]
    %v351 = vld [vmem:[#allocation5 + $0x1fc] sm:$0xf]
    %v480 = vunpack.c.l.b16 %v224
    %v481 = vunpack.c.l.b16 %v225
    %v482 = vunpack.c.l.b16 %v226
    %v483 = vunpack.c.l.b16 %v227
    %v484 = vunpack.c.l.b16 %v228
    %v485 = vunpack.c.l.b16 %v229
    %v486 = vunpack.c.l.b16 %v230
    %v487 = vunpack.c.l.b16 %v231
    %v488 = vunpack.c.l.b16 %v232
    %v489 = vunpack.c.l.b16 %v233
    %v490 = vunpack.c.l.b16 %v234
    %v491 = vunpack.c.l.b16 %v235
    %v492 = vunpack.c.l.b16 %v236
    %v493 = vunpack.c.l.b16 %v237
    %v494 = vunpack.c.l.b16 %v238
    %v495 = vunpack.c.l.b16 %v239
    %v496 = vunpack.c.l.b16 %v240
    %v497 = vunpack.c.l.b16 %v241
    %v498 = vunpack.c.l.b16 %v242
    %v499 = vunpack.c.l.b16 %v243
    %v500 = vunpack.c.l.b16 %v244
    %v501 = vunpack.c.l.b16 %v245
    %v502 = vunpack.c.l.b16 %v246
    %v503 = vunpack.c.l.b16 %v247
    %v504 = vunpack.c.l.b16 %v248
    %v505 = vunpack.c.l.b16 %v249
    %v506 = vunpack.c.l.b16 %v250
    %v507 = vunpack.c.l.b16 %v251
    %v508 = vunpack.c.l.b16 %v252
    %v509 = vunpack.c.l.b16 %v253
    %v510 = vunpack.c.l.b16 %v254
    %v511 = vunpack.c.l.b16 %v255
    %v512 = vunpack.c.l.b16 %v256
    %v513 = vunpack.c.l.b16 %v257
    %v514 = vunpack.c.l.b16 %v258
    %v515 = vunpack.c.l.b16 %v259
    %v516 = vunpack.c.l.b16 %v260
    %v517 = vunpack.c.l.b16 %v261
    %v518 = vunpack.c.l.b16 %v262
    %v519 = vunpack.c.l.b16 %v263
    %v520 = vunpack.c.l.b16 %v264
    %v521 = vunpack.c.l.b16 %v265
    %v522 = vunpack.c.l.b16 %v266
    %v523 = vunpack.c.l.b16 %v267
    %v524 = vunpack.c.l.b16 %v268
    %v525 = vunpack.c.l.b16 %v269
    %v526 = vunpack.c.l.b16 %v270
    %v527 = vunpack.c.l.b16 %v271
    %v528 = vunpack.c.l.b16 %v272
    %v529 = vunpack.c.l.b16 %v273
    %v530 = vunpack.c.l.b16 %v274
    %v531 = vunpack.c.l.b16 %v275
    %v532 = vunpack.c.l.b16 %v276
    %v533 = vunpack.c.l.b16 %v277
    %v534 = vunpack.c.l.b16 %v278
    %v535 = vunpack.c.l.b16 %v279
    %v536 = vunpack.c.l.b16 %v280
    %v537 = vunpack.c.l.b16 %v281
    %v538 = vunpack.c.l.b16 %v282
    %v539 = vunpack.c.l.b16 %v283
    %v540 = vunpack.c.l.b16 %v284
    %v541 = vunpack.c.l.b16 %v285
    %v542 = vunpack.c.l.b16 %v286
    %v543 = vunpack.c.l.b16 %v287
    %v544 = vunpack.c.l.b16 %v288
    %v545 = vunpack.c.l.b16 %v289
    %v546 = vunpack.c.l.b16 %v290
    %v547 = vunpack.c.l.b16 %v291
    %v548 = vunpack.c.l.b16 %v292
    %v549 = vunpack.c.l.b16 %v293
    %v550 = vunpack.c.l.b16 %v294
    %v551 = vunpack.c.l.b16 %v295
    %v552 = vunpack.c.l.b16 %v296
    %v553 = vunpack.c.l.b16 %v297
    %v554 = vunpack.c.l.b16 %v298
    %v555 = vunpack.c.l.b16 %v299
    %v556 = vunpack.c.l.b16 %v300
    %v557 = vunpack.c.l.b16 %v301
    %v558 = vunpack.c.l.b16 %v302
    %v559 = vunpack.c.l.b16 %v303
    %v560 = vunpack.c.l.b16 %v304
    %v561 = vunpack.c.l.b16 %v305
    %v562 = vunpack.c.l.b16 %v306
    %v563 = vunpack.c.l.b16 %v307
    %v564 = vunpack.c.l.b16 %v308
    %v565 = vunpack.c.l.b16 %v309
    %v566 = vunpack.c.l.b16 %v310
    %v567 = vunpack.c.l.b16 %v311
    %v568 = vunpack.c.l.b16 %v312
    %v569 = vunpack.c.l.b16 %v313
    %v570 = vunpack.c.l.b16 %v314
    %v571 = vunpack.c.l.b16 %v315
    %v572 = vunpack.c.l.b16 %v316
    %v573 = vunpack.c.l.b16 %v317
    %v574 = vunpack.c.l.b16 %v318
    %v575 = vunpack.c.l.b16 %v319
    %v576 = vunpack.c.l.b16 %v320
    %v577 = vunpack.c.l.b16 %v321
    %v578 = vunpack.c.l.b16 %v322
    %v579 = vunpack.c.l.b16 %v323
    %v580 = vunpack.c.l.b16 %v324
    %v581 = vunpack.c.l.b16 %v325
    %v582 = vunpack.c.l.b16 %v326
    %v583 = vunpack.c.l.b16 %v327
    %v584 = vunpack.c.l.b16 %v328
    %v585 = vunpack.c.l.b16 %v329
    %v586 = vunpack.c.l.b16 %v330
    %v587 = vunpack.c.l.b16 %v331
    %v588 = vunpack.c.l.b16 %v332
    %v589 = vunpack.c.l.b16 %v333
    %v590 = vunpack.c.l.b16 %v334
    %v591 = vunpack.c.l.b16 %v335
    %v592 = vunpack.c.l.b16 %v336
    %v593 = vunpack.c.l.b16 %v337
    %v594 = vunpack.c.l.b16 %v338
    %v595 = vunpack.c.l.b16 %v339
    %v596 = vunpack.c.l.b16 %v340
    %v597 = vunpack.c.l.b16 %v341
    %v598 = vunpack.c.l.b16 %v342
    %v599 = vunpack.c.l.b16 %v343
    %v600 = vunpack.c.l.b16 %v344
    %v601 = vunpack.c.l.b16 %v345
    %v602 = vunpack.c.l.b16 %v346
    %v603 = vunpack.c.l.b16 %v347
    %v604 = vunpack.c.l.b16 %v348
    %v605 = vunpack.c.l.b16 %v349
    %v606 = vunpack.c.l.b16 %v350
    %v607 = vunpack.c.l.b16 %v351
    %v608 = vpack.c.b16 %v481, %v480
    %v609 = vpack.c.b16 %v483, %v482
    %v610 = vpack.c.b16 %v485, %v484
    %v611 = vpack.c.b16 %v487, %v486
    %v612 = vpack.c.b16 %v489, %v488
    %v613 = vpack.c.b16 %v491, %v490
    %v614 = vpack.c.b16 %v493, %v492
    %v615 = vpack.c.b16 %v495, %v494
    %v616 = vpack.c.b16 %v497, %v496
    %v617 = vpack.c.b16 %v499, %v498
    %v618 = vpack.c.b16 %v501, %v500
    %v619 = vpack.c.b16 %v503, %v502
    %v620 = vpack.c.b16 %v505, %v504
    %v621 = vpack.c.b16 %v507, %v506
    %v622 = vpack.c.b16 %v509, %v508
    %v623 = vpack.c.b16 %v511, %v510
    %v624 = vpack.c.b16 %v513, %v512
    %v625 = vpack.c.b16 %v515, %v514
    %v626 = vpack.c.b16 %v517, %v516
    %v627 = vpack.c.b16 %v519, %v518
    %v628 = vpack.c.b16 %v521, %v520
    %v629 = vpack.c.b16 %v523, %v522
    %v630 = vpack.c.b16 %v525, %v524
    %v631 = vpack.c.b16 %v527, %v526
    %v632 = vpack.c.b16 %v529, %v528
    %v633 = vpack.c.b16 %v531, %v530
    %v634 = vpack.c.b16 %v533, %v532
    %v635 = vpack.c.b16 %v535, %v534
    %v636 = vpack.c.b16 %v537, %v536
    %v637 = vpack.c.b16 %v539, %v538
    %v638 = vpack.c.b16 %v541, %v540
    %v639 = vpack.c.b16 %v543, %v542
    %v640 = vpack.c.b16 %v545, %v544
    %v641 = vpack.c.b16 %v547, %v546
    %v642 = vpack.c.b16 %v549, %v548
    %v643 = vpack.c.b16 %v551, %v550
    %v644 = vpack.c.b16 %v553, %v552
    %v645 = vpack.c.b16 %v555, %v554
    %v646 = vpack.c.b16 %v557, %v556
    %v647 = vpack.c.b16 %v559, %v558
    %v648 = vpack.c.b16 %v561, %v560
    %v649 = vpack.c.b16 %v563, %v562
    %v650 = vpack.c.b16 %v565, %v564
    %v651 = vpack.c.b16 %v567, %v566
    %v652 = vpack.c.b16 %v569, %v568
    %v653 = vpack.c.b16 %v571, %v570
    %v654 = vpack.c.b16 %v573, %v572
    %v655 = vpack.c.b16 %v575, %v574
    %v656 = vpack.c.b16 %v577, %v576
    %v657 = vpack.c.b16 %v579, %v578
    %v658 = vpack.c.b16 %v581, %v580
    %v659 = vpack.c.b16 %v583, %v582
    %v660 = vpack.c.b16 %v585, %v584
    %v661 = vpack.c.b16 %v587, %v586
    %v662 = vpack.c.b16 %v589, %v588
    %v663 = vpack.c.b16 %v591, %v590
    %v664 = vpack.c.b16 %v593, %v592
    %v665 = vpack.c.b16 %v595, %v594
    %v666 = vpack.c.b16 %v597, %v596
    %v667 = vpack.c.b16 %v599, %v598
    %v668 = vpack.c.b16 %v601, %v600
    %v669 = vpack.c.b16 %v603, %v602
    %v670 = vpack.c.b16 %v605, %v604
    %v671 = vpack.c.b16 %v607, %v606
    %736 = vmatpush.bf16.msra.mxu0 %v615
    %737 = vmatpush.bf16.msra.mxu0 %v614
    %738 = vmatpush.bf16.msra.mxu0 %v613
    %739 = vmatpush.bf16.msra.mxu0 %v612
    %740 = vmatpush.bf16.msra.mxu0 %v611
    %741 = vmatpush.bf16.msra.mxu0 %v610
    %742 = vmatpush.bf16.msra.mxu0 %v609
    %743 = vmatpush.bf16.msra.mxu0 %v608
    %744 = vmatmul.bf16.gmra.mxu0 %v216
    %v745 = vpop.f32.mrf.mxu0
    %v746 = vadd.f32 0.0, %v745
    %v747 = vpop.f32.mrf.mxu0
    %748 = vdwg.mxu0
    %749 = vmatpush.bf16.msra.mxu0 %v623
    %750 = vmatpush.bf16.msra.mxu0 %v622
    %751 = vmatpush.bf16.msra.mxu0 %v621
    %752 = vmatpush.bf16.msra.mxu0 %v620
    %753 = vmatpush.bf16.msra.mxu0 %v619
    %754 = vmatpush.bf16.msra.mxu0 %v618
    %755 = vmatpush.bf16.msra.mxu0 %v617
    %756 = vmatpush.bf16.msra.mxu0 %v616
    %757 = vmatmul.bf16.gmra.mxu0 %v217
    %v758 = vpop.f32.mrf.mxu0
    %v759 = vadd.f32 %v746, %v758
    %v760 = vpop.f32.mrf.mxu0
    %761 = vdwg.mxu0
    %762 = vmatpush.bf16.msra.mxu0 %v631
    %763 = vmatpush.bf16.msra.mxu0 %v630
    %764 = vmatpush.bf16.msra.mxu0 %v629
    %765 = vmatpush.bf16.msra.mxu0 %v628
    %766 = vmatpush.bf16.msra.mxu0 %v627
    %767 = vmatpush.bf16.msra.mxu0 %v626
    %768 = vmatpush.bf16.msra.mxu0 %v625
    %769 = vmatpush.bf16.msra.mxu0 %v624
    %770 = vmatmul.bf16.gmra.mxu0 %v218
    %v771 = vpop.f32.mrf.mxu0
    %v772 = vadd.f32 %v759, %v771
    %v773 = vpop.f32.mrf.mxu0
    %774 = vdwg.mxu0
    %775 = vmatpush.bf16.msra.mxu0 %v639
    %776 = vmatpush.bf16.msra.mxu0 %v638
    %777 = vmatpush.bf16.msra.mxu0 %v637
    %778 = vmatpush.bf16.msra.mxu0 %v636
    %779 = vmatpush.bf16.msra.mxu0 %v635
    %780 = vmatpush.bf16.msra.mxu0 %v634
    %781 = vmatpush.bf16.msra.mxu0 %v633
    %782 = vmatpush.bf16.msra.mxu0 %v632
    %783 = vmatmul.bf16.gmra.mxu0 %v219
    %v784 = vpop.f32.mrf.mxu0
    %v785 = vadd.f32 %v772, %v784
    %v786 = vpop.f32.mrf.mxu0
    %787 = vdwg.mxu0
    %788 = vmatpush.bf16.msra.mxu0 %v647
    %789 = vmatpush.bf16.msra.mxu0 %v646
    %790 = vmatpush.bf16.msra.mxu0 %v645
    %791 = vmatpush.bf16.msra.mxu0 %v644
    %792 = vmatpush.bf16.msra.mxu0 %v643
    %793 = vmatpush.bf16.msra.mxu0 %v642
    %794 = vmatpush.bf16.msra.mxu0 %v641
    %795 = vmatpush.bf16.msra.mxu0 %v640
    %796 = vmatmul.bf16.gmra.mxu0 %v220
    %v797 = vpop.f32.mrf.mxu0
    %v798 = vadd.f32 %v785, %v797
    %v799 = vpop.f32.mrf.mxu0
    %800 = vdwg.mxu0
    %801 = vmatpush.bf16.msra.mxu0 %v655
    %802 = vmatpush.bf16.msra.mxu0 %v654
    %803 = vmatpush.bf16.msra.mxu0 %v653
    %804 = vmatpush.bf16.msra.mxu0 %v652
    %805 = vmatpush.bf16.msra.mxu0 %v651
    %806 = vmatpush.bf16.msra.mxu0 %v650
    %807 = vmatpush.bf16.msra.mxu0 %v649
    %808 = vmatpush.bf16.msra.mxu0 %v648
    %809 = vmatmul.bf16.gmra.mxu0 %v221
    %v810 = vpop.f32.mrf.mxu0
    %v811 = vadd.f32 %v798, %v810
    %v812 = vpop.f32.mrf.mxu0
    %813 = vdwg.mxu0
    %814 = vmatpush.bf16.msra.mxu0 %v663
    %815 = vmatpush.bf16.msra.mxu0 %v662
    %816 = vmatpush.bf16.msra.mxu0 %v661
    %817 = vmatpush.bf16.msra.mxu0 %v660
    %818 = vmatpush.bf16.msra.mxu0 %v659
    %819 = vmatpush.bf16.msra.mxu0 %v658
    %820 = vmatpush.bf16.msra.mxu0 %v657
    %821 = vmatpush.bf16.msra.mxu0 %v656
    %822 = vmatmul.bf16.gmra.mxu0 %v222
    %v823 = vpop.f32.mrf.mxu0
    %v824 = vadd.f32 %v811, %v823
    %v825 = vpop.f32.mrf.mxu0
    %826 = vdwg.mxu0
    %827 = vmatpush.bf16.msra.mxu0 %v671
    %828 = vmatpush.bf16.msra.mxu0 %v670
    %829 = vmatpush.bf16.msra.mxu0 %v669
    %830 = vmatpush.bf16.msra.mxu0 %v668
    %831 = vmatpush.bf16.msra.mxu0 %v667
    %832 = vmatpush.bf16.msra.mxu0 %v666
    %833 = vmatpush.bf16.msra.mxu0 %v665
    %834 = vmatpush.bf16.msra.mxu0 %v664
    %835 = vmatmul.bf16.gmra.mxu0 %v223
    %v836 = vpop.f32.mrf.mxu0
    %v837 = vadd.f32 %v824, %v836
    %v838 = vpop.f32.mrf.mxu0
    %839 = vdwg.mxu0
    %v840 = vmax.f32 %v837, 0.0
    %v841 = vpack.c.bf16 %v840, %v840
    %v842 = vld [vmem:[#allocation7] sm:$0xff]
    %v843 = vld [vmem:[#allocation7 + $0x8] sm:$0xff]
    %v844 = vld [vmem:[#allocation7 + $0x10] sm:$0xff]
    %v845 = vld [vmem:[#allocation7 + $0x18] sm:$0xff]
    %v846 = vld [vmem:[#allocation7 + $0x20] sm:$0xff]
    %v847 = vld [vmem:[#allocation7 + $0x28] sm:$0xff]
    %v848 = vld [vmem:[#allocation7 + $0x30] sm:$0xff]
    %v849 = vld [vmem:[#allocation7 + $0x38] sm:$0xff]
    %v850 = vld [vmem:[#allocation7 + $0x40] sm:$0xff]
    %v851 = vld [vmem:[#allocation7 + $0x48] sm:$0xff]
    %v852 = vld [vmem:[#allocation7 + $0x50] sm:$0xff]
    %v853 = vld [vmem:[#allocation7 + $0x58] sm:$0xff]
    %v854 = vld [vmem:[#allocation7 + $0x60] sm:$0xff]
    %v855 = vld [vmem:[#allocation7 + $0x68] sm:$0xff]
    %v856 = vld [vmem:[#allocation7 + $0x70] sm:$0xff]
    %v857 = vld [vmem:[#allocation7 + $0x78] sm:$0xff]
    %v874 = vunpack.c.l.b16 %v842
    %v875 = vunpack.c.h.b16 %v842
    %v876 = vunpack.c.l.b16 %v843
    %v877 = vunpack.c.h.b16 %v843
    %v878 = vunpack.c.l.b16 %v844
    %v879 = vunpack.c.h.b16 %v844
    %v880 = vunpack.c.l.b16 %v845
    %v881 = vunpack.c.h.b16 %v845
    %v882 = vunpack.c.l.b16 %v846
    %v883 = vunpack.c.h.b16 %v846
    %v884 = vunpack.c.l.b16 %v847
    %v885 = vunpack.c.h.b16 %v847
    %v886 = vunpack.c.l.b16 %v848
    %v887 = vunpack.c.h.b16 %v848
    %v888 = vunpack.c.l.b16 %v849
    %v889 = vunpack.c.h.b16 %v849
    %v890 = vunpack.c.l.b16 %v850
    %v891 = vunpack.c.h.b16 %v850
    %v892 = vunpack.c.l.b16 %v851
    %v893 = vunpack.c.h.b16 %v851
    %v894 = vunpack.c.l.b16 %v852
    %v895 = vunpack.c.h.b16 %v852
    %v896 = vunpack.c.l.b16 %v853
    %v897 = vunpack.c.h.b16 %v853
    %v898 = vunpack.c.l.b16 %v854
    %v899 = vunpack.c.h.b16 %v854
    %v900 = vunpack.c.l.b16 %v855
    %v901 = vunpack.c.h.b16 %v855
    %v902 = vunpack.c.l.b16 %v856
    %v903 = vunpack.c.h.b16 %v856
    %v904 = vunpack.c.l.b16 %v857
    %v905 = vunpack.c.h.b16 %v857
    %v906 = vpack.c.b16 %v876, %v874
    %v907 = vpack.c.b16 %v877, %v875
    %v908 = vpack.c.b16 %v880, %v878
    %v909 = vpack.c.b16 %v881, %v879
    %v910 = vpack.c.b16 %v884, %v882
    %v911 = vpack.c.b16 %v885, %v883
    %v912 = vpack.c.b16 %v888, %v886
    %v913 = vpack.c.b16 %v889, %v887
    %v914 = vpack.c.b16 %v892, %v890
    %v915 = vpack.c.b16 %v893, %v891
    %v916 = vpack.c.b16 %v896, %v894
    %v917 = vpack.c.b16 %v897, %v895
    %v918 = vpack.c.b16 %v900, %v898
    %v919 = vpack.c.b16 %v901, %v899
    %v920 = vpack.c.b16 %v904, %v902
    %v921 = vpack.c.b16 %v905, %v903
    %938 = vmatpush.bf16.msra.mxu0 %v920
    %939 = vmatpush.bf16.msra.mxu0 %v918
    %940 = vmatpush.bf16.msra.mxu0 %v916
    %941 = vmatpush.bf16.msra.mxu0 %v914
    %942 = vmatpush.bf16.msra.mxu0 %v912
    %943 = vmatpush.bf16.msra.mxu0 %v910
    %944 = vmatpush.bf16.msra.mxu0 %v908
    %945 = vmatpush.bf16.msra.mxu0 %v906
    %946 = vmatmul.bf16.gmra.mxu0 %v841
    %v947 = vpop.f32.mrf.mxu0
    %v948 = vadd.f32 0.0, %v947
    %v949 = vpop.f32.mrf.mxu0
    %950 = vdwg.mxu0
    %951 = vmatpush.bf16.msra.mxu0 %v921
    %952 = vmatpush.bf16.msra.mxu0 %v919
    %953 = vmatpush.bf16.msra.mxu0 %v917
    %954 = vmatpush.bf16.msra.mxu0 %v915
    %955 = vmatpush.bf16.msra.mxu0 %v913
    %956 = vmatpush.bf16.msra.mxu0 %v911
    %957 = vmatpush.bf16.msra.mxu0 %v909
    %958 = vmatpush.bf16.msra.mxu0 %v907
    %959 = vmatmul.bf16.gmra.mxu0 %v841
    %v960 = vpop.f32.mrf.mxu0
    %v961 = vadd.f32 0.0, %v960
    %v962 = vpop.f32.mrf.mxu0
    %963 = vdwg.mxu0
    %v964 = vmax.f32 %v948, 0.0
    %v965 = vmax.f32 %v961, 0.0
    %v966 = vpack.c.bf16 %v964, %v964
    %v967 = vpack.c.bf16 %v965, %v965
    %v968 = vld [vmem:[#allocation8] sm:$0xff]
    %v969 = vld [vmem:[#allocation8 + $0x8] sm:$0xff]
    %v970 = vld [vmem:[#allocation8 + $0x10] sm:$0xff]
    %v971 = vld [vmem:[#allocation8 + $0x18] sm:$0xff]
    %v972 = vld [vmem:[#allocation8 + $0x20] sm:$0xff]
    %v973 = vld [vmem:[#allocation8 + $0x28] sm:$0xff]
    %v974 = vld [vmem:[#allocation8 + $0x30] sm:$0xff]
    %v975 = vld [vmem:[#allocation8 + $0x38] sm:$0xff]
    %v976 = vld [vmem:[#allocation8 + $0x40] sm:$0xff]
    %v977 = vld [vmem:[#allocation8 + $0x48] sm:$0xff]
    %v978 = vld [vmem:[#allocation8 + $0x50] sm:$0xff]
    %v979 = vld [vmem:[#allocation8 + $0x58] sm:$0xff]
    %v980 = vld [vmem:[#allocation8 + $0x60] sm:$0xff]
    %v981 = vld [vmem:[#allocation8 + $0x68] sm:$0xff]
    %v982 = vld [vmem:[#allocation8 + $0x70] sm:$0xff]
    %v983 = vld [vmem:[#allocation8 + $0x78] sm:$0xff]
    %v984 = vld [vmem:[#allocation8 + $0x80] sm:$0xff]
    %v985 = vld [vmem:[#allocation8 + $0x88] sm:$0xff]
    %v986 = vld [vmem:[#allocation8 + $0x90] sm:$0xff]
    %v987 = vld [vmem:[#allocation8 + $0x98] sm:$0xff]
    %v988 = vld [vmem:[#allocation8 + $0xa0] sm:$0xff]
    %v989 = vld [vmem:[#allocation8 + $0xa8] sm:$0xff]
    %v990 = vld [vmem:[#allocation8 + $0xb0] sm:$0xff]
    %v991 = vld [vmem:[#allocation8 + $0xb8] sm:$0xff]
    %v992 = vld [vmem:[#allocation8 + $0xc0] sm:$0xff]
    %v993 = vld [vmem:[#allocation8 + $0xc8] sm:$0xff]
    %v994 = vld [vmem:[#allocation8 + $0xd0] sm:$0xff]
    %v995 = vld [vmem:[#allocation8 + $0xd8] sm:$0xff]
    %v996 = vld [vmem:[#allocation8 + $0xe0] sm:$0xff]
    %v997 = vld [vmem:[#allocation8 + $0xe8] sm:$0xff]
    %v998 = vld [vmem:[#allocation8 + $0xf0] sm:$0xff]
    %v999 = vld [vmem:[#allocation8 + $0xf8] sm:$0xff]
    %v1032 = vunpack.c.l.b16 %v968
    %v1033 = vunpack.c.h.b16 %v968
    %v1034 = vunpack.c.l.b16 %v969
    %v1035 = vunpack.c.h.b16 %v969
    %v1036 = vunpack.c.l.b16 %v970
    %v1037 = vunpack.c.h.b16 %v970
    %v1038 = vunpack.c.l.b16 %v971
    %v1039 = vunpack.c.h.b16 %v971
    %v1040 = vunpack.c.l.b16 %v972
    %v1041 = vunpack.c.h.b16 %v972
    %v1042 = vunpack.c.l.b16 %v973
    %v1043 = vunpack.c.h.b16 %v973
    %v1044 = vunpack.c.l.b16 %v974
    %v1045 = vunpack.c.h.b16 %v974
    %v1046 = vunpack.c.l.b16 %v975
    %v1047 = vunpack.c.h.b16 %v975
    %v1048 = vunpack.c.l.b16 %v976
    %v1049 = vunpack.c.h.b16 %v976
    %v1050 = vunpack.c.l.b16 %v977
    %v1051 = vunpack.c.h.b16 %v977
    %v1052 = vunpack.c.l.b16 %v978
    %v1053 = vunpack.c.h.b16 %v978
    %v1054 = vunpack.c.l.b16 %v979
    %v1055 = vunpack.c.h.b16 %v979
    %v1056 = vunpack.c.l.b16 %v980
    %v1057 = vunpack.c.h.b16 %v980
    %v1058 = vunpack.c.l.b16 %v981
    %v1059 = vunpack.c.h.b16 %v981
    %v1060 = vunpack.c.l.b16 %v982
    %v1061 = vunpack.c.h.b16 %v982
    %v1062 = vunpack.c.l.b16 %v983
    %v1063 = vunpack.c.h.b16 %v983
    %v1064 = vunpack.c.l.b16 %v984
    %v1065 = vunpack.c.h.b16 %v984
    %v1066 = vunpack.c.l.b16 %v985
    %v1067 = vunpack.c.h.b16 %v985
    %v1068 = vunpack.c.l.b16 %v986
    %v1069 = vunpack.c.h.b16 %v986
    %v1070 = vunpack.c.l.b16 %v987
    %v1071 = vunpack.c.h.b16 %v987
    %v1072 = vunpack.c.l.b16 %v988
    %v1073 = vunpack.c.h.b16 %v988
    %v1074 = vunpack.c.l.b16 %v989
    %v1075 = vunpack.c.h.b16 %v989
    %v1076 = vunpack.c.l.b16 %v990
    %v1077 = vunpack.c.h.b16 %v990
    %v1078 = vunpack.c.l.b16 %v991
    %v1079 = vunpack.c.h.b16 %v991
    %v1080 = vunpack.c.l.b16 %v992
    %v1081 = vunpack.c.h.b16 %v992
    %v1082 = vunpack.c.l.b16 %v993
    %v1083 = vunpack.c.h.b16 %v993
    %v1084 = vunpack.c.l.b16 %v994
    %v1085 = vunpack.c.h.b16 %v994
    %v1086 = vunpack.c.l.b16 %v995
    %v1087 = vunpack.c.h.b16 %v995
    %v1088 = vunpack.c.l.b16 %v996
    %v1089 = vunpack.c.h.b16 %v996
    %v1090 = vunpack.c.l.b16 %v997
    %v1091 = vunpack.c.h.b16 %v997
    %v1092 = vunpack.c.l.b16 %v998
    %v1093 = vunpack.c.h.b16 %v998
    %v1094 = vunpack.c.l.b16 %v999
    %v1095 = vunpack.c.h.b16 %v999
    %v1096 = vpack.c.b16 %v1034, %v1032
    %v1097 = vpack.c.b16 %v1035, %v1033
    %v1098 = vpack.c.b16 %v1038, %v1036
    %v1099 = vpack.c.b16 %v1039, %v1037
    %v1100 = vpack.c.b16 %v1042, %v1040
    %v1101 = vpack.c.b16 %v1043, %v1041
    %v1102 = vpack.c.b16 %v1046, %v1044
    %v1103 = vpack.c.b16 %v1047, %v1045
    %v1104 = vpack.c.b16 %v1050, %v1048
    %v1105 = vpack.c.b16 %v1051, %v1049
    %v1106 = vpack.c.b16 %v1054, %v1052
    %v1107 = vpack.c.b16 %v1055, %v1053
    %v1108 = vpack.c.b16 %v1058, %v1056
    %v1109 = vpack.c.b16 %v1059, %v1057
    %v1110 = vpack.c.b16 %v1062, %v1060
    %v1111 = vpack.c.b16 %v1063, %v1061
    %v1112 = vpack.c.b16 %v1066, %v1064
    %v1113 = vpack.c.b16 %v1067, %v1065
    %v1114 = vpack.c.b16 %v1070, %v1068
    %v1115 = vpack.c.b16 %v1071, %v1069
    %v1116 = vpack.c.b16 %v1074, %v1072
    %v1117 = vpack.c.b16 %v1075, %v1073
    %v1118 = vpack.c.b16 %v1078, %v1076
    %v1119 = vpack.c.b16 %v1079, %v1077
    %v1120 = vpack.c.b16 %v1082, %v1080
    %v1121 = vpack.c.b16 %v1083, %v1081
    %v1122 = vpack.c.b16 %v1086, %v1084
    %v1123 = vpack.c.b16 %v1087, %v1085
    %v1124 = vpack.c.b16 %v1090, %v1088
    %v1125 = vpack.c.b16 %v1091, %v1089
    %v1126 = vpack.c.b16 %v1094, %v1092
    %v1127 = vpack.c.b16 %v1095, %v1093
    %1160 = vmatpush.bf16.msra.mxu0 %v1110
    %1161 = vmatpush.bf16.msra.mxu0 %v1108
    %1162 = vmatpush.bf16.msra.mxu0 %v1106
    %1163 = vmatpush.bf16.msra.mxu0 %v1104
    %1164 = vmatpush.bf16.msra.mxu0 %v1102
    %1165 = vmatpush.bf16.msra.mxu0 %v1100
    %1166 = vmatpush.bf16.msra.mxu0 %v1098
    %1167 = vmatpush.bf16.msra.mxu0 %v1096
    %1168 = vmatmul.bf16.gmra.mxu0 %v966
    %v1169 = vpop.f32.mrf.mxu0
    %v1170 = vadd.f32 0.0, %v1169
    %v1171 = vpop.f32.mrf.mxu0
    %1172 = vdwg.mxu0
    %1173 = vmatpush.bf16.msra.mxu0 %v1126
    %1174 = vmatpush.bf16.msra.mxu0 %v1124
    %1175 = vmatpush.bf16.msra.mxu0 %v1122
    %1176 = vmatpush.bf16.msra.mxu0 %v1120
    %1177 = vmatpush.bf16.msra.mxu0 %v1118
    %1178 = vmatpush.bf16.msra.mxu0 %v1116
    %1179 = vmatpush.bf16.msra.mxu0 %v1114
    %1180 = vmatpush.bf16.msra.mxu0 %v1112
    %1181 = vmatmul.bf16.gmra.mxu0 %v967
    %v1182 = vpop.f32.mrf.mxu0
    %v1183 = vadd.f32 %v1170, %v1182
    %v1184 = vpop.f32.mrf.mxu0
    %1185 = vdwg.mxu0
    %1186 = vmatpush.bf16.msra.mxu0 %v1111
    %1187 = vmatpush.bf16.msra.mxu0 %v1109
    %1188 = vmatpush.bf16.msra.mxu0 %v1107
    %1189 = vmatpush.bf16.msra.mxu0 %v1105
    %1190 = vmatpush.bf16.msra.mxu0 %v1103
    %1191 = vmatpush.bf16.msra.mxu0 %v1101
    %1192 = vmatpush.bf16.msra.mxu0 %v1099
    %1193 = vmatpush.bf16.msra.mxu0 %v1097
    %1194 = vmatmul.bf16.gmra.mxu0 %v966
    %v1195 = vpop.f32.mrf.mxu0
    %v1196 = vadd.f32 0.0, %v1195
    %v1197 = vpop.f32.mrf.mxu0
    %1198 = vdwg.mxu0
    %1199 = vmatpush.bf16.msra.mxu0 %v1127
    %1200 = vmatpush.bf16.msra.mxu0 %v1125
    %1201 = vmatpush.bf16.msra.mxu0 %v1123
    %1202 = vmatpush.bf16.msra.mxu0 %v1121
    %1203 = vmatpush.bf16.msra.mxu0 %v1119
    %1204 = vmatpush.bf16.msra.mxu0 %v1117
    %1205 = vmatpush.bf16.msra.mxu0 %v1115
    %1206 = vmatpush.bf16.msra.mxu0 %v1113
    %1207 = vmatmul.bf16.gmra.mxu0 %v967
    %v1208 = vpop.f32.mrf.mxu0
    %v1209 = vadd.f32 %v1196, %v1208
    %v1210 = vpop.f32.mrf.mxu0
    %1211 = vdwg.mxu0
    %v1212 = vmax.f32 %v1183, 0.0
    %v1213 = vmax.f32 %v1209, 0.0
    %v1214 = vpack.c.bf16 %v1212, %v1212
    %v1215 = vpack.c.bf16 %v1213, %v1213
    %v1216 = vld [vmem:[#allocation10] sm:$0xff]
    %v1217 = vld [vmem:[#allocation10 + $0x8] sm:$0xff]
    %v1218 = vld [vmem:[#allocation10 + $0x10] sm:$0xff]
    %v1219 = vld [vmem:[#allocation10 + $0x18] sm:$0xff]
    %v1220 = vld [vmem:[#allocation10 + $0x20] sm:$0xff]
    %v1221 = vld [vmem:[#allocation10 + $0x28] sm:$0xff]
    %v1222 = vld [vmem:[#allocation10 + $0x30] sm:$0xff]
    %v1223 = vld [vmem:[#allocation10 + $0x38] sm:$0xff]
    %v1224 = vld [vmem:[#allocation10 + $0x40] sm:$0xff]
    %v1225 = vld [vmem:[#allocation10 + $0x48] sm:$0xff]
    %v1226 = vld [vmem:[#allocation10 + $0x50] sm:$0xff]
    %v1227 = vld [vmem:[#allocation10 + $0x58] sm:$0xff]
    %v1228 = vld [vmem:[#allocation10 + $0x60] sm:$0xff]
    %v1229 = vld [vmem:[#allocation10 + $0x68] sm:$0xff]
    %v1230 = vld [vmem:[#allocation10 + $0x70] sm:$0xff]
    %v1231 = vld [vmem:[#allocation10 + $0x78] sm:$0xff]
    %v1232 = vld [vmem:[#allocation10 + $0x80] sm:$0xff]
    %v1233 = vld [vmem:[#allocation10 + $0x88] sm:$0xff]
    %v1234 = vld [vmem:[#allocation10 + $0x90] sm:$0xff]
    %v1235 = vld [vmem:[#allocation10 + $0x98] sm:$0xff]
    %v1236 = vld [vmem:[#allocation10 + $0xa0] sm:$0xff]
    %v1237 = vld [vmem:[#allocation10 + $0xa8] sm:$0xff]
    %v1238 = vld [vmem:[#allocation10 + $0xb0] sm:$0xff]
    %v1239 = vld [vmem:[#allocation10 + $0xb8] sm:$0xff]
    %v1240 = vld [vmem:[#allocation10 + $0xc0] sm:$0xff]
    %v1241 = vld [vmem:[#allocation10 + $0xc8] sm:$0xff]
    %v1242 = vld [vmem:[#allocation10 + $0xd0] sm:$0xff]
    %v1243 = vld [vmem:[#allocation10 + $0xd8] sm:$0xff]
    %v1244 = vld [vmem:[#allocation10 + $0xe0] sm:$0xff]
    %v1245 = vld [vmem:[#allocation10 + $0xe8] sm:$0xff]
    %v1246 = vld [vmem:[#allocation10 + $0xf0] sm:$0xff]
    %v1247 = vld [vmem:[#allocation10 + $0xf8] sm:$0xff]
    %v1280 = vunpack.c.l.b16 %v1216
    %v1281 = vunpack.c.h.b16 %v1216
    %v1282 = vunpack.c.l.b16 %v1217
    %v1283 = vunpack.c.h.b16 %v1217
    %v1284 = vunpack.c.l.b16 %v1218
    %v1285 = vunpack.c.h.b16 %v1218
    %v1286 = vunpack.c.l.b16 %v1219
    %v1287 = vunpack.c.h.b16 %v1219
    %v1288 = vunpack.c.l.b16 %v1220
    %v1289 = vunpack.c.h.b16 %v1220
    %v1290 = vunpack.c.l.b16 %v1221
    %v1291 = vunpack.c.h.b16 %v1221
    %v1292 = vunpack.c.l.b16 %v1222
    %v1293 = vunpack.c.h.b16 %v1222
    %v1294 = vunpack.c.l.b16 %v1223
    %v1295 = vunpack.c.h.b16 %v1223
    %v1296 = vunpack.c.l.b16 %v1224
    %v1297 = vunpack.c.h.b16 %v1224
    %v1298 = vunpack.c.l.b16 %v1225
    %v1299 = vunpack.c.h.b16 %v1225
    %v1300 = vunpack.c.l.b16 %v1226
    %v1301 = vunpack.c.h.b16 %v1226
    %v1302 = vunpack.c.l.b16 %v1227
    %v1303 = vunpack.c.h.b16 %v1227
    %v1304 = vunpack.c.l.b16 %v1228
    %v1305 = vunpack.c.h.b16 %v1228
    %v1306 = vunpack.c.l.b16 %v1229
    %v1307 = vunpack.c.h.b16 %v1229
    %v1308 = vunpack.c.l.b16 %v1230
    %v1309 = vunpack.c.h.b16 %v1230
    %v1310 = vunpack.c.l.b16 %v1231
    %v1311 = vunpack.c.h.b16 %v1231
    %v1312 = vunpack.c.l.b16 %v1232
    %v1313 = vunpack.c.h.b16 %v1232
    %v1314 = vunpack.c.l.b16 %v1233
    %v1315 = vunpack.c.h.b16 %v1233
    %v1316 = vunpack.c.l.b16 %v1234
    %v1317 = vunpack.c.h.b16 %v1234
    %v1318 = vunpack.c.l.b16 %v1235
    %v1319 = vunpack.c.h.b16 %v1235
    %v1320 = vunpack.c.l.b16 %v1236
    %v1321 = vunpack.c.h.b16 %v1236
    %v1322 = vunpack.c.l.b16 %v1237
    %v1323 = vunpack.c.h.b16 %v1237
    %v1324 = vunpack.c.l.b16 %v1238
    %v1325 = vunpack.c.h.b16 %v1238
    %v1326 = vunpack.c.l.b16 %v1239
    %v1327 = vunpack.c.h.b16 %v1239
    %v1328 = vunpack.c.l.b16 %v1240
    %v1329 = vunpack.c.h.b16 %v1240
    %v1330 = vunpack.c.l.b16 %v1241
    %v1331 = vunpack.c.h.b16 %v1241
    %v1332 = vunpack.c.l.b16 %v1242
    %v1333 = vunpack.c.h.b16 %v1242
    %v1334 = vunpack.c.l.b16 %v1243
    %v1335 = vunpack.c.h.b16 %v1243
    %v1336 = vunpack.c.l.b16 %v1244
    %v1337 = vunpack.c.h.b16 %v1244
    %v1338 = vunpack.c.l.b16 %v1245
    %v1339 = vunpack.c.h.b16 %v1245
    %v1340 = vunpack.c.l.b16 %v1246
    %v1341 = vunpack.c.h.b16 %v1246
    %v1342 = vunpack.c.l.b16 %v1247
    %v1343 = vunpack.c.h.b16 %v1247
    %v1344 = vpack.c.b16 %v1282, %v1280
    %v1345 = vpack.c.b16 %v1283, %v1281
    %v1346 = vpack.c.b16 %v1286, %v1284
    %v1347 = vpack.c.b16 %v1287, %v1285
    %v1348 = vpack.c.b16 %v1290, %v1288
    %v1349 = vpack.c.b16 %v1291, %v1289
    %v1350 = vpack.c.b16 %v1294, %v1292
    %v1351 = vpack.c.b16 %v1295, %v1293
    %v1352 = vpack.c.b16 %v1298, %v1296
    %v1353 = vpack.c.b16 %v1299, %v1297
    %v1354 = vpack.c.b16 %v1302, %v1300
    %v1355 = vpack.c.b16 %v1303, %v1301
    %v1356 = vpack.c.b16 %v1306, %v1304
    %v1357 = vpack.c.b16 %v1307, %v1305
    %v1358 = vpack.c.b16 %v1310, %v1308
    %v1359 = vpack.c.b16 %v1311, %v1309
    %v1360 = vpack.c.b16 %v1314, %v1312
    %v1361 = vpack.c.b16 %v1315, %v1313
    %v1362 = vpack.c.b16 %v1318, %v1316
    %v1363 = vpack.c.b16 %v1319, %v1317
    %v1364 = vpack.c.b16 %v1322, %v1320
    %v1365 = vpack.c.b16 %v1323, %v1321
    %v1366 = vpack.c.b16 %v1326, %v1324
    %v1367 = vpack.c.b16 %v1327, %v1325
    %v1368 = vpack.c.b16 %v1330, %v1328
    %v1369 = vpack.c.b16 %v1331, %v1329
    %v1370 = vpack.c.b16 %v1334, %v1332
    %v1371 = vpack.c.b16 %v1335, %v1333
    %v1372 = vpack.c.b16 %v1338, %v1336
    %v1373 = vpack.c.b16 %v1339, %v1337
    %v1374 = vpack.c.b16 %v1342, %v1340
    %v1375 = vpack.c.b16 %v1343, %v1341
    %1408 = vmatpush.bf16.msra.mxu0 %v1358
    %1409 = vmatpush.bf16.msra.mxu0 %v1356
    %1410 = vmatpush.bf16.msra.mxu0 %v1354
    %1411 = vmatpush.bf16.msra.mxu0 %v1352
    %1412 = vmatpush.bf16.msra.mxu0 %v1350
    %1413 = vmatpush.bf16.msra.mxu0 %v1348
    %1414 = vmatpush.bf16.msra.mxu0 %v1346
    %1415 = vmatpush.bf16.msra.mxu0 %v1344
    %1416 = vmatmul.bf16.gmra.mxu0 %v1214
    %v1417 = vpop.f32.mrf.mxu0
    %v1418 = vadd.f32 0.0, %v1417
    %v1419 = vpop.f32.mrf.mxu0
    %1420 = vdwg.mxu0
    %1421 = vmatpush.bf16.msra.mxu0 %v1374
    %1422 = vmatpush.bf16.msra.mxu0 %v1372
    %1423 = vmatpush.bf16.msra.mxu0 %v1370
    %1424 = vmatpush.bf16.msra.mxu0 %v1368
    %1425 = vmatpush.bf16.msra.mxu0 %v1366
    %1426 = vmatpush.bf16.msra.mxu0 %v1364
    %1427 = vmatpush.bf16.msra.mxu0 %v1362
    %1428 = vmatpush.bf16.msra.mxu0 %v1360
    %1429 = vmatmul.bf16.gmra.mxu0 %v1215
    %v1430 = vpop.f32.mrf.mxu0
    %v1431 = vadd.f32 %v1418, %v1430
    %v1432 = vpop.f32.mrf.mxu0
    %1433 = vdwg.mxu0
    %1434 = vmatpush.bf16.msra.mxu0 %v1359
    %1435 = vmatpush.bf16.msra.mxu0 %v1357
    %1436 = vmatpush.bf16.msra.mxu0 %v1355
    %1437 = vmatpush.bf16.msra.mxu0 %v1353
    %1438 = vmatpush.bf16.msra.mxu0 %v1351
    %1439 = vmatpush.bf16.msra.mxu0 %v1349
    %1440 = vmatpush.bf16.msra.mxu0 %v1347
    %1441 = vmatpush.bf16.msra.mxu0 %v1345
    %1442 = vmatmul.bf16.gmra.mxu0 %v1214
    %v1443 = vpop.f32.mrf.mxu0
    %v1444 = vadd.f32 0.0, %v1443
    %v1445 = vpop.f32.mrf.mxu0
    %1446 = vdwg.mxu0
    %1447 = vmatpush.bf16.msra.mxu0 %v1375
    %1448 = vmatpush.bf16.msra.mxu0 %v1373
    %1449 = vmatpush.bf16.msra.mxu0 %v1371
    %1450 = vmatpush.bf16.msra.mxu0 %v1369
    %1451 = vmatpush.bf16.msra.mxu0 %v1367
    %1452 = vmatpush.bf16.msra.mxu0 %v1365
    %1453 = vmatpush.bf16.msra.mxu0 %v1363
    %1454 = vmatpush.bf16.msra.mxu0 %v1361
    %1455 = vmatmul.bf16.gmra.mxu0 %v1215
    %v1456 = vpop.f32.mrf.mxu0
    %v1457 = vadd.f32 %v1444, %v1456
    %v1458 = vpop.f32.mrf.mxu0
    %1459 = vdwg.mxu0
    %v1460 = vmax.f32 %v1431, 0.0
    %v1461 = vmax.f32 %v1457, 0.0
    %v1462 = vpack.c.bf16 %v1460, %v1460
    %v1463 = vpack.c.bf16 %v1461, %v1461
    %v1464 = vld [vmem:[#allocation11] sm:$0xf]
    %v1465 = vld [vmem:[#allocation11 + $0x4] sm:$0xf]
    %v1466 = vld [vmem:[#allocation11 + $0x8] sm:$0xf]
    %v1467 = vld [vmem:[#allocation11 + $0xc] sm:$0xf]
    %v1468 = vld [vmem:[#allocation11 + $0x10] sm:$0xf]
    %v1469 = vld [vmem:[#allocation11 + $0x14] sm:$0xf]
    %v1470 = vld [vmem:[#allocation11 + $0x18] sm:$0xf]
    %v1471 = vld [vmem:[#allocation11 + $0x1c] sm:$0xf]
    %v1472 = vld [vmem:[#allocation11 + $0x20] sm:$0xf]
    %v1473 = vld [vmem:[#allocation11 + $0x24] sm:$0xf]
    %v1474 = vld [vmem:[#allocation11 + $0x28] sm:$0xf]
    %v1475 = vld [vmem:[#allocation11 + $0x2c] sm:$0xf]
    %v1476 = vld [vmem:[#allocation11 + $0x30] sm:$0xf]
    %v1477 = vld [vmem:[#allocation11 + $0x34] sm:$0xf]
    %v1478 = vld [vmem:[#allocation11 + $0x38] sm:$0xf]
    %v1479 = vld [vmem:[#allocation11 + $0x3c] sm:$0xf]
    %v1480 = vld [vmem:[#allocation11 + $0x40] sm:$0xf]
    %v1481 = vld [vmem:[#allocation11 + $0x44] sm:$0xf]
    %v1482 = vld [vmem:[#allocation11 + $0x48] sm:$0xf]
    %v1483 = vld [vmem:[#allocation11 + $0x4c] sm:$0xf]
    %v1484 = vld [vmem:[#allocation11 + $0x50] sm:$0xf]
    %v1485 = vld [vmem:[#allocation11 + $0x54] sm:$0xf]
    %v1486 = vld [vmem:[#allocation11 + $0x58] sm:$0xf]
    %v1487 = vld [vmem:[#allocation11 + $0x5c] sm:$0xf]
    %v1488 = vld [vmem:[#allocation11 + $0x60] sm:$0xf]
    %v1489 = vld [vmem:[#allocation11 + $0x64] sm:$0xf]
    %v1490 = vld [vmem:[#allocation11 + $0x68] sm:$0xf]
    %v1491 = vld [vmem:[#allocation11 + $0x6c] sm:$0xf]
    %v1492 = vld [vmem:[#allocation11 + $0x70] sm:$0xf]
    %v1493 = vld [vmem:[#allocation11 + $0x74] sm:$0xf]
    %v1494 = vld [vmem:[#allocation11 + $0x78] sm:$0xf]
    %v1495 = vld [vmem:[#allocation11 + $0x7c] sm:$0xf]
    %v1528 = vunpack.c.l.b16 %v1464
    %v1529 = vunpack.c.l.b16 %v1465
    %v1530 = vunpack.c.l.b16 %v1466
    %v1531 = vunpack.c.l.b16 %v1467
    %v1532 = vunpack.c.l.b16 %v1468
    %v1533 = vunpack.c.l.b16 %v1469
    %v1534 = vunpack.c.l.b16 %v1470
    %v1535 = vunpack.c.l.b16 %v1471
    %v1536 = vunpack.c.l.b16 %v1472
    %v1537 = vunpack.c.l.b16 %v1473
    %v1538 = vunpack.c.l.b16 %v1474
    %v1539 = vunpack.c.l.b16 %v1475
    %v1540 = vunpack.c.l.b16 %v1476
    %v1541 = vunpack.c.l.b16 %v1477
    %v1542 = vunpack.c.l.b16 %v1478
    %v1543 = vunpack.c.l.b16 %v1479
    %v1544 = vunpack.c.l.b16 %v1480
    %v1545 = vunpack.c.l.b16 %v1481
    %v1546 = vunpack.c.l.b16 %v1482
    %v1547 = vunpack.c.l.b16 %v1483
    %v1548 = vunpack.c.l.b16 %v1484
    %v1549 = vunpack.c.l.b16 %v1485
    %v1550 = vunpack.c.l.b16 %v1486
    %v1551 = vunpack.c.l.b16 %v1487
    %v1552 = vunpack.c.l.b16 %v1488
    %v1553 = vunpack.c.l.b16 %v1489
    %v1554 = vunpack.c.l.b16 %v1490
    %v1555 = vunpack.c.l.b16 %v1491
    %v1556 = vunpack.c.l.b16 %v1492
    %v1557 = vunpack.c.l.b16 %v1493
    %v1558 = vunpack.c.l.b16 %v1494
    %v1559 = vunpack.c.l.b16 %v1495
    %v1560 = vpack.c.b16 %v1529, %v1528
    %v1561 = vpack.c.b16 %v1531, %v1530
    %v1562 = vpack.c.b16 %v1533, %v1532
    %v1563 = vpack.c.b16 %v1535, %v1534
    %v1564 = vpack.c.b16 %v1537, %v1536
    %v1565 = vpack.c.b16 %v1539, %v1538
    %v1566 = vpack.c.b16 %v1541, %v1540
    %v1567 = vpack.c.b16 %v1543, %v1542
    %v1568 = vpack.c.b16 %v1545, %v1544
    %v1569 = vpack.c.b16 %v1547, %v1546
    %v1570 = vpack.c.b16 %v1549, %v1548
    %v1571 = vpack.c.b16 %v1551, %v1550
    %v1572 = vpack.c.b16 %v1553, %v1552
    %v1573 = vpack.c.b16 %v1555, %v1554
    %v1574 = vpack.c.b16 %v1557, %v1556
    %v1575 = vpack.c.b16 %v1559, %v1558
    %1592 = vmatpush.bf16.msra.mxu0 %v1567
    %1593 = vmatpush.bf16.msra.mxu0 %v1566
    %1594 = vmatpush.bf16.msra.mxu0 %v1565
    %1595 = vmatpush.bf16.msra.mxu0 %v1564
    %1596 = vmatpush.bf16.msra.mxu0 %v1563
    %1597 = vmatpush.bf16.msra.mxu0 %v1562
    %1598 = vmatpush.bf16.msra.mxu0 %v1561
    %1599 = vmatpush.bf16.msra.mxu0 %v1560
    %1600 = vmatmul.bf16.gmra.mxu0 %v1462
    %v1601 = vpop.f32.mrf.mxu0
    %v1602 = vadd.f32 0.0, %v1601
    %v1603 = vpop.f32.mrf.mxu0
    %1604 = vdwg.mxu0
    %1605 = vmatpush.bf16.msra.mxu0 %v1575
    %1606 = vmatpush.bf16.msra.mxu0 %v1574
    %1607 = vmatpush.bf16.msra.mxu0 %v1573
    %1608 = vmatpush.bf16.msra.mxu0 %v1572
    %1609 = vmatpush.bf16.msra.mxu0 %v1571
    %1610 = vmatpush.bf16.msra.mxu0 %v1570
    %1611 = vmatpush.bf16.msra.mxu0 %v1569
    %1612 = vmatpush.bf16.msra.mxu0 %v1568
    %1613 = vmatmul.bf16.gmra.mxu0 %v1463
    %v1614 = vpop.f32.mrf.mxu0
    %v1615 = vadd.f32 %v1602, %v1614
    %v1616 = vpop.f32.mrf.mxu0
    %1617 = vdwg.mxu0
    %v1618 = vmax.f32 %v1615, 0.0
    %v1619 = vpack.c.bf16 %v1618, %v1618
    %v1620 = vld [vmem:[#allocation13] sm:$0xf]
    %v1621 = vld [vmem:[#allocation13 + $0x4] sm:$0xf]
    %v1622 = vld [vmem:[#allocation13 + $0x8] sm:$0xf]
    %v1623 = vld [vmem:[#allocation13 + $0xc] sm:$0xf]
    %v1624 = vld [vmem:[#allocation13 + $0x10] sm:$0xf]
    %v1625 = vld [vmem:[#allocation13 + $0x14] sm:$0xf]
    %v1626 = vld [vmem:[#allocation13 + $0x18] sm:$0xf]
    %v1627 = vld [vmem:[#allocation13 + $0x1c] sm:$0xf]
    %v1628 = vld [vmem:[#allocation13 + $0x20] sm:$0xf]
    %v1629 = vld [vmem:[#allocation13 + $0x24] sm:$0xf]
    %v1630 = vld [vmem:[#allocation13 + $0x28] sm:$0xf]
    %v1631 = vld [vmem:[#allocation13 + $0x2c] sm:$0xf]
    %v1632 = vld [vmem:[#allocation13 + $0x30] sm:$0xf]
    %v1633 = vld [vmem:[#allocation13 + $0x34] sm:$0xf]
    %v1634 = vld [vmem:[#allocation13 + $0x38] sm:$0xf]
    %v1635 = vld [vmem:[#allocation13 + $0x3c] sm:$0xf]
    %v1652 = vunpack.c.l.b16 %v1620
    %v1653 = vunpack.c.l.b16 %v1621
    %v1654 = vunpack.c.l.b16 %v1622
    %v1655 = vunpack.c.l.b16 %v1623
    %v1656 = vunpack.c.l.b16 %v1624
    %v1657 = vunpack.c.l.b16 %v1625
    %v1658 = vunpack.c.l.b16 %v1626
    %v1659 = vunpack.c.l.b16 %v1627
    %v1660 = vunpack.c.l.b16 %v1628
    %v1661 = vunpack.c.l.b16 %v1629
    %v1662 = vunpack.c.l.b16 %v1630
    %v1663 = vunpack.c.l.b16 %v1631
    %v1664 = vunpack.c.l.b16 %v1632
    %v1665 = vunpack.c.l.b16 %v1633
    %v1666 = vunpack.c.l.b16 %v1634
    %v1667 = vunpack.c.l.b16 %v1635
    %v1668 = vpack.c.b16 %v1653, %v1652
    %v1669 = vpack.c.b16 %v1655, %v1654
    %v1670 = vpack.c.b16 %v1657, %v1656
    %v1671 = vpack.c.b16 %v1659, %v1658
    %v1672 = vpack.c.b16 %v1661, %v1660
    %v1673 = vpack.c.b16 %v1663, %v1662
    %v1674 = vpack.c.b16 %v1665, %v1664
    %v1675 = vpack.c.b16 %v1667, %v1666
    %1684 = vmatpush.bf16.msra.mxu0 %v1675
    %1685 = vmatpush.bf16.msra.mxu0 %v1674
    %1686 = vmatpush.bf16.msra.mxu0 %v1673
    %1687 = vmatpush.bf16.msra.mxu0 %v1672
    %1688 = vmatpush.bf16.msra.mxu0 %v1671
    %1689 = vmatpush.bf16.msra.mxu0 %v1670
    %1690 = vmatpush.bf16.msra.mxu0 %v1669
    %1691 = vmatpush.bf16.msra.mxu0 %v1668
    %1692 = vmatmul.bf16.gmra.mxu0 %v1619
    %v1693 = vpop.f32.mrf.mxu0
    %v1694 = vadd.f32 0.0, %v1693
    %v1695 = vpop.f32.mrf.mxu0
    %1696 = vdwg.mxu0
    %v1697 = vmax.f32 %v1694, 0.0
    %v1698 = vpack.c.bf16 %v1697, %v1697
    %v1699 = vld [vmem:[#allocation14] sm:$0xf]
    %v1700 = vld [vmem:[#allocation14 + $0x4] sm:$0xf]
    %v1701 = vld [vmem:[#allocation14 + $0x8] sm:$0xf]
    %v1702 = vld [vmem:[#allocation14 + $0xc] sm:$0xf]
    %v1703 = vld [vmem:[#allocation14 + $0x10] sm:$0xf]
    %v1704 = vld [vmem:[#allocation14 + $0x14] sm:$0xf]
    %v1705 = vld [vmem:[#allocation14 + $0x18] sm:$0xf]
    %v1706 = vld [vmem:[#allocation14 + $0x1c] sm:$0xf]
    %v1707 = vld [vmem:[#allocation14 + $0x20] sm:$0xf]
    %v1708 = vld [vmem:[#allocation14 + $0x24] sm:$0xf]
    %v1709 = vld [vmem:[#allocation14 + $0x28] sm:$0xf]
    %v1710 = vld [vmem:[#allocation14 + $0x2c] sm:$0xf]
    %v1711 = vld [vmem:[#allocation14 + $0x30] sm:$0xf]
    %v1712 = vld [vmem:[#allocation14 + $0x34] sm:$0xf]
    %v1713 = vld [vmem:[#allocation14 + $0x38] sm:$0xf]
    %v1714 = vld [vmem:[#allocation14 + $0x3c] sm:$0xf]
    %v1731 = vunpack.c.l.b16 %v1699
    %v1732 = vunpack.c.l.b16 %v1700
    %v1733 = vunpack.c.l.b16 %v1701
    %v1734 = vunpack.c.l.b16 %v1702
    %v1735 = vunpack.c.l.b16 %v1703
    %v1736 = vunpack.c.l.b16 %v1704
    %v1737 = vunpack.c.l.b16 %v1705
    %v1738 = vunpack.c.l.b16 %v1706
    %v1739 = vunpack.c.l.b16 %v1707
    %v1740 = vunpack.c.l.b16 %v1708
    %v1741 = vunpack.c.l.b16 %v1709
    %v1742 = vunpack.c.l.b16 %v1710
    %v1743 = vunpack.c.l.b16 %v1711
    %v1744 = vunpack.c.l.b16 %v1712
    %v1745 = vunpack.c.l.b16 %v1713
    %v1746 = vunpack.c.l.b16 %v1714
    %v1747 = vpack.c.b16 %v1732, %v1731
    %v1748 = vpack.c.b16 %v1734, %v1733
    %v1749 = vpack.c.b16 %v1736, %v1735
    %v1750 = vpack.c.b16 %v1738, %v1737
    %v1751 = vpack.c.b16 %v1740, %v1739
    %v1752 = vpack.c.b16 %v1742, %v1741
    %v1753 = vpack.c.b16 %v1744, %v1743
    %v1754 = vpack.c.b16 %v1746, %v1745
    %1763 = vmatpush.bf16.msra.mxu0 %v1754
    %1764 = vmatpush.bf16.msra.mxu0 %v1753
    %1765 = vmatpush.bf16.msra.mxu0 %v1752
    %1766 = vmatpush.bf16.msra.mxu0 %v1751
    %1767 = vmatpush.bf16.msra.mxu0 %v1750
    %1768 = vmatpush.bf16.msra.mxu0 %v1749
    %1769 = vmatpush.bf16.msra.mxu0 %v1748
    %1770 = vmatpush.bf16.msra.mxu0 %v1747
    %1771 = vmatmul.bf16.gmra.mxu0 %v1698
    %v1772 = vpop.f32.mrf.mxu0
    %v1773 = vadd.f32 0.0, %v1772
    %v1774 = vpop.f32.mrf.mxu0
    %1775 = vdwg.mxu0
    %v1776 = vmax.f32 %v1773, 0.0
    %v1777 = vpack.c.bf16 %v1776, %v1776
    %v1778 = vld [vmem:[#allocation16] sm:$0xf]
    %v1779 = vld [vmem:[#allocation16 + $0x4] sm:$0xf]
    %v1780 = vld [vmem:[#allocation16 + $0x8] sm:$0xf]
    %v1781 = vld [vmem:[#allocation16 + $0xc] sm:$0xf]
    %v1782 = vld [vmem:[#allocation16 + $0x10] sm:$0xf]
    %v1783 = vld [vmem:[#allocation16 + $0x14] sm:$0xf]
    %v1784 = vld [vmem:[#allocation16 + $0x18] sm:$0xf]
    %v1785 = vld [vmem:[#allocation16 + $0x1c] sm:$0xf]
    %v1786 = vld [vmem:[#allocation16 + $0x20] sm:$0xf]
    %v1787 = vld [vmem:[#allocation16 + $0x24] sm:$0xf]
    %v1788 = vld [vmem:[#allocation16 + $0x28] sm:$0xf]
    %v1789 = vld [vmem:[#allocation16 + $0x2c] sm:$0xf]
    %v1790 = vld [vmem:[#allocation16 + $0x30] sm:$0xf]
    %v1791 = vld [vmem:[#allocation16 + $0x34] sm:$0xf]
    %v1792 = vld [vmem:[#allocation16 + $0x38] sm:$0xf]
    %v1793 = vld [vmem:[#allocation16 + $0x3c] sm:$0xf]
    %v1810 = vunpack.c.l.b16 %v1778
    %v1811 = vunpack.c.l.b16 %v1779
    %v1812 = vunpack.c.l.b16 %v1780
    %v1813 = vunpack.c.l.b16 %v1781
    %v1814 = vunpack.c.l.b16 %v1782
    %v1815 = vunpack.c.l.b16 %v1783
    %v1816 = vunpack.c.l.b16 %v1784
    %v1817 = vunpack.c.l.b16 %v1785
    %v1818 = vunpack.c.l.b16 %v1786
    %v1819 = vunpack.c.l.b16 %v1787
    %v1820 = vunpack.c.l.b16 %v1788
    %v1821 = vunpack.c.l.b16 %v1789
    %v1822 = vunpack.c.l.b16 %v1790
    %v1823 = vunpack.c.l.b16 %v1791
    %v1824 = vunpack.c.l.b16 %v1792
    %v1825 = vunpack.c.l.b16 %v1793
    %v1826 = vpack.c.b16 %v1811, %v1810
    %v1827 = vpack.c.b16 %v1813, %v1812
    %v1828 = vpack.c.b16 %v1815, %v1814
    %v1829 = vpack.c.b16 %v1817, %v1816
    %v1830 = vpack.c.b16 %v1819, %v1818
    %v1831 = vpack.c.b16 %v1821, %v1820
    %v1832 = vpack.c.b16 %v1823, %v1822
    %v1833 = vpack.c.b16 %v1825, %v1824
    %1842 = vmatpush.bf16.msra.mxu0 %v1833
    %1843 = vmatpush.bf16.msra.mxu0 %v1832
    %1844 = vmatpush.bf16.msra.mxu0 %v1831
    %1845 = vmatpush.bf16.msra.mxu0 %v1830
    %1846 = vmatpush.bf16.msra.mxu0 %v1829
    %1847 = vmatpush.bf16.msra.mxu0 %v1828
    %1848 = vmatpush.bf16.msra.mxu0 %v1827
    %1849 = vmatpush.bf16.msra.mxu0 %v1826
    %1850 = vmatmul.bf16.gmra.mxu0 %v1777
    %v1851 = vpop.f32.mrf.mxu0
    %v1852 = vadd.f32 0.0, %v1851
    %v1853 = vpop.f32.mrf.mxu0
    %1854 = vdwg.mxu0
    %v1855 = vmax.f32 %v1852, 0.0
    %v1856 = vpack.c.bf16 %v1855, %v1855
    %v1857 = vld [vmem:[#allocation17] sm:$0xf]
    %v1858 = vld [vmem:[#allocation17 + $0x4] sm:$0xf]
    %v1859 = vld [vmem:[#allocation17 + $0x8] sm:$0xf]
    %v1860 = vld [vmem:[#allocation17 + $0xc] sm:$0xf]
    %v1861 = vld [vmem:[#allocation17 + $0x10] sm:$0xf]
    %v1862 = vld [vmem:[#allocation17 + $0x14] sm:$0xf]
    %v1863 = vld [vmem:[#allocation17 + $0x18] sm:$0xf]
    %v1864 = vld [vmem:[#allocation17 + $0x1c] sm:$0xf]
    %v1865 = vld [vmem:[#allocation17 + $0x20] sm:$0xf]
    %v1866 = vld [vmem:[#allocation17 + $0x24] sm:$0xf]
    %v1867 = vld [vmem:[#allocation17 + $0x28] sm:$0xf]
    %v1868 = vld [vmem:[#allocation17 + $0x2c] sm:$0xf]
    %v1869 = vld [vmem:[#allocation17 + $0x30] sm:$0xf]
    %v1870 = vld [vmem:[#allocation17 + $0x34] sm:$0xf]
    %v1871 = vld [vmem:[#allocation17 + $0x38] sm:$0xf]
    %v1872 = vld [vmem:[#allocation17 + $0x3c] sm:$0xf]
    %v1889 = vunpack.c.l.b16 %v1857
    %v1890 = vunpack.c.l.b16 %v1858
    %v1891 = vunpack.c.l.b16 %v1859
    %v1892 = vunpack.c.l.b16 %v1860
    %v1893 = vunpack.c.l.b16 %v1861
    %v1894 = vunpack.c.l.b16 %v1862
    %v1895 = vunpack.c.l.b16 %v1863
    %v1896 = vunpack.c.l.b16 %v1864
    %v1897 = vunpack.c.l.b16 %v1865
    %v1898 = vunpack.c.l.b16 %v1866
    %v1899 = vunpack.c.l.b16 %v1867
    %v1900 = vunpack.c.l.b16 %v1868
    %v1901 = vunpack.c.l.b16 %v1869
    %v1902 = vunpack.c.l.b16 %v1870
    %v1903 = vunpack.c.l.b16 %v1871
    %v1904 = vunpack.c.l.b16 %v1872
    %v1905 = vpack.c.b16 %v1890, %v1889
    %v1906 = vpack.c.b16 %v1892, %v1891
    %v1907 = vpack.c.b16 %v1894, %v1893
    %v1908 = vpack.c.b16 %v1896, %v1895
    %v1909 = vpack.c.b16 %v1898, %v1897
    %v1910 = vpack.c.b16 %v1900, %v1899
    %v1911 = vpack.c.b16 %v1902, %v1901
    %v1912 = vpack.c.b16 %v1904, %v1903
    %1921 = vmatpush.bf16.msra.mxu0 %v1912
    %1922 = vmatpush.bf16.msra.mxu0 %v1911
    %1923 = vmatpush.bf16.msra.mxu0 %v1910
    %1924 = vmatpush.bf16.msra.mxu0 %v1909
    %1925 = vmatpush.bf16.msra.mxu0 %v1908
    %1926 = vmatpush.bf16.msra.mxu0 %v1907
    %1927 = vmatpush.bf16.msra.mxu0 %v1906
    %1928 = vmatpush.bf16.msra.mxu0 %v1905
    %1929 = vmatmul.bf16.gmra.mxu0 %v1856
    %v1930 = vpop.f32.mrf.mxu0
    %v1931 = vadd.f32 0.0, %v1930
    %v1932 = vpop.f32.mrf.mxu0
    %1933 = vdwg.mxu0
    %v1934 = vmax.f32 %v1931, 0.0
    %v1935 = vpack.c.bf16 %v1934, %v1934
    %v1936 = vld [vmem:[#allocation19] sm:$0xf]
    %v1937 = vld [vmem:[#allocation19 + $0x4] sm:$0xf]
    %v1938 = vld [vmem:[#allocation19 + $0x8] sm:$0xf]
    %v1939 = vld [vmem:[#allocation19 + $0xc] sm:$0xf]
    %v1940 = vld [vmem:[#allocation19 + $0x10] sm:$0xf]
    %v1941 = vld [vmem:[#allocation19 + $0x14] sm:$0xf]
    %v1942 = vld [vmem:[#allocation19 + $0x18] sm:$0xf]
    %v1943 = vld [vmem:[#allocation19 + $0x1c] sm:$0xf]
    %v1944 = vld [vmem:[#allocation19 + $0x20] sm:$0xf]
    %v1945 = vld [vmem:[#allocation19 + $0x24] sm:$0xf]
    %v1946 = vld [vmem:[#allocation19 + $0x28] sm:$0xf]
    %v1947 = vld [vmem:[#allocation19 + $0x2c] sm:$0xf]
    %v1948 = vld [vmem:[#allocation19 + $0x30] sm:$0xf]
    %v1949 = vld [vmem:[#allocation19 + $0x34] sm:$0xf]
    %v1950 = vld [vmem:[#allocation19 + $0x38] sm:$0xf]
    %v1951 = vld [vmem:[#allocation19 + $0x3c] sm:$0xf]
    %v1968 = vunpack.c.l.b16 %v1936
    %v1969 = vunpack.c.l.b16 %v1937
    %v1970 = vunpack.c.l.b16 %v1938
    %v1971 = vunpack.c.l.b16 %v1939
    %v1972 = vunpack.c.l.b16 %v1940
    %v1973 = vunpack.c.l.b16 %v1941
    %v1974 = vunpack.c.l.b16 %v1942
    %v1975 = vunpack.c.l.b16 %v1943
    %v1976 = vunpack.c.l.b16 %v1944
    %v1977 = vunpack.c.l.b16 %v1945
    %v1978 = vunpack.c.l.b16 %v1946
    %v1979 = vunpack.c.l.b16 %v1947
    %v1980 = vunpack.c.l.b16 %v1948
    %v1981 = vunpack.c.l.b16 %v1949
    %v1982 = vunpack.c.l.b16 %v1950
    %v1983 = vunpack.c.l.b16 %v1951
    %v1984 = vpack.c.b16 %v1969, %v1968
    %v1985 = vpack.c.b16 %v1971, %v1970
    %v1986 = vpack.c.b16 %v1973, %v1972
    %v1987 = vpack.c.b16 %v1975, %v1974
    %v1988 = vpack.c.b16 %v1977, %v1976
    %v1989 = vpack.c.b16 %v1979, %v1978
    %v1990 = vpack.c.b16 %v1981, %v1980
    %v1991 = vpack.c.b16 %v1983, %v1982
    %2000 = vmatpush.bf16.msra.mxu0 %v1991
    %2001 = vmatpush.bf16.msra.mxu0 %v1990
    %2002 = vmatpush.bf16.msra.mxu0 %v1989
    %2003 = vmatpush.bf16.msra.mxu0 %v1988
    %2004 = vmatpush.bf16.msra.mxu0 %v1987
    %2005 = vmatpush.bf16.msra.mxu0 %v1986
    %2006 = vmatpush.bf16.msra.mxu0 %v1985
    %2007 = vmatpush.bf16.msra.mxu0 %v1984
    %2008 = vmatmul.bf16.gmra.mxu0 %v1935
    %v2009 = vpop.f32.mrf.mxu0
    %v2010 = vadd.f32 0.0, %v2009
    %v2011 = vpop.f32.mrf.mxu0
    %2012 = vdwg.mxu0
    %2013 = vst [vmem:[#allocation20] sm:$0xff] %v2010
    // Predicated region
    $region90: #{tpu_custom_call.1} parent=1 // pred_check
      _
    $region91: #{tpu_custom_call.1} parent=1 // pred_check_branch
      %2015 = sbr.rel (0) target = $region93
    $region92: #{tpu_custom_call.1} parent=1 // pred_region
      %2017 = vsyncadd [#allocation4], 0
      %s2019 = sshll.u32 [#allocation20], 4
      %s2020 = int_to_ptr.vmem [resolvable:$true] %s2019
      %s2021 = sshll.u32 %s11, 4
      %s2022 = int_to_ptr.hbm [resolvable:$true] %s2021
      %2024 = dma.vmem_to_hbm [thread:$0]  %s2020, 128, %s2022, [#allocation4]
    $region93: #{tpu_custom_call.1} parent=1 // pred_fallthru
      _
    // Predicated region
    $region94: #{tpu_custom_call.1} parent=1 // pred_check
      _
    $region95: #{tpu_custom_call.1} parent=1 // pred_check_branch
      %2026 = sbr.rel (0) target = $region97
    $region96: #{tpu_custom_call.1} parent=1 // pred_region
      %2028 = dma.done [#allocation4], 128
    $region97: #{tpu_custom_call.1} parent=1 // pred_fallthru
      _
    %2029 = vsyncpa [#allocation3], 1
    %2030 = vsyncpa [#allocation6], 1
    %2031 = vsyncpa [#allocation9], 1
    %2032 = vsyncpa [#allocation12], 1
    %2033 = vsyncpa [#allocation15], 1
    %2034 = vsyncpa [#allocation18], 1
    %2035 = vsyncpa [#allocation4], 1

// kernel: tpu_custom_call.1
$region0: #{tpu_custom_call.1}
  #allocation0 [shape = 'u32[]', space=smem, size = 0x4, offset = 0x4, fixed_abs, tag = 'smem constant byte address 0x4 - core index']
  #allocation1 [shape = 'u32[72,128]{1,0:T(1,128)}', space=vmem, size = 0x9000, scoped, tag = 'internal scratch']
  %s0 = inlined_call_operand.hbm [shape: f32[8,1024], index: 0, kind: input, shape index: {}]
  %s1 = inlined_call_operand.hbm [shape: bf16[1024,128], index: 1, kind: input, shape index: {}]
  %s2 = inlined_call_operand.hbm [shape: bf16[128,256], index: 2, kind: input, shape index: {}]
  %s3 = inlined_call_operand.hbm [shape: bf16[256,256], index: 3, kind: input, shape index: {}]
  %s4 = inlined_call_operand.hbm [shape: bf16[256,256], index: 4, kind: input, shape index: {}]
  %s5 = inlined_call_operand.hbm [shape: bf16[256,128], index: 5, kind: input, shape index: {}]
  %s6 = inlined_call_operand.hbm [shape: bf16[128,128], index: 6, kind: input, shape index: {}]
  %s7 = inlined_call_operand.hbm [shape: bf16[128,128], index: 7, kind: input, shape index: {}]
  %s8 = inlined_call_operand.hbm [shape: bf16[128,128], index: 8, kind: input, shape index: {}]
  %s9 = inlined_call_operand.hbm [shape: bf16[128,128], index: 9, kind: input, shape index: {}]
  %s10 = inlined_call_operand.hbm [shape: bf16[128,128], index: 10, kind: input, shape index: {}]
  %s11 = inlined_call_operand.hbm [shape: f32[8,128], index: 11, kind: output, shape index: {}]
  %s12 = sld [smem:[#allocation0]]
  $region98: #{tpu_custom_call.1} parent=0
    _
  %s14 = ssub.s32 1, %s12
  %s15 = scalar_select 0, %s14, %s12
  $region1: #{tpu_custom_call.1} parent=0
    #allocation2 [shape = 'u8[32768]{0}', space=vmem, size = 0x8000, scoped, tag = 'input window, operand 0, single buffered']
    #allocation3 [shape = 's32[1]{0}', space=sflag, size = 0x4, scoped, tag = 'scoped memory for tpu_custom_call.1']
    #allocation4 [shape = 's32[1]{0}', space=sflag, size = 0x4, scoped, tag = 'scoped memory for tpu_custom_call.1']
    #allocation5 [shape = 'u8[262144]{0}', space=vmem, size = 0x40000, scoped, tag = 'input window, operand 1, single buffered']
    #allocation6 [shape = 's32[1]{0}', space=sflag, size = 0x4, scoped, tag = 'scoped memory for tpu_custom_call.1']
    #allocation7 [shape = 'u8[65536]{0}', space=vmem, size = 0x10000, scoped, tag = 'input window, operand 2, single buffered']
    #allocation8 [shape = 'u8[131072]{0}', space=vmem, size = 0x20000, scoped, tag = 'input window, operand 3, single buffered']
    #allocation9 [shape = 's32[1]{0}', space=sflag, size = 0x4, scoped, tag = 'scoped memory for tpu_custom_call.1']
    #allocation10 [shape = 'u8[131072]{0}', space=vmem, size = 0x20000, scoped, tag = 'input window, operand 4, single buffered']
    #allocation11 [shape = 'u8[65536]{0}', space=vmem, size = 0x10000, scoped, tag = 'input window, operand 5, single buffered']
    #allocation12 [shape = 's32[1]{0}', space=sflag, size = 0x4, scoped, tag = 'scoped memory for tpu_custom_call.1']
    #allocation13 [shape = 'u8[32768]{0}', space=vmem, size = 0x8000, scoped, tag = 'input window, operand 6, single buffered']
    #allocation14 [shape = 'u8[32768]{0}', space=vmem, size = 0x8000, scoped, tag = 'input window, operand 7, single buffered']
    #allocation15 [shape = 's32[1]{0}', space=sflag, size = 0x4, scoped, tag = 'scoped memory for tpu_custom_call.1']
    #allocation16 [shape = 'u8[32768]{0}', space=vmem, size = 0x8000, scoped, tag = 'input window, operand 8, single buffered']
    #allocation17 [shape = 'u8[32768]{0}', space=vmem, size = 0x8000, scoped, tag = 'input window, operand 9, single buffered']
    #allocation18 [shape = 's32[1]{0}', space=sflag, size = 0x4, scoped, tag = 'scoped memory for tpu_custom_call.1']
    #allocation19 [shape = 'u8[32768]{0}', space=vmem, size = 0x8000, scoped, tag = 'input window, operand 10, single buffered']
    #allocation20 [shape = 'u8[4096]{0}', space=vmem, size = 0x1000, scoped, tag = 'output window, operand 0, single buffered']
    %16 = vsyncpa [#allocation3], 0
    %17 = vsyncpa [#allocation6], 0
    %18 = vsyncpa [#allocation9], 0
    %19 = vsyncpa [#allocation12], 0
    %20 = vsyncpa [#allocation15], 0
    %21 = vsyncpa [#allocation18], 0
    %22 = vsyncpa [#allocation4], 0
    // Predicated region
    $region2: #{tpu_custom_call.1} parent=1 // pred_check
      _
    $region3: #{tpu_custom_call.1} parent=1 // pred_check_branch
      %24 = sbr.rel (0) target = $region5
    $region4: #{tpu_custom_call.1} parent=1 // pred_region
      %26 = vsyncadd [#allocation3], 0
      %s28 = sshll.u32 %s0, 4
      %s29 = int_to_ptr.hbm [resolvable:$true] %s28
      %s30 = sshll.u32 [#allocation2], 4
      %s31 = int_to_ptr.vmem [resolvable:$true] %s30
      %33 = dma.hbm_to_vmem [thread:$0]  %s29, 1024, %s31, [#allocation3]
    $region5: #{tpu_custom_call.1} parent=1 // pred_fallthru
      _
    // Predicated region
    $region6: #{tpu_custom_call.1} parent=1 // pred_check
      _
    $region7: #{tpu_custom_call.1} parent=1 // pred_check_branch
      %35 = sbr.rel (0) target = $region9
    $region8: #{tpu_custom_call.1} parent=1 // pred_region
      %37 = vsyncadd [#allocation6], 0
      %s38 = sshll.u32 %s1, 4
      %s39 = int_to_ptr.hbm [resolvable:$true] %s38
      %s40 = sshll.u32 [#allocation5], 4
      %s41 = int_to_ptr.vmem [resolvable:$true] %s40
      %46 = dma.hbm_to_vmem [thread:$0]  %s39, 8192, %s41, [#allocation6], 64, 64, 4
    $region9: #{tpu_custom_call.1} parent=1 // pred_fallthru
      _
    // Predicated region
    $region10: #{tpu_custom_call.1} parent=1 // pred_check
      _
    $region11: #{tpu_custom_call.1} parent=1 // pred_check_branch
      %48 = sbr.rel (0) target = $region13
    $region12: #{tpu_custom_call.1} parent=1 // pred_region
      %50 = vsyncadd [#allocation6], 0
      %s51 = sshll.u32 %s2, 4
      %s52 = int_to_ptr.hbm [resolvable:$true] %s51
      %s53 = sshll.u32 [#allocation7], 4
      %s54 = int_to_ptr.vmem [resolvable:$true] %s53
      %59 = dma.hbm_to_vmem [thread:$0]  %s52, 2048, %s54, [#allocation6], 128, 128, 8
    $region13: #{tpu_custom_call.1} parent=1 // pred_fallthru
      _
    // Predicated region
    $region14: #{tpu_custom_call.1} parent=1 // pred_check
      _
    $region15: #{tpu_custom_call.1} parent=1 // pred_check_branch
      %61 = sbr.rel (0) target = $region17
    $region16: #{tpu_custom_call.1} parent=1 // pred_region
      %63 = vsyncadd [#allocation9], 0
      %s64 = sshll.u32 %s3, 4
      %s65 = int_to_ptr.hbm [resolvable:$true] %s64
      %s66 = sshll.u32 [#allocation8], 4
      %s67 = int_to_ptr.vmem [resolvable:$true] %s66
      %72 = dma.hbm_to_vmem [thread:$0]  %s65, 4096, %s67, [#allocation9], 128, 128, 8
    $region17: #{tpu_custom_call.1} parent=1 // pred_fallthru
      _
    // Predicated region
    $region18: #{tpu_custom_call.1} parent=1 // pred_check
      _
    $region19: #{tpu_custom_call.1} parent=1 // pred_check_branch
      %74 = sbr.rel (0) target = $region21
    $region20: #{tpu_custom_call.1} parent=1 // pred_region
      %76 = vsyncadd [#allocation9], 0
      %s77 = sshll.u32 %s4, 4
      %s78 = int_to_ptr.hbm [resolvable:$true] %s77
      %s79 = sshll.u32 [#allocation10], 4
      %s80 = int_to_ptr.vmem [resolvable:$true] %s79
      %85 = dma.hbm_to_vmem [thread:$0]  %s78, 4096, %s80, [#allocation9], 128, 128, 8
    $region21: #{tpu_custom_call.1} parent=1 // pred_fallthru
      _
    // Predicated region
    $region22: #{tpu_custom_call.1} parent=1 // pred_check
      _
    $region23: #{tpu_custom_call.1} parent=1 // pred_check_branch
      %87 = sbr.rel (0) target = $region25
    $region24: #{tpu_custom_call.1} parent=1 // pred_region
      %89 = vsyncadd [#allocation12], 0
      %s90 = sshll.u32 %s5, 4
      %s91 = int_to_ptr.hbm [resolvable:$true] %s90
      %s92 = sshll.u32 [#allocation11], 4
      %s93 = int_to_ptr.vmem [resolvable:$true] %s92
      %98 = dma.hbm_to_vmem [thread:$0]  %s91, 2048, %s93, [#allocation12], 64, 64, 4
    $region25: #{tpu_custom_call.1} parent=1 // pred_fallthru
      _
    // Predicated region
    $region26: #{tpu_custom_call.1} parent=1 // pred_check
      _
    $region27: #{tpu_custom_call.1} parent=1 // pred_check_branch
      %100 = sbr.rel (0) target = $region29
    $region28: #{tpu_custom_call.1} parent=1 // pred_region
      %102 = vsyncadd [#allocation12], 0
      %s103 = sshll.u32 %s6, 4
      %s104 = int_to_ptr.hbm [resolvable:$true] %s103
      %s105 = sshll.u32 [#allocation13], 4
      %s106 = int_to_ptr.vmem [resolvable:$true] %s105
      %111 = dma.hbm_to_vmem [thread:$0]  %s104, 1024, %s106, [#allocation12], 64, 64, 4
    $region29: #{tpu_custom_call.1} parent=1 // pred_fallthru
      _
    // Predicated region
    $region30: #{tpu_custom_call.1} parent=1 // pred_check
      _
    $region31: #{tpu_custom_call.1} parent=1 // pred_check_branch
      %113 = sbr.rel (0) target = $region33
    $region32: #{tpu_custom_call.1} parent=1 // pred_region
      %115 = vsyncadd [#allocation15], 0
      %s116 = sshll.u32 %s7, 4
      %s117 = int_to_ptr.hbm [resolvable:$true] %s116
      %s118 = sshll.u32 [#allocation14], 4
      %s119 = int_to_ptr.vmem [resolvable:$true] %s118
      %124 = dma.hbm_to_vmem [thread:$0]  %s117, 1024, %s119, [#allocation15], 64, 64, 4
    $region33: #{tpu_custom_call.1} parent=1 // pred_fallthru
      _
    // Predicated region
    $region34: #{tpu_custom_call.1} parent=1 // pred_check
      _
    $region35: #{tpu_custom_call.1} parent=1 // pred_check_branch
      %126 = sbr.rel (0) target = $region37
    $region36: #{tpu_custom_call.1} parent=1 // pred_region
      %128 = vsyncadd [#allocation15], 0
      %s129 = sshll.u32 %s8, 4
      %s130 = int_to_ptr.hbm [resolvable:$true] %s129
      %s131 = sshll.u32 [#allocation16], 4
      %s132 = int_to_ptr.vmem [resolvable:$true] %s131
      %137 = dma.hbm_to_vmem [thread:$0]  %s130, 1024, %s132, [#allocation15], 64, 64, 4
    $region37: #{tpu_custom_call.1} parent=1 // pred_fallthru
      _
    // Predicated region
    $region38: #{tpu_custom_call.1} parent=1 // pred_check
      _
    $region39: #{tpu_custom_call.1} parent=1 // pred_check_branch
      %139 = sbr.rel (0) target = $region41
    $region40: #{tpu_custom_call.1} parent=1 // pred_region
      %141 = vsyncadd [#allocation18], 0
      %s142 = sshll.u32 %s9, 4
      %s143 = int_to_ptr.hbm [resolvable:$true] %s142
      %s144 = sshll.u32 [#allocation17], 4
      %s145 = int_to_ptr.vmem [resolvable:$true] %s144
      %150 = dma.hbm_to_vmem [thread:$0]  %s143, 1024, %s145, [#allocation18], 64, 64, 4
    $region41: #{tpu_custom_call.1} parent=1 // pred_fallthru
      _
    // Predicated region
    $region42: #{tpu_custom_call.1} parent=1 // pred_check
      _
    $region43: #{tpu_custom_call.1} parent=1 // pred_check_branch
      %152 = sbr.rel (0) target = $region45
    $region44: #{tpu_custom_call.1} parent=1 // pred_region
      %154 = vsyncadd [#allocation18], 0
      %s155 = sshll.u32 %s10, 4
      %s156 = int_to_ptr.hbm [resolvable:$true] %s155
      %s157 = sshll.u32 [#allocation19], 4
      %s158 = int_to_ptr.vmem [resolvable:$true] %s157
      %163 = dma.hbm_to_vmem [thread:$0]  %s156, 1024, %s158, [#allocation18], 64, 64, 4
    $region45: #{tpu_custom_call.1} parent=1 // pred_fallthru
      _
    // Predicated region
    $region46: #{tpu_custom_call.1} parent=1 // pred_check
      _
    $region47: #{tpu_custom_call.1} parent=1 // pred_check_branch
      %165 = sbr.rel (0) target = $region49
    $region48: #{tpu_custom_call.1} parent=1 // pred_region
      %167 = dma.done [#allocation3], 1024
    $region49: #{tpu_custom_call.1} parent=1 // pred_fallthru
      _
    // Predicated region
    $region50: #{tpu_custom_call.1} parent=1 // pred_check
      _
    $region51: #{tpu_custom_call.1} parent=1 // pred_check_branch
      %169 = sbr.rel (0) target = $region53
    $region52: #{tpu_custom_call.1} parent=1 // pred_region
      %171 = dma.done [#allocation6], 8192
    $region53: #{tpu_custom_call.1} parent=1 // pred_fallthru
      _
    // Predicated region
    $region54: #{tpu_custom_call.1} parent=1 // pred_check
      _
    $region55: #{tpu_custom_call.1} parent=1 // pred_check_branch
      %173 = sbr.rel (0) target = $region57
    $region56: #{tpu_custom_call.1} parent=1 // pred_region
      %175 = dma.done [#allocation6], 2048
    $region57: #{tpu_custom_call.1} parent=1 // pred_fallthru
      _
    // Predicated region
    $region58: #{tpu_custom_call.1} parent=1 // pred_check
      _
    $region59: #{tpu_custom_call.1} parent=1 // pred_check_branch
      %177 = sbr.rel (0) target = $region61
    $region60: #{tpu_custom_call.1} parent=1 // pred_region
      %179 = dma.done [#allocation9], 4096
    $region61: #{tpu_custom_call.1} parent=1 // pred_fallthru
      _
    // Predicated region
    $region62: #{tpu_custom_call.1} parent=1 // pred_check
      _
    $region63: #{tpu_custom_call.1} parent=1 // pred_check_branch
      %181 = sbr.rel (0) target = $region65
    $region64: #{tpu_custom_call.1} parent=1 // pred_region
      %183 = dma.done [#allocation9], 4096
    $region65: #{tpu_custom_call.1} parent=1 // pred_fallthru
      _
    // Predicated region
    $region66: #{tpu_custom_call.1} parent=1 // pred_check
      _
    $region67: #{tpu_custom_call.1} parent=1 // pred_check_branch
      %185 = sbr.rel (0) target = $region69
    $region68: #{tpu_custom_call.1} parent=1 // pred_region
      %187 = dma.done [#allocation12], 2048
    $region69: #{tpu_custom_call.1} parent=1 // pred_fallthru
      _
    // Predicated region
    $region70: #{tpu_custom_call.1} parent=1 // pred_check
      _
    $region71: #{tpu_custom_call.1} parent=1 // pred_check_branch
      %189 = sbr.rel (0) target = $region73
    $region72: #{tpu_custom_call.1} parent=1 // pred_region
      %191 = dma.done [#allocation12], 1024
    $region73: #{tpu_custom_call.1} parent=1 // pred_fallthru
      _
    // Predicated region
    $region74: #{tpu_custom_call.1} parent=1 // pred_check
      _
    $region75: #{tpu_custom_call.1} parent=1 // pred_check_branch
      %193 = sbr.rel (0) target = $region77
    $region76: #{tpu_custom_call.1} parent=1 // pred_region
      %195 = dma.done [#allocation15], 1024
    $region77: #{tpu_custom_call.1} parent=1 // pred_fallthru
      _
    // Predicated region
    $region78: #{tpu_custom_call.1} parent=1 // pred_check
      _
    $region79: #{tpu_custom_call.1} parent=1 // pred_check_branch
      %197 = sbr.rel (0) target = $region81
    $region80: #{tpu_custom_call.1} parent=1 // pred_region
      %199 = dma.done [#allocation15], 1024
    $region81: #{tpu_custom_call.1} parent=1 // pred_fallthru
      _
    // Predicated region
    $region82: #{tpu_custom_call.1} parent=1 // pred_check
      _
    $region83: #{tpu_custom_call.1} parent=1 // pred_check_branch
      %201 = sbr.rel (0) target = $region85
    $region84: #{tpu_custom_call.1} parent=1 // pred_region
      %203 = dma.done [#allocation18], 1024
    $region85: #{tpu_custom_call.1} parent=1 // pred_fallthru
      _
    // Predicated region
    $region86: #{tpu_custom_call.1} parent=1 // pred_check
      _
    $region87: #{tpu_custom_call.1} parent=1 // pred_check_branch
      %205 = sbr.rel (0) target = $region89
    $region88: #{tpu_custom_call.1} parent=1 // pred_region
      %207 = dma.done [#allocation18], 1024
    $region89: #{tpu_custom_call.1} parent=1 // pred_fallthru
      _
    %v208 = vld [vmem:[#allocation2] sm:$0xff]
    %v209 = vld [vmem:[#allocation2 + $0x8] sm:$0xff]
    %v210 = vld [vmem:[#allocation2 + $0x10] sm:$0xff]
    %v211 = vld [vmem:[#allocation2 + $0x18] sm:$0xff]
    %v212 = vld [vmem:[#allocation2 + $0x20] sm:$0xff]
    %v213 = vld [vmem:[#allocation2 + $0x28] sm:$0xff]
    %v214 = vld [vmem:[#allocation2 + $0x30] sm:$0xff]
    %v215 = vld [vmem:[#allocation2 + $0x38] sm:$0xff]
    %v216 = vpack.c.bf16 %v208, %v208
    %v217 = vpack.c.bf16 %v209, %v209
    %v218 = vpack.c.bf16 %v210, %v210
    %v219 = vpack.c.bf16 %v211, %v211
    %v220 = vpack.c.bf16 %v212, %v212
    %v221 = vpack.c.bf16 %v213, %v213
    %v222 = vpack.c.bf16 %v214, %v214
    %v223 = vpack.c.bf16 %v215, %v215
    %v224 = vld [vmem:[#allocation5] sm:$0xf]
    %v225 = vld [vmem:[#allocation5 + $0x4] sm:$0xf]
    %v226 = vld [vmem:[#allocation5 + $0x8] sm:$0xf]
    %v227 = vld [vmem:[#allocation5 + $0xc] sm:$0xf]
    %v228 = vld [vmem:[#allocation5 + $0x10] sm:$0xf]
    %v229 = vld [vmem:[#allocation5 + $0x14] sm:$0xf]
    %v230 = vld [vmem:[#allocation5 + $0x18] sm:$0xf]
    %v231 = vld [vmem:[#allocation5 + $0x1c] sm:$0xf]
    %v232 = vld [vmem:[#allocation5 + $0x20] sm:$0xf]
    %v233 = vld [vmem:[#allocation5 + $0x24] sm:$0xf]
    %v234 = vld [vmem:[#allocation5 + $0x28] sm:$0xf]
    %v235 = vld [vmem:[#allocation5 + $0x2c] sm:$0xf]
    %v236 = vld [vmem:[#allocation5 + $0x30] sm:$0xf]
    %v237 = vld [vmem:[#allocation5 + $0x34] sm:$0xf]
    %v238 = vld [vmem:[#allocation5 + $0x38] sm:$0xf]
    %v239 = vld [vmem:[#allocation5 + $0x3c] sm:$0xf]
    %v240 = vld [vmem:[#allocation5 + $0x40] sm:$0xf]
    %v241 = vld [vmem:[#allocation5 + $0x44] sm:$0xf]
    %v242 = vld [vmem:[#allocation5 + $0x48] sm:$0xf]
    %v243 = vld [vmem:[#allocation5 + $0x4c] sm:$0xf]
    %v244 = vld [vmem:[#allocation5 + $0x50] sm:$0xf]
    %v245 = vld [vmem:[#allocation5 + $0x54] sm:$0xf]
    %v246 = vld [vmem:[#allocation5 + $0x58] sm:$0xf]
    %v247 = vld [vmem:[#allocation5 + $0x5c] sm:$0xf]
    %v248 = vld [vmem:[#allocation5 + $0x60] sm:$0xf]
    %v249 = vld [vmem:[#allocation5 + $0x64] sm:$0xf]
    %v250 = vld [vmem:[#allocation5 + $0x68] sm:$0xf]
    %v251 = vld [vmem:[#allocation5 + $0x6c] sm:$0xf]
    %v252 = vld [vmem:[#allocation5 + $0x70] sm:$0xf]
    %v253 = vld [vmem:[#allocation5 + $0x74] sm:$0xf]
    %v254 = vld [vmem:[#allocation5 + $0x78] sm:$0xf]
    %v255 = vld [vmem:[#allocation5 + $0x7c] sm:$0xf]
    %v256 = vld [vmem:[#allocation5 + $0x80] sm:$0xf]
    %v257 = vld [vmem:[#allocation5 + $0x84] sm:$0xf]
    %v258 = vld [vmem:[#allocation5 + $0x88] sm:$0xf]
    %v259 = vld [vmem:[#allocation5 + $0x8c] sm:$0xf]
    %v260 = vld [vmem:[#allocation5 + $0x90] sm:$0xf]
    %v261 = vld [vmem:[#allocation5 + $0x94] sm:$0xf]
    %v262 = vld [vmem:[#allocation5 + $0x98] sm:$0xf]
    %v263 = vld [vmem:[#allocation5 + $0x9c] sm:$0xf]
    %v264 = vld [vmem:[#allocation5 + $0xa0] sm:$0xf]
    %v265 = vld [vmem:[#allocation5 + $0xa4] sm:$0xf]
    %v266 = vld [vmem:[#allocation5 + $0xa8] sm:$0xf]
    %v267 = vld [vmem:[#allocation5 + $0xac] sm:$0xf]
    %v268 = vld [vmem:[#allocation5 + $0xb0] sm:$0xf]
    %v269 = vld [vmem:[#allocation5 + $0xb4] sm:$0xf]
    %v270 = vld [vmem:[#allocation5 + $0xb8] sm:$0xf]
    %v271 = vld [vmem:[#allocation5 + $0xbc] sm:$0xf]
    %v272 = vld [vmem:[#allocation5 + $0xc0] sm:$0xf]
    %v273 = vld [vmem:[#allocation5 + $0xc4] sm:$0xf]
    %v274 = vld [vmem:[#allocation5 + $0xc8] sm:$0xf]
    %v275 = vld [vmem:[#allocation5 + $0xcc] sm:$0xf]
    %v276 = vld [vmem:[#allocation5 + $0xd0] sm:$0xf]
    %v277 = vld [vmem:[#allocation5 + $0xd4] sm:$0xf]
    %v278 = vld [vmem:[#allocation5 + $0xd8] sm:$0xf]
    %v279 = vld [vmem:[#allocation5 + $0xdc] sm:$0xf]
    %v280 = vld [vmem:[#allocation5 + $0xe0] sm:$0xf]
    %v281 = vld [vmem:[#allocation5 + $0xe4] sm:$0xf]
    %v282 = vld [vmem:[#allocation5 + $0xe8] sm:$0xf]
    %v283 = vld [vmem:[#allocation5 + $0xec] sm:$0xf]
    %v284 = vld [vmem:[#allocation5 + $0xf0] sm:$0xf]
    %v285 = vld [vmem:[#allocation5 + $0xf4] sm:$0xf]
    %v286 = vld [vmem:[#allocation5 + $0xf8] sm:$0xf]
    %v287 = vld [vmem:[#allocation5 + $0xfc] sm:$0xf]
    %v288 = vld [vmem:[#allocation5 + $0x100] sm:$0xf]
    %v289 = vld [vmem:[#allocation5 + $0x104] sm:$0xf]
    %v290 = vld [vmem:[#allocation5 + $0x108] sm:$0xf]
    %v291 = vld [vmem:[#allocation5 + $0x10c] sm:$0xf]
    %v292 = vld [vmem:[#allocation5 + $0x110] sm:$0xf]
    %v293 = vld [vmem:[#allocation5 + $0x114] sm:$0xf]
    %v294 = vld [vmem:[#allocation5 + $0x118] sm:$0xf]
    %v295 = vld [vmem:[#allocation5 + $0x11c] sm:$0xf]
    %v296 = vld [vmem:[#allocation5 + $0x120] sm:$0xf]
    %v297 = vld [vmem:[#allocation5 + $0x124] sm:$0xf]
    %v298 = vld [vmem:[#allocation5 + $0x128] sm:$0xf]
    %v299 = vld [vmem:[#allocation5 + $0x12c] sm:$0xf]
    %v300 = vld [vmem:[#allocation5 + $0x130] sm:$0xf]
    %v301 = vld [vmem:[#allocation5 + $0x134] sm:$0xf]
    %v302 = vld [vmem:[#allocation5 + $0x138] sm:$0xf]
    %v303 = vld [vmem:[#allocation5 + $0x13c] sm:$0xf]
    %v304 = vld [vmem:[#allocation5 + $0x140] sm:$0xf]
    %v305 = vld [vmem:[#allocation5 + $0x144] sm:$0xf]
    %v306 = vld [vmem:[#allocation5 + $0x148] sm:$0xf]
    %v307 = vld [vmem:[#allocation5 + $0x14c] sm:$0xf]
    %v308 = vld [vmem:[#allocation5 + $0x150] sm:$0xf]
    %v309 = vld [vmem:[#allocation5 + $0x154] sm:$0xf]
    %v310 = vld [vmem:[#allocation5 + $0x158] sm:$0xf]
    %v311 = vld [vmem:[#allocation5 + $0x15c] sm:$0xf]
    %v312 = vld [vmem:[#allocation5 + $0x160] sm:$0xf]
    %v313 = vld [vmem:[#allocation5 + $0x164] sm:$0xf]
    %v314 = vld [vmem:[#allocation5 + $0x168] sm:$0xf]
    %v315 = vld [vmem:[#allocation5 + $0x16c] sm:$0xf]
    %v316 = vld [vmem:[#allocation5 + $0x170] sm:$0xf]
    %v317 = vld [vmem:[#allocation5 + $0x174] sm:$0xf]
    %v318 = vld [vmem:[#allocation5 + $0x178] sm:$0xf]
    %v319 = vld [vmem:[#allocation5 + $0x17c] sm:$0xf]
    %v320 = vld [vmem:[#allocation5 + $0x180] sm:$0xf]
    %v321 = vld [vmem:[#allocation5 + $0x184] sm:$0xf]
    %v322 = vld [vmem:[#allocation5 + $0x188] sm:$0xf]
    %v323 = vld [vmem:[#allocation5 + $0x18c] sm:$0xf]
    %v324 = vld [vmem:[#allocation5 + $0x190] sm:$0xf]
    %v325 = vld [vmem:[#allocation5 + $0x194] sm:$0xf]
    %v326 = vld [vmem:[#allocation5 + $0x198] sm:$0xf]
    %v327 = vld [vmem:[#allocation5 + $0x19c] sm:$0xf]
    %v328 = vld [vmem:[#allocation5 + $0x1a0] sm:$0xf]
    %v329 = vld [vmem:[#allocation5 + $0x1a4] sm:$0xf]
    %v330 = vld [vmem:[#allocation5 + $0x1a8] sm:$0xf]
    %v331 = vld [vmem:[#allocation5 + $0x1ac] sm:$0xf]
    %v332 = vld [vmem:[#allocation5 + $0x1b0] sm:$0xf]
    %v333 = vld [vmem:[#allocation5 + $0x1b4] sm:$0xf]
    %v334 = vld [vmem:[#allocation5 + $0x1b8] sm:$0xf]
    %v335 = vld [vmem:[#allocation5 + $0x1bc] sm:$0xf]
    %v336 = vld [vmem:[#allocation5 + $0x1c0] sm:$0xf]
    %v337 = vld [vmem:[#allocation5 + $0x1c4] sm:$0xf]
    %v338 = vld [vmem:[#allocation5 + $0x1c8] sm:$0xf]
    %v339 = vld [vmem:[#allocation5 + $0x1cc] sm:$0xf]
    %v340 = vld [vmem:[#allocation5 + $0x1d0] sm:$0xf]
    %v341 = vld [vmem:[#allocation5 + $0x1d4] sm:$0xf]
    %v342 = vld [vmem:[#allocation5 + $0x1d8] sm:$0xf]
    %v343 = vld [vmem:[#allocation5 + $0x1dc] sm:$0xf]
    %v344 = vld [vmem:[#allocation5 + $0x1e0] sm:$0xf]
    %v345 = vld [vmem:[#allocation5 + $0x1e4] sm:$0xf]
    %v346 = vld [vmem:[#allocation5 + $0x1e8] sm:$0xf]
    %v347 = vld [vmem:[#allocation5 + $0x1ec] sm:$0xf]
    %v348 = vld [vmem:[#allocation5 + $0x1f0] sm:$0xf]
    %v349 = vld [vmem:[#allocation5 + $0x1f4] sm:$0xf]
    %v350 = vld [vmem:[#allocation5 + $0x1f8] sm:$0xf]
    %v351 = vld [vmem:[#allocation5 + $0x1fc] sm:$0xf]
    %v480 = vunpack.c.l.b16 %v224
    %v481 = vunpack.c.l.b16 %v225
    %v482 = vunpack.c.l.b16 %v226
    %v483 = vunpack.c.l.b16 %v227
    %v484 = vunpack.c.l.b16 %v228
    %v485 = vunpack.c.l.b16 %v229
    %v486 = vunpack.c.l.b16 %v230
    %v487 = vunpack.c.l.b16 %v231
    %v488 = vunpack.c.l.b16 %v232
    %v489 = vunpack.c.l.b16 %v233
    %v490 = vunpack.c.l.b16 %v234
    %v491 = vunpack.c.l.b16 %v235
    %v492 = vunpack.c.l.b16 %v236
    %v493 = vunpack.c.l.b16 %v237
    %v494 = vunpack.c.l.b16 %v238
    %v495 = vunpack.c.l.b16 %v239
    %v496 = vunpack.c.l.b16 %v240
    %v497 = vunpack.c.l.b16 %v241
    %v498 = vunpack.c.l.b16 %v242
    %v499 = vunpack.c.l.b16 %v243
    %v500 = vunpack.c.l.b16 %v244
    %v501 = vunpack.c.l.b16 %v245
    %v502 = vunpack.c.l.b16 %v246
    %v503 = vunpack.c.l.b16 %v247
    %v504 = vunpack.c.l.b16 %v248
    %v505 = vunpack.c.l.b16 %v249
    %v506 = vunpack.c.l.b16 %v250
    %v507 = vunpack.c.l.b16 %v251
    %v508 = vunpack.c.l.b16 %v252
    %v509 = vunpack.c.l.b16 %v253
    %v510 = vunpack.c.l.b16 %v254
    %v511 = vunpack.c.l.b16 %v255
    %v512 = vunpack.c.l.b16 %v256
    %v513 = vunpack.c.l.b16 %v257
    %v514 = vunpack.c.l.b16 %v258
    %v515 = vunpack.c.l.b16 %v259
    %v516 = vunpack.c.l.b16 %v260
    %v517 = vunpack.c.l.b16 %v261
    %v518 = vunpack.c.l.b16 %v262
    %v519 = vunpack.c.l.b16 %v263
    %v520 = vunpack.c.l.b16 %v264
    %v521 = vunpack.c.l.b16 %v265
    %v522 = vunpack.c.l.b16 %v266
    %v523 = vunpack.c.l.b16 %v267
    %v524 = vunpack.c.l.b16 %v268
    %v525 = vunpack.c.l.b16 %v269
    %v526 = vunpack.c.l.b16 %v270
    %v527 = vunpack.c.l.b16 %v271
    %v528 = vunpack.c.l.b16 %v272
    %v529 = vunpack.c.l.b16 %v273
    %v530 = vunpack.c.l.b16 %v274
    %v531 = vunpack.c.l.b16 %v275
    %v532 = vunpack.c.l.b16 %v276
    %v533 = vunpack.c.l.b16 %v277
    %v534 = vunpack.c.l.b16 %v278
    %v535 = vunpack.c.l.b16 %v279
    %v536 = vunpack.c.l.b16 %v280
    %v537 = vunpack.c.l.b16 %v281
    %v538 = vunpack.c.l.b16 %v282
    %v539 = vunpack.c.l.b16 %v283
    %v540 = vunpack.c.l.b16 %v284
    %v541 = vunpack.c.l.b16 %v285
    %v542 = vunpack.c.l.b16 %v286
    %v543 = vunpack.c.l.b16 %v287
    %v544 = vunpack.c.l.b16 %v288
    %v545 = vunpack.c.l.b16 %v289
    %v546 = vunpack.c.l.b16 %v290
    %v547 = vunpack.c.l.b16 %v291
    %v548 = vunpack.c.l.b16 %v292
    %v549 = vunpack.c.l.b16 %v293
    %v550 = vunpack.c.l.b16 %v294
    %v551 = vunpack.c.l.b16 %v295
    %v552 = vunpack.c.l.b16 %v296
    %v553 = vunpack.c.l.b16 %v297
    %v554 = vunpack.c.l.b16 %v298
    %v555 = vunpack.c.l.b16 %v299
    %v556 = vunpack.c.l.b16 %v300
    %v557 = vunpack.c.l.b16 %v301
    %v558 = vunpack.c.l.b16 %v302
    %v559 = vunpack.c.l.b16 %v303
    %v560 = vunpack.c.l.b16 %v304
    %v561 = vunpack.c.l.b16 %v305
    %v562 = vunpack.c.l.b16 %v306
    %v563 = vunpack.c.l.b16 %v307
    %v564 = vunpack.c.l.b16 %v308
    %v565 = vunpack.c.l.b16 %v309
    %v566 = vunpack.c.l.b16 %v310
    %v567 = vunpack.c.l.b16 %v311
    %v568 = vunpack.c.l.b16 %v312
    %v569 = vunpack.c.l.b16 %v313
    %v570 = vunpack.c.l.b16 %v314
    %v571 = vunpack.c.l.b16 %v315
    %v572 = vunpack.c.l.b16 %v316
    %v573 = vunpack.c.l.b16 %v317
    %v574 = vunpack.c.l.b16 %v318
    %v575 = vunpack.c.l.b16 %v319
    %v576 = vunpack.c.l.b16 %v320
    %v577 = vunpack.c.l.b16 %v321
    %v578 = vunpack.c.l.b16 %v322
    %v579 = vunpack.c.l.b16 %v323
    %v580 = vunpack.c.l.b16 %v324
    %v581 = vunpack.c.l.b16 %v325
    %v582 = vunpack.c.l.b16 %v326
    %v583 = vunpack.c.l.b16 %v327
    %v584 = vunpack.c.l.b16 %v328
    %v585 = vunpack.c.l.b16 %v329
    %v586 = vunpack.c.l.b16 %v330
    %v587 = vunpack.c.l.b16 %v331
    %v588 = vunpack.c.l.b16 %v332
    %v589 = vunpack.c.l.b16 %v333
    %v590 = vunpack.c.l.b16 %v334
    %v591 = vunpack.c.l.b16 %v335
    %v592 = vunpack.c.l.b16 %v336
    %v593 = vunpack.c.l.b16 %v337
    %v594 = vunpack.c.l.b16 %v338
    %v595 = vunpack.c.l.b16 %v339
    %v596 = vunpack.c.l.b16 %v340
    %v597 = vunpack.c.l.b16 %v341
    %v598 = vunpack.c.l.b16 %v342
    %v599 = vunpack.c.l.b16 %v343
    %v600 = vunpack.c.l.b16 %v344
    %v601 = vunpack.c.l.b16 %v345
    %v602 = vunpack.c.l.b16 %v346
    %v603 = vunpack.c.l.b16 %v347
    %v604 = vunpack.c.l.b16 %v348
    %v605 = vunpack.c.l.b16 %v349
    %v606 = vunpack.c.l.b16 %v350
    %v607 = vunpack.c.l.b16 %v351
    %v608 = vpack.c.b16 %v481, %v480
    %v609 = vpack.c.b16 %v483, %v482
    %v610 = vpack.c.b16 %v485, %v484
    %v611 = vpack.c.b16 %v487, %v486
    %v612 = vpack.c.b16 %v489, %v488
    %v613 = vpack.c.b16 %v491, %v490
    %v614 = vpack.c.b16 %v493, %v492
    %v615 = vpack.c.b16 %v495, %v494
    %v616 = vpack.c.b16 %v497, %v496
    %v617 = vpack.c.b16 %v499, %v498
    %v618 = vpack.c.b16 %v501, %v500
    %v619 = vpack.c.b16 %v503, %v502
    %v620 = vpack.c.b16 %v505, %v504
    %v621 = vpack.c.b16 %v507, %v506
    %v622 = vpack.c.b16 %v509, %v508
    %v623 = vpack.c.b16 %v511, %v510
    %v624 = vpack.c.b16 %v513, %v512
    %v625 = vpack.c.b16 %v515, %v514
    %v626 = vpack.c.b16 %v517, %v516
    %v627 = vpack.c.b16 %v519, %v518
    %v628 = vpack.c.b16 %v521, %v520
    %v629 = vpack.c.b16 %v523, %v522
    %v630 = vpack.c.b16 %v525, %v524
    %v631 = vpack.c.b16 %v527, %v526
    %v632 = vpack.c.b16 %v529, %v528
    %v633 = vpack.c.b16 %v531, %v530
    %v634 = vpack.c.b16 %v533, %v532
    %v635 = vpack.c.b16 %v535, %v534
    %v636 = vpack.c.b16 %v537, %v536
    %v637 = vpack.c.b16 %v539, %v538
    %v638 = vpack.c.b16 %v541, %v540
    %v639 = vpack.c.b16 %v543, %v542
    %v640 = vpack.c.b16 %v545, %v544
    %v641 = vpack.c.b16 %v547, %v546
    %v642 = vpack.c.b16 %v549, %v548
    %v643 = vpack.c.b16 %v551, %v550
    %v644 = vpack.c.b16 %v553, %v552
    %v645 = vpack.c.b16 %v555, %v554
    %v646 = vpack.c.b16 %v557, %v556
    %v647 = vpack.c.b16 %v559, %v558
    %v648 = vpack.c.b16 %v561, %v560
    %v649 = vpack.c.b16 %v563, %v562
    %v650 = vpack.c.b16 %v565, %v564
    %v651 = vpack.c.b16 %v567, %v566
    %v652 = vpack.c.b16 %v569, %v568
    %v653 = vpack.c.b16 %v571, %v570
    %v654 = vpack.c.b16 %v573, %v572
    %v655 = vpack.c.b16 %v575, %v574
    %v656 = vpack.c.b16 %v577, %v576
    %v657 = vpack.c.b16 %v579, %v578
    %v658 = vpack.c.b16 %v581, %v580
    %v659 = vpack.c.b16 %v583, %v582
    %v660 = vpack.c.b16 %v585, %v584
    %v661 = vpack.c.b16 %v587, %v586
    %v662 = vpack.c.b16 %v589, %v588
    %v663 = vpack.c.b16 %v591, %v590
    %v664 = vpack.c.b16 %v593, %v592
    %v665 = vpack.c.b16 %v595, %v594
    %v666 = vpack.c.b16 %v597, %v596
    %v667 = vpack.c.b16 %v599, %v598
    %v668 = vpack.c.b16 %v601, %v600
    %v669 = vpack.c.b16 %v603, %v602
    %v670 = vpack.c.b16 %v605, %v604
    %v671 = vpack.c.b16 %v607, %v606
    %736 = vmatpush.bf16.msra.mxu0 %v615
    %737 = vmatpush.bf16.msra.mxu0 %v614
    %738 = vmatpush.bf16.msra.mxu0 %v613
    %739 = vmatpush.bf16.msra.mxu0 %v612
    %740 = vmatpush.bf16.msra.mxu0 %v611
    %741 = vmatpush.bf16.msra.mxu0 %v610
    %742 = vmatpush.bf16.msra.mxu0 %v609
    %743 = vmatpush.bf16.msra.mxu0 %v608
    %744 = vmatmul.bf16.gmra.mxu0 %v216
    %v745 = vpop.f32.mrf.mxu0
    %v746 = vadd.f32 0.0, %v745
    %v747 = vpop.f32.mrf.mxu0
    %748 = vdwg.mxu0
    %749 = vmatpush.bf16.msra.mxu0 %v623
    %750 = vmatpush.bf16.msra.mxu0 %v622
    %751 = vmatpush.bf16.msra.mxu0 %v621
    %752 = vmatpush.bf16.msra.mxu0 %v620
    %753 = vmatpush.bf16.msra.mxu0 %v619
    %754 = vmatpush.bf16.msra.mxu0 %v618
    %755 = vmatpush.bf16.msra.mxu0 %v617
    %756 = vmatpush.bf16.msra.mxu0 %v616
    %757 = vmatmul.bf16.gmra.mxu0 %v217
    %v758 = vpop.f32.mrf.mxu0
    %v759 = vadd.f32 %v746, %v758
    %v760 = vpop.f32.mrf.mxu0
    %761 = vdwg.mxu0
    %762 = vmatpush.bf16.msra.mxu0 %v631
    %763 = vmatpush.bf16.msra.mxu0 %v630
    %764 = vmatpush.bf16.msra.mxu0 %v629
    %765 = vmatpush.bf16.msra.mxu0 %v628
    %766 = vmatpush.bf16.msra.mxu0 %v627
    %767 = vmatpush.bf16.msra.mxu0 %v626
    %768 = vmatpush.bf16.msra.mxu0 %v625
    %769 = vmatpush.bf16.msra.mxu0 %v624
    %770 = vmatmul.bf16.gmra.mxu0 %v218
    %v771 = vpop.f32.mrf.mxu0
    %v772 = vadd.f32 %v759, %v771
    %v773 = vpop.f32.mrf.mxu0
    %774 = vdwg.mxu0
    %775 = vmatpush.bf16.msra.mxu0 %v639
    %776 = vmatpush.bf16.msra.mxu0 %v638
    %777 = vmatpush.bf16.msra.mxu0 %v637
    %778 = vmatpush.bf16.msra.mxu0 %v636
    %779 = vmatpush.bf16.msra.mxu0 %v635
    %780 = vmatpush.bf16.msra.mxu0 %v634
    %781 = vmatpush.bf16.msra.mxu0 %v633
    %782 = vmatpush.bf16.msra.mxu0 %v632
    %783 = vmatmul.bf16.gmra.mxu0 %v219
    %v784 = vpop.f32.mrf.mxu0
    %v785 = vadd.f32 %v772, %v784
    %v786 = vpop.f32.mrf.mxu0
    %787 = vdwg.mxu0
    %788 = vmatpush.bf16.msra.mxu0 %v647
    %789 = vmatpush.bf16.msra.mxu0 %v646
    %790 = vmatpush.bf16.msra.mxu0 %v645
    %791 = vmatpush.bf16.msra.mxu0 %v644
    %792 = vmatpush.bf16.msra.mxu0 %v643
    %793 = vmatpush.bf16.msra.mxu0 %v642
    %794 = vmatpush.bf16.msra.mxu0 %v641
    %795 = vmatpush.bf16.msra.mxu0 %v640
    %796 = vmatmul.bf16.gmra.mxu0 %v220
    %v797 = vpop.f32.mrf.mxu0
    %v798 = vadd.f32 %v785, %v797
    %v799 = vpop.f32.mrf.mxu0
    %800 = vdwg.mxu0
    %801 = vmatpush.bf16.msra.mxu0 %v655
    %802 = vmatpush.bf16.msra.mxu0 %v654
    %803 = vmatpush.bf16.msra.mxu0 %v653
    %804 = vmatpush.bf16.msra.mxu0 %v652
    %805 = vmatpush.bf16.msra.mxu0 %v651
    %806 = vmatpush.bf16.msra.mxu0 %v650
    %807 = vmatpush.bf16.msra.mxu0 %v649
    %808 = vmatpush.bf16.msra.mxu0 %v648
    %809 = vmatmul.bf16.gmra.mxu0 %v221
    %v810 = vpop.f32.mrf.mxu0
    %v811 = vadd.f32 %v798, %v810
    %v812 = vpop.f32.mrf.mxu0
    %813 = vdwg.mxu0
    %814 = vmatpush.bf16.msra.mxu0 %v663
    %815 = vmatpush.bf16.msra.mxu0 %v662
    %816 = vmatpush.bf16.msra.mxu0 %v661
    %817 = vmatpush.bf16.msra.mxu0 %v660
    %818 = vmatpush.bf16.msra.mxu0 %v659
    %819 = vmatpush.bf16.msra.mxu0 %v658
    %820 = vmatpush.bf16.msra.mxu0 %v657
    %821 = vmatpush.bf16.msra.mxu0 %v656
    %822 = vmatmul.bf16.gmra.mxu0 %v222
    %v823 = vpop.f32.mrf.mxu0
    %v824 = vadd.f32 %v811, %v823
    %v825 = vpop.f32.mrf.mxu0
    %826 = vdwg.mxu0
    %827 = vmatpush.bf16.msra.mxu0 %v671
    %828 = vmatpush.bf16.msra.mxu0 %v670
    %829 = vmatpush.bf16.msra.mxu0 %v669
    %830 = vmatpush.bf16.msra.mxu0 %v668
    %831 = vmatpush.bf16.msra.mxu0 %v667
    %832 = vmatpush.bf16.msra.mxu0 %v666
    %833 = vmatpush.bf16.msra.mxu0 %v665
    %834 = vmatpush.bf16.msra.mxu0 %v664
    %835 = vmatmul.bf16.gmra.mxu0 %v223
    %v836 = vpop.f32.mrf.mxu0
    %v837 = vadd.f32 %v824, %v836
    %v838 = vpop.f32.mrf.mxu0
    %839 = vdwg.mxu0
    %v840 = vmax.f32 %v837, 0.0
    %v841 = vpack.c.bf16 %v840, %v840
    %v842 = vld [vmem:[#allocation7] sm:$0xff]
    %v843 = vld [vmem:[#allocation7 + $0x8] sm:$0xff]
    %v844 = vld [vmem:[#allocation7 + $0x10] sm:$0xff]
    %v845 = vld [vmem:[#allocation7 + $0x18] sm:$0xff]
    %v846 = vld [vmem:[#allocation7 + $0x20] sm:$0xff]
    %v847 = vld [vmem:[#allocation7 + $0x28] sm:$0xff]
    %v848 = vld [vmem:[#allocation7 + $0x30] sm:$0xff]
    %v849 = vld [vmem:[#allocation7 + $0x38] sm:$0xff]
    %v850 = vld [vmem:[#allocation7 + $0x40] sm:$0xff]
    %v851 = vld [vmem:[#allocation7 + $0x48] sm:$0xff]
    %v852 = vld [vmem:[#allocation7 + $0x50] sm:$0xff]
    %v853 = vld [vmem:[#allocation7 + $0x58] sm:$0xff]
    %v854 = vld [vmem:[#allocation7 + $0x60] sm:$0xff]
    %v855 = vld [vmem:[#allocation7 + $0x68] sm:$0xff]
    %v856 = vld [vmem:[#allocation7 + $0x70] sm:$0xff]
    %v857 = vld [vmem:[#allocation7 + $0x78] sm:$0xff]
    %v874 = vunpack.c.l.b16 %v842
    %v875 = vunpack.c.h.b16 %v842
    %v876 = vunpack.c.l.b16 %v843
    %v877 = vunpack.c.h.b16 %v843
    %v878 = vunpack.c.l.b16 %v844
    %v879 = vunpack.c.h.b16 %v844
    %v880 = vunpack.c.l.b16 %v845
    %v881 = vunpack.c.h.b16 %v845
    %v882 = vunpack.c.l.b16 %v846
    %v883 = vunpack.c.h.b16 %v846
    %v884 = vunpack.c.l.b16 %v847
    %v885 = vunpack.c.h.b16 %v847
    %v886 = vunpack.c.l.b16 %v848
    %v887 = vunpack.c.h.b16 %v848
    %v888 = vunpack.c.l.b16 %v849
    %v889 = vunpack.c.h.b16 %v849
    %v890 = vunpack.c.l.b16 %v850
    %v891 = vunpack.c.h.b16 %v850
    %v892 = vunpack.c.l.b16 %v851
    %v893 = vunpack.c.h.b16 %v851
    %v894 = vunpack.c.l.b16 %v852
    %v895 = vunpack.c.h.b16 %v852
    %v896 = vunpack.c.l.b16 %v853
    %v897 = vunpack.c.h.b16 %v853
    %v898 = vunpack.c.l.b16 %v854
    %v899 = vunpack.c.h.b16 %v854
    %v900 = vunpack.c.l.b16 %v855
    %v901 = vunpack.c.h.b16 %v855
    %v902 = vunpack.c.l.b16 %v856
    %v903 = vunpack.c.h.b16 %v856
    %v904 = vunpack.c.l.b16 %v857
    %v905 = vunpack.c.h.b16 %v857
    %v906 = vpack.c.b16 %v876, %v874
    %v907 = vpack.c.b16 %v877, %v875
    %v908 = vpack.c.b16 %v880, %v878
    %v909 = vpack.c.b16 %v881, %v879
    %v910 = vpack.c.b16 %v884, %v882
    %v911 = vpack.c.b16 %v885, %v883
    %v912 = vpack.c.b16 %v888, %v886
    %v913 = vpack.c.b16 %v889, %v887
    %v914 = vpack.c.b16 %v892, %v890
    %v915 = vpack.c.b16 %v893, %v891
    %v916 = vpack.c.b16 %v896, %v894
    %v917 = vpack.c.b16 %v897, %v895
    %v918 = vpack.c.b16 %v900, %v898
    %v919 = vpack.c.b16 %v901, %v899
    %v920 = vpack.c.b16 %v904, %v902
    %v921 = vpack.c.b16 %v905, %v903
    %938 = vmatpush.bf16.msra.mxu0 %v920
    %939 = vmatpush.bf16.msra.mxu0 %v918
    %940 = vmatpush.bf16.msra.mxu0 %v916
    %941 = vmatpush.bf16.msra.mxu0 %v914
    %942 = vmatpush.bf16.msra.mxu0 %v912
    %943 = vmatpush.bf16.msra.mxu0 %v910
    %944 = vmatpush.bf16.msra.mxu0 %v908
    %945 = vmatpush.bf16.msra.mxu0 %v906
    %946 = vmatmul.bf16.gmra.mxu0 %v841
    %v947 = vpop.f32.mrf.mxu0
    %v948 = vadd.f32 0.0, %v947
    %v949 = vpop.f32.mrf.mxu0
    %950 = vdwg.mxu0
    %951 = vmatpush.bf16.msra.mxu0 %v921
    %952 = vmatpush.bf16.msra.mxu0 %v919
    %953 = vmatpush.bf16.msra.mxu0 %v917
    %954 = vmatpush.bf16.msra.mxu0 %v915
    %955 = vmatpush.bf16.msra.mxu0 %v913
    %956 = vmatpush.bf16.msra.mxu0 %v911
    %957 = vmatpush.bf16.msra.mxu0 %v909
    %958 = vmatpush.bf16.msra.mxu0 %v907
    %959 = vmatmul.bf16.gmra.mxu0 %v841
    %v960 = vpop.f32.mrf.mxu0
    %v961 = vadd.f32 0.0, %v960
    %v962 = vpop.f32.mrf.mxu0
    %963 = vdwg.mxu0
    %v964 = vmax.f32 %v948, 0.0
    %v965 = vmax.f32 %v961, 0.0
    %v966 = vpack.c.bf16 %v964, %v964
    %v967 = vpack.c.bf16 %v965, %v965
    %v968 = vld [vmem:[#allocation8] sm:$0xff]
    %v969 = vld [vmem:[#allocation8 + $0x8] sm:$0xff]
    %v970 = vld [vmem:[#allocation8 + $0x10] sm:$0xff]
    %v971 = vld [vmem:[#allocation8 + $0x18] sm:$0xff]
    %v972 = vld [vmem:[#allocation8 + $0x20] sm:$0xff]
    %v973 = vld [vmem:[#allocation8 + $0x28] sm:$0xff]
    %v974 = vld [vmem:[#allocation8 + $0x30] sm:$0xff]
    %v975 = vld [vmem:[#allocation8 + $0x38] sm:$0xff]
    %v976 = vld [vmem:[#allocation8 + $0x40] sm:$0xff]
    %v977 = vld [vmem:[#allocation8 + $0x48] sm:$0xff]
    %v978 = vld [vmem:[#allocation8 + $0x50] sm:$0xff]
    %v979 = vld [vmem:[#allocation8 + $0x58] sm:$0xff]
    %v980 = vld [vmem:[#allocation8 + $0x60] sm:$0xff]
    %v981 = vld [vmem:[#allocation8 + $0x68] sm:$0xff]
    %v982 = vld [vmem:[#allocation8 + $0x70] sm:$0xff]
    %v983 = vld [vmem:[#allocation8 + $0x78] sm:$0xff]
    %v984 = vld [vmem:[#allocation8 + $0x80] sm:$0xff]
    %v985 = vld [vmem:[#allocation8 + $0x88] sm:$0xff]
    %v986 = vld [vmem:[#allocation8 + $0x90] sm:$0xff]
    %v987 = vld [vmem:[#allocation8 + $0x98] sm:$0xff]
    %v988 = vld [vmem:[#allocation8 + $0xa0] sm:$0xff]
    %v989 = vld [vmem:[#allocation8 + $0xa8] sm:$0xff]
    %v990 = vld [vmem:[#allocation8 + $0xb0] sm:$0xff]
    %v991 = vld [vmem:[#allocation8 + $0xb8] sm:$0xff]
    %v992 = vld [vmem:[#allocation8 + $0xc0] sm:$0xff]
    %v993 = vld [vmem:[#allocation8 + $0xc8] sm:$0xff]
    %v994 = vld [vmem:[#allocation8 + $0xd0] sm:$0xff]
    %v995 = vld [vmem:[#allocation8 + $0xd8] sm:$0xff]
    %v996 = vld [vmem:[#allocation8 + $0xe0] sm:$0xff]
    %v997 = vld [vmem:[#allocation8 + $0xe8] sm:$0xff]
    %v998 = vld [vmem:[#allocation8 + $0xf0] sm:$0xff]
    %v999 = vld [vmem:[#allocation8 + $0xf8] sm:$0xff]
    %v1032 = vunpack.c.l.b16 %v968
    %v1033 = vunpack.c.h.b16 %v968
    %v1034 = vunpack.c.l.b16 %v969
    %v1035 = vunpack.c.h.b16 %v969
    %v1036 = vunpack.c.l.b16 %v970
    %v1037 = vunpack.c.h.b16 %v970
    %v1038 = vunpack.c.l.b16 %v971
    %v1039 = vunpack.c.h.b16 %v971
    %v1040 = vunpack.c.l.b16 %v972
    %v1041 = vunpack.c.h.b16 %v972
    %v1042 = vunpack.c.l.b16 %v973
    %v1043 = vunpack.c.h.b16 %v973
    %v1044 = vunpack.c.l.b16 %v974
    %v1045 = vunpack.c.h.b16 %v974
    %v1046 = vunpack.c.l.b16 %v975
    %v1047 = vunpack.c.h.b16 %v975
    %v1048 = vunpack.c.l.b16 %v976
    %v1049 = vunpack.c.h.b16 %v976
    %v1050 = vunpack.c.l.b16 %v977
    %v1051 = vunpack.c.h.b16 %v977
    %v1052 = vunpack.c.l.b16 %v978
    %v1053 = vunpack.c.h.b16 %v978
    %v1054 = vunpack.c.l.b16 %v979
    %v1055 = vunpack.c.h.b16 %v979
    %v1056 = vunpack.c.l.b16 %v980
    %v1057 = vunpack.c.h.b16 %v980
    %v1058 = vunpack.c.l.b16 %v981
    %v1059 = vunpack.c.h.b16 %v981
    %v1060 = vunpack.c.l.b16 %v982
    %v1061 = vunpack.c.h.b16 %v982
    %v1062 = vunpack.c.l.b16 %v983
    %v1063 = vunpack.c.h.b16 %v983
    %v1064 = vunpack.c.l.b16 %v984
    %v1065 = vunpack.c.h.b16 %v984
    %v1066 = vunpack.c.l.b16 %v985
    %v1067 = vunpack.c.h.b16 %v985
    %v1068 = vunpack.c.l.b16 %v986
    %v1069 = vunpack.c.h.b16 %v986
    %v1070 = vunpack.c.l.b16 %v987
    %v1071 = vunpack.c.h.b16 %v987
    %v1072 = vunpack.c.l.b16 %v988
    %v1073 = vunpack.c.h.b16 %v988
    %v1074 = vunpack.c.l.b16 %v989
    %v1075 = vunpack.c.h.b16 %v989
    %v1076 = vunpack.c.l.b16 %v990
    %v1077 = vunpack.c.h.b16 %v990
    %v1078 = vunpack.c.l.b16 %v991
    %v1079 = vunpack.c.h.b16 %v991
    %v1080 = vunpack.c.l.b16 %v992
    %v1081 = vunpack.c.h.b16 %v992
    %v1082 = vunpack.c.l.b16 %v993
    %v1083 = vunpack.c.h.b16 %v993
    %v1084 = vunpack.c.l.b16 %v994
    %v1085 = vunpack.c.h.b16 %v994
    %v1086 = vunpack.c.l.b16 %v995
    %v1087 = vunpack.c.h.b16 %v995
    %v1088 = vunpack.c.l.b16 %v996
    %v1089 = vunpack.c.h.b16 %v996
    %v1090 = vunpack.c.l.b16 %v997
    %v1091 = vunpack.c.h.b16 %v997
    %v1092 = vunpack.c.l.b16 %v998
    %v1093 = vunpack.c.h.b16 %v998
    %v1094 = vunpack.c.l.b16 %v999
    %v1095 = vunpack.c.h.b16 %v999
    %v1096 = vpack.c.b16 %v1034, %v1032
    %v1097 = vpack.c.b16 %v1035, %v1033
    %v1098 = vpack.c.b16 %v1038, %v1036
    %v1099 = vpack.c.b16 %v1039, %v1037
    %v1100 = vpack.c.b16 %v1042, %v1040
    %v1101 = vpack.c.b16 %v1043, %v1041
    %v1102 = vpack.c.b16 %v1046, %v1044
    %v1103 = vpack.c.b16 %v1047, %v1045
    %v1104 = vpack.c.b16 %v1050, %v1048
    %v1105 = vpack.c.b16 %v1051, %v1049
    %v1106 = vpack.c.b16 %v1054, %v1052
    %v1107 = vpack.c.b16 %v1055, %v1053
    %v1108 = vpack.c.b16 %v1058, %v1056
    %v1109 = vpack.c.b16 %v1059, %v1057
    %v1110 = vpack.c.b16 %v1062, %v1060
    %v1111 = vpack.c.b16 %v1063, %v1061
    %v1112 = vpack.c.b16 %v1066, %v1064
    %v1113 = vpack.c.b16 %v1067, %v1065
    %v1114 = vpack.c.b16 %v1070, %v1068
    %v1115 = vpack.c.b16 %v1071, %v1069
    %v1116 = vpack.c.b16 %v1074, %v1072
    %v1117 = vpack.c.b16 %v1075, %v1073
    %v1118 = vpack.c.b16 %v1078, %v1076
    %v1119 = vpack.c.b16 %v1079, %v1077
    %v1120 = vpack.c.b16 %v1082, %v1080
    %v1121 = vpack.c.b16 %v1083, %v1081
    %v1122 = vpack.c.b16 %v1086, %v1084
    %v1123 = vpack.c.b16 %v1087, %v1085
    %v1124 = vpack.c.b16 %v1090, %v1088
    %v1125 = vpack.c.b16 %v1091, %v1089
    %v1126 = vpack.c.b16 %v1094, %v1092
    %v1127 = vpack.c.b16 %v1095, %v1093
    %1160 = vmatpush.bf16.msra.mxu0 %v1110
    %1161 = vmatpush.bf16.msra.mxu0 %v1108
    %1162 = vmatpush.bf16.msra.mxu0 %v1106
    %1163 = vmatpush.bf16.msra.mxu0 %v1104
    %1164 = vmatpush.bf16.msra.mxu0 %v1102
    %1165 = vmatpush.bf16.msra.mxu0 %v1100
    %1166 = vmatpush.bf16.msra.mxu0 %v1098
    %1167 = vmatpush.bf16.msra.mxu0 %v1096
    %1168 = vmatmul.bf16.gmra.mxu0 %v966
    %v1169 = vpop.f32.mrf.mxu0
    %v1170 = vadd.f32 0.0, %v1169
    %v1171 = vpop.f32.mrf.mxu0
    %1172 = vdwg.mxu0
    %1173 = vmatpush.bf16.msra.mxu0 %v1126
    %1174 = vmatpush.bf16.msra.mxu0 %v1124
    %1175 = vmatpush.bf16.msra.mxu0 %v1122
    %1176 = vmatpush.bf16.msra.mxu0 %v1120
    %1177 = vmatpush.bf16.msra.mxu0 %v1118
    %1178 = vmatpush.bf16.msra.mxu0 %v1116
    %1179 = vmatpush.bf16.msra.mxu0 %v1114
    %1180 = vmatpush.bf16.msra.mxu0 %v1112
    %1181 = vmatmul.bf16.gmra.mxu0 %v967
    %v1182 = vpop.f32.mrf.mxu0
    %v1183 = vadd.f32 %v1170, %v1182
    %v1184 = vpop.f32.mrf.mxu0
    %1185 = vdwg.mxu0
    %1186 = vmatpush.bf16.msra.mxu0 %v1111
    %1187 = vmatpush.bf16.msra.mxu0 %v1109
    %1188 = vmatpush.bf16.msra.mxu0 %v1107
    %1189 = vmatpush.bf16.msra.mxu0 %v1105
    %1190 = vmatpush.bf16.msra.mxu0 %v1103
    %1191 = vmatpush.bf16.msra.mxu0 %v1101
    %1192 = vmatpush.bf16.msra.mxu0 %v1099
    %1193 = vmatpush.bf16.msra.mxu0 %v1097
    %1194 = vmatmul.bf16.gmra.mxu0 %v966
    %v1195 = vpop.f32.mrf.mxu0
    %v1196 = vadd.f32 0.0, %v1195
    %v1197 = vpop.f32.mrf.mxu0
    %1198 = vdwg.mxu0
    %1199 = vmatpush.bf16.msra.mxu0 %v1127
    %1200 = vmatpush.bf16.msra.mxu0 %v1125
    %1201 = vmatpush.bf16.msra.mxu0 %v1123
    %1202 = vmatpush.bf16.msra.mxu0 %v1121
    %1203 = vmatpush.bf16.msra.mxu0 %v1119
    %1204 = vmatpush.bf16.msra.mxu0 %v1117
    %1205 = vmatpush.bf16.msra.mxu0 %v1115
    %1206 = vmatpush.bf16.msra.mxu0 %v1113
    %1207 = vmatmul.bf16.gmra.mxu0 %v967
    %v1208 = vpop.f32.mrf.mxu0
    %v1209 = vadd.f32 %v1196, %v1208
    %v1210 = vpop.f32.mrf.mxu0
    %1211 = vdwg.mxu0
    %v1212 = vmax.f32 %v1183, 0.0
    %v1213 = vmax.f32 %v1209, 0.0
    %v1214 = vpack.c.bf16 %v1212, %v1212
    %v1215 = vpack.c.bf16 %v1213, %v1213
    %v1216 = vld [vmem:[#allocation10] sm:$0xff]
    %v1217 = vld [vmem:[#allocation10 + $0x8] sm:$0xff]
    %v1218 = vld [vmem:[#allocation10 + $0x10] sm:$0xff]
    %v1219 = vld [vmem:[#allocation10 + $0x18] sm:$0xff]
    %v1220 = vld [vmem:[#allocation10 + $0x20] sm:$0xff]
    %v1221 = vld [vmem:[#allocation10 + $0x28] sm:$0xff]
    %v1222 = vld [vmem:[#allocation10 + $0x30] sm:$0xff]
    %v1223 = vld [vmem:[#allocation10 + $0x38] sm:$0xff]
    %v1224 = vld [vmem:[#allocation10 + $0x40] sm:$0xff]
    %v1225 = vld [vmem:[#allocation10 + $0x48] sm:$0xff]
    %v1226 = vld [vmem:[#allocation10 + $0x50] sm:$0xff]
    %v1227 = vld [vmem:[#allocation10 + $0x58] sm:$0xff]
    %v1228 = vld [vmem:[#allocation10 + $0x60] sm:$0xff]
    %v1229 = vld [vmem:[#allocation10 + $0x68] sm:$0xff]
    %v1230 = vld [vmem:[#allocation10 + $0x70] sm:$0xff]
    %v1231 = vld [vmem:[#allocation10 + $0x78] sm:$0xff]
    %v1232 = vld [vmem:[#allocation10 + $0x80] sm:$0xff]
    %v1233 = vld [vmem:[#allocation10 + $0x88] sm:$0xff]
    %v1234 = vld [vmem:[#allocation10 + $0x90] sm:$0xff]
    %v1235 = vld [vmem:[#allocation10 + $0x98] sm:$0xff]
    %v1236 = vld [vmem:[#allocation10 + $0xa0] sm:$0xff]
    %v1237 = vld [vmem:[#allocation10 + $0xa8] sm:$0xff]
    %v1238 = vld [vmem:[#allocation10 + $0xb0] sm:$0xff]
    %v1239 = vld [vmem:[#allocation10 + $0xb8] sm:$0xff]
    %v1240 = vld [vmem:[#allocation10 + $0xc0] sm:$0xff]
    %v1241 = vld [vmem:[#allocation10 + $0xc8] sm:$0xff]
    %v1242 = vld [vmem:[#allocation10 + $0xd0] sm:$0xff]
    %v1243 = vld [vmem:[#allocation10 + $0xd8] sm:$0xff]
    %v1244 = vld [vmem:[#allocation10 + $0xe0] sm:$0xff]
    %v1245 = vld [vmem:[#allocation10 + $0xe8] sm:$0xff]
    %v1246 = vld [vmem:[#allocation10 + $0xf0] sm:$0xff]
    %v1247 = vld [vmem:[#allocation10 + $0xf8] sm:$0xff]
    %v1280 = vunpack.c.l.b16 %v1216
    %v1281 = vunpack.c.h.b16 %v1216
    %v1282 = vunpack.c.l.b16 %v1217
    %v1283 = vunpack.c.h.b16 %v1217
    %v1284 = vunpack.c.l.b16 %v1218
    %v1285 = vunpack.c.h.b16 %v1218
    %v1286 = vunpack.c.l.b16 %v1219
    %v1287 = vunpack.c.h.b16 %v1219
    %v1288 = vunpack.c.l.b16 %v1220
    %v1289 = vunpack.c.h.b16 %v1220
    %v1290 = vunpack.c.l.b16 %v1221
    %v1291 = vunpack.c.h.b16 %v1221
    %v1292 = vunpack.c.l.b16 %v1222
    %v1293 = vunpack.c.h.b16 %v1222
    %v1294 = vunpack.c.l.b16 %v1223
    %v1295 = vunpack.c.h.b16 %v1223
    %v1296 = vunpack.c.l.b16 %v1224
    %v1297 = vunpack.c.h.b16 %v1224
    %v1298 = vunpack.c.l.b16 %v1225
    %v1299 = vunpack.c.h.b16 %v1225
    %v1300 = vunpack.c.l.b16 %v1226
    %v1301 = vunpack.c.h.b16 %v1226
    %v1302 = vunpack.c.l.b16 %v1227
    %v1303 = vunpack.c.h.b16 %v1227
    %v1304 = vunpack.c.l.b16 %v1228
    %v1305 = vunpack.c.h.b16 %v1228
    %v1306 = vunpack.c.l.b16 %v1229
    %v1307 = vunpack.c.h.b16 %v1229
    %v1308 = vunpack.c.l.b16 %v1230
    %v1309 = vunpack.c.h.b16 %v1230
    %v1310 = vunpack.c.l.b16 %v1231
    %v1311 = vunpack.c.h.b16 %v1231
    %v1312 = vunpack.c.l.b16 %v1232
    %v1313 = vunpack.c.h.b16 %v1232
    %v1314 = vunpack.c.l.b16 %v1233
    %v1315 = vunpack.c.h.b16 %v1233
    %v1316 = vunpack.c.l.b16 %v1234
    %v1317 = vunpack.c.h.b16 %v1234
    %v1318 = vunpack.c.l.b16 %v1235
    %v1319 = vunpack.c.h.b16 %v1235
    %v1320 = vunpack.c.l.b16 %v1236
    %v1321 = vunpack.c.h.b16 %v1236
    %v1322 = vunpack.c.l.b16 %v1237
    %v1323 = vunpack.c.h.b16 %v1237
    %v1324 = vunpack.c.l.b16 %v1238
    %v1325 = vunpack.c.h.b16 %v1238
    %v1326 = vunpack.c.l.b16 %v1239
    %v1327 = vunpack.c.h.b16 %v1239
    %v1328 = vunpack.c.l.b16 %v1240
    %v1329 = vunpack.c.h.b16 %v1240
    %v1330 = vunpack.c.l.b16 %v1241
    %v1331 = vunpack.c.h.b16 %v1241
    %v1332 = vunpack.c.l.b16 %v1242
    %v1333 = vunpack.c.h.b16 %v1242
    %v1334 = vunpack.c.l.b16 %v1243
    %v1335 = vunpack.c.h.b16 %v1243
    %v1336 = vunpack.c.l.b16 %v1244
    %v1337 = vunpack.c.h.b16 %v1244
    %v1338 = vunpack.c.l.b16 %v1245
    %v1339 = vunpack.c.h.b16 %v1245
    %v1340 = vunpack.c.l.b16 %v1246
    %v1341 = vunpack.c.h.b16 %v1246
    %v1342 = vunpack.c.l.b16 %v1247
    %v1343 = vunpack.c.h.b16 %v1247
    %v1344 = vpack.c.b16 %v1282, %v1280
    %v1345 = vpack.c.b16 %v1283, %v1281
    %v1346 = vpack.c.b16 %v1286, %v1284
    %v1347 = vpack.c.b16 %v1287, %v1285
    %v1348 = vpack.c.b16 %v1290, %v1288
    %v1349 = vpack.c.b16 %v1291, %v1289
    %v1350 = vpack.c.b16 %v1294, %v1292
    %v1351 = vpack.c.b16 %v1295, %v1293
    %v1352 = vpack.c.b16 %v1298, %v1296
    %v1353 = vpack.c.b16 %v1299, %v1297
    %v1354 = vpack.c.b16 %v1302, %v1300
    %v1355 = vpack.c.b16 %v1303, %v1301
    %v1356 = vpack.c.b16 %v1306, %v1304
    %v1357 = vpack.c.b16 %v1307, %v1305
    %v1358 = vpack.c.b16 %v1310, %v1308
    %v1359 = vpack.c.b16 %v1311, %v1309
    %v1360 = vpack.c.b16 %v1314, %v1312
    %v1361 = vpack.c.b16 %v1315, %v1313
    %v1362 = vpack.c.b16 %v1318, %v1316
    %v1363 = vpack.c.b16 %v1319, %v1317
    %v1364 = vpack.c.b16 %v1322, %v1320
    %v1365 = vpack.c.b16 %v1323, %v1321
    %v1366 = vpack.c.b16 %v1326, %v1324
    %v1367 = vpack.c.b16 %v1327, %v1325
    %v1368 = vpack.c.b16 %v1330, %v1328
    %v1369 = vpack.c.b16 %v1331, %v1329
    %v1370 = vpack.c.b16 %v1334, %v1332
    %v1371 = vpack.c.b16 %v1335, %v1333
    %v1372 = vpack.c.b16 %v1338, %v1336
    %v1373 = vpack.c.b16 %v1339, %v1337
    %v1374 = vpack.c.b16 %v1342, %v1340
    %v1375 = vpack.c.b16 %v1343, %v1341
    %1408 = vmatpush.bf16.msra.mxu0 %v1358
    %1409 = vmatpush.bf16.msra.mxu0 %v1356
    %1410 = vmatpush.bf16.msra.mxu0 %v1354
    %1411 = vmatpush.bf16.msra.mxu0 %v1352
    %1412 = vmatpush.bf16.msra.mxu0 %v1350
    %1413 = vmatpush.bf16.msra.mxu0 %v1348
    %1414 = vmatpush.bf16.msra.mxu0 %v1346
    %1415 = vmatpush.bf16.msra.mxu0 %v1344
    %1416 = vmatmul.bf16.gmra.mxu0 %v1214
    %v1417 = vpop.f32.mrf.mxu0
    %v1418 = vadd.f32 0.0, %v1417
    %v1419 = vpop.f32.mrf.mxu0
    %1420 = vdwg.mxu0
    %1421 = vmatpush.bf16.msra.mxu0 %v1374
    %1422 = vmatpush.bf16.msra.mxu0 %v1372
    %1423 = vmatpush.bf16.msra.mxu0 %v1370
    %1424 = vmatpush.bf16.msra.mxu0 %v1368
    %1425 = vmatpush.bf16.msra.mxu0 %v1366
    %1426 = vmatpush.bf16.msra.mxu0 %v1364
    %1427 = vmatpush.bf16.msra.mxu0 %v1362
    %1428 = vmatpush.bf16.msra.mxu0 %v1360
    %1429 = vmatmul.bf16.gmra.mxu0 %v1215
    %v1430 = vpop.f32.mrf.mxu0
    %v1431 = vadd.f32 %v1418, %v1430
    %v1432 = vpop.f32.mrf.mxu0
    %1433 = vdwg.mxu0
    %1434 = vmatpush.bf16.msra.mxu0 %v1359
    %1435 = vmatpush.bf16.msra.mxu0 %v1357
    %1436 = vmatpush.bf16.msra.mxu0 %v1355
    %1437 = vmatpush.bf16.msra.mxu0 %v1353
    %1438 = vmatpush.bf16.msra.mxu0 %v1351
    %1439 = vmatpush.bf16.msra.mxu0 %v1349
    %1440 = vmatpush.bf16.msra.mxu0 %v1347
    %1441 = vmatpush.bf16.msra.mxu0 %v1345
    %1442 = vmatmul.bf16.gmra.mxu0 %v1214
    %v1443 = vpop.f32.mrf.mxu0
    %v1444 = vadd.f32 0.0, %v1443
    %v1445 = vpop.f32.mrf.mxu0
    %1446 = vdwg.mxu0
    %1447 = vmatpush.bf16.msra.mxu0 %v1375
    %1448 = vmatpush.bf16.msra.mxu0 %v1373
    %1449 = vmatpush.bf16.msra.mxu0 %v1371
    %1450 = vmatpush.bf16.msra.mxu0 %v1369
    %1451 = vmatpush.bf16.msra.mxu0 %v1367
    %1452 = vmatpush.bf16.msra.mxu0 %v1365
    %1453 = vmatpush.bf16.msra.mxu0 %v1363
    %1454 = vmatpush.bf16.msra.mxu0 %v1361
    %1455 = vmatmul.bf16.gmra.mxu0 %v1215
    %v1456 = vpop.f32.mrf.mxu0
    %v1457 = vadd.f32 %v1444, %v1456
    %v1458 = vpop.f32.mrf.mxu0
    %1459 = vdwg.mxu0
    %v1460 = vmax.f32 %v1431, 0.0
    %v1461 = vmax.f32 %v1457, 0.0
    %v1462 = vpack.c.bf16 %v1460, %v1460
    %v1463 = vpack.c.bf16 %v1461, %v1461
    %v1464 = vld [vmem:[#allocation11] sm:$0xf]
    %v1465 = vld [vmem:[#allocation11 + $0x4] sm:$0xf]
    %v1466 = vld [vmem:[#allocation11 + $0x8] sm:$0xf]
    %v1467 = vld [vmem:[#allocation11 + $0xc] sm:$0xf]
    %v1468 = vld [vmem:[#allocation11 + $0x10] sm:$0xf]
    %v1469 = vld [vmem:[#allocation11 + $0x14] sm:$0xf]
    %v1470 = vld [vmem:[#allocation11 + $0x18] sm:$0xf]
    %v1471 = vld [vmem:[#allocation11 + $0x1c] sm:$0xf]
    %v1472 = vld [vmem:[#allocation11 + $0x20] sm:$0xf]
    %v1473 = vld [vmem:[#allocation11 + $0x24] sm:$0xf]
    %v1474 = vld [vmem:[#allocation11 + $0x28] sm:$0xf]
    %v1475 = vld [vmem:[#allocation11 + $0x2c] sm:$0xf]
    %v1476 = vld [vmem:[#allocation11 + $0x30] sm:$0xf]
    %v1477 = vld [vmem:[#allocation11 + $0x34] sm:$0xf]
    %v1478 = vld [vmem:[#allocation11 + $0x38] sm:$0xf]
    %v1479 = vld [vmem:[#allocation11 + $0x3c] sm:$0xf]
    %v1480 = vld [vmem:[#allocation11 + $0x40] sm:$0xf]
    %v1481 = vld [vmem:[#allocation11 + $0x44] sm:$0xf]
    %v1482 = vld [vmem:[#allocation11 + $0x48] sm:$0xf]
    %v1483 = vld [vmem:[#allocation11 + $0x4c] sm:$0xf]
    %v1484 = vld [vmem:[#allocation11 + $0x50] sm:$0xf]
    %v1485 = vld [vmem:[#allocation11 + $0x54] sm:$0xf]
    %v1486 = vld [vmem:[#allocation11 + $0x58] sm:$0xf]
    %v1487 = vld [vmem:[#allocation11 + $0x5c] sm:$0xf]
    %v1488 = vld [vmem:[#allocation11 + $0x60] sm:$0xf]
    %v1489 = vld [vmem:[#allocation11 + $0x64] sm:$0xf]
    %v1490 = vld [vmem:[#allocation11 + $0x68] sm:$0xf]
    %v1491 = vld [vmem:[#allocation11 + $0x6c] sm:$0xf]
    %v1492 = vld [vmem:[#allocation11 + $0x70] sm:$0xf]
    %v1493 = vld [vmem:[#allocation11 + $0x74] sm:$0xf]
    %v1494 = vld [vmem:[#allocation11 + $0x78] sm:$0xf]
    %v1495 = vld [vmem:[#allocation11 + $0x7c] sm:$0xf]
    %v1528 = vunpack.c.l.b16 %v1464
    %v1529 = vunpack.c.l.b16 %v1465
    %v1530 = vunpack.c.l.b16 %v1466
    %v1531 = vunpack.c.l.b16 %v1467
    %v1532 = vunpack.c.l.b16 %v1468
    %v1533 = vunpack.c.l.b16 %v1469
    %v1534 = vunpack.c.l.b16 %v1470
    %v1535 = vunpack.c.l.b16 %v1471
    %v1536 = vunpack.c.l.b16 %v1472
    %v1537 = vunpack.c.l.b16 %v1473
    %v1538 = vunpack.c.l.b16 %v1474
    %v1539 = vunpack.c.l.b16 %v1475
    %v1540 = vunpack.c.l.b16 %v1476
    %v1541 = vunpack.c.l.b16 %v1477
    %v1542 = vunpack.c.l.b16 %v1478
    %v1543 = vunpack.c.l.b16 %v1479
    %v1544 = vunpack.c.l.b16 %v1480
    %v1545 = vunpack.c.l.b16 %v1481
    %v1546 = vunpack.c.l.b16 %v1482
    %v1547 = vunpack.c.l.b16 %v1483
    %v1548 = vunpack.c.l.b16 %v1484
    %v1549 = vunpack.c.l.b16 %v1485
    %v1550 = vunpack.c.l.b16 %v1486
    %v1551 = vunpack.c.l.b16 %v1487
    %v1552 = vunpack.c.l.b16 %v1488
    %v1553 = vunpack.c.l.b16 %v1489
    %v1554 = vunpack.c.l.b16 %v1490
    %v1555 = vunpack.c.l.b16 %v1491
    %v1556 = vunpack.c.l.b16 %v1492
    %v1557 = vunpack.c.l.b16 %v1493
    %v1558 = vunpack.c.l.b16 %v1494
    %v1559 = vunpack.c.l.b16 %v1495
    %v1560 = vpack.c.b16 %v1529, %v1528
    %v1561 = vpack.c.b16 %v1531, %v1530
    %v1562 = vpack.c.b16 %v1533, %v1532
    %v1563 = vpack.c.b16 %v1535, %v1534
    %v1564 = vpack.c.b16 %v1537, %v1536
    %v1565 = vpack.c.b16 %v1539, %v1538
    %v1566 = vpack.c.b16 %v1541, %v1540
    %v1567 = vpack.c.b16 %v1543, %v1542
    %v1568 = vpack.c.b16 %v1545, %v1544
    %v1569 = vpack.c.b16 %v1547, %v1546
    %v1570 = vpack.c.b16 %v1549, %v1548
    %v1571 = vpack.c.b16 %v1551, %v1550
    %v1572 = vpack.c.b16 %v1553, %v1552
    %v1573 = vpack.c.b16 %v1555, %v1554
    %v1574 = vpack.c.b16 %v1557, %v1556
    %v1575 = vpack.c.b16 %v1559, %v1558
    %1592 = vmatpush.bf16.msra.mxu0 %v1567
    %1593 = vmatpush.bf16.msra.mxu0 %v1566
    %1594 = vmatpush.bf16.msra.mxu0 %v1565
    %1595 = vmatpush.bf16.msra.mxu0 %v1564
    %1596 = vmatpush.bf16.msra.mxu0 %v1563
    %1597 = vmatpush.bf16.msra.mxu0 %v1562
    %1598 = vmatpush.bf16.msra.mxu0 %v1561
    %1599 = vmatpush.bf16.msra.mxu0 %v1560
    %1600 = vmatmul.bf16.gmra.mxu0 %v1462
    %v1601 = vpop.f32.mrf.mxu0
    %v1602 = vadd.f32 0.0, %v1601
    %v1603 = vpop.f32.mrf.mxu0
    %1604 = vdwg.mxu0
    %1605 = vmatpush.bf16.msra.mxu0 %v1575
    %1606 = vmatpush.bf16.msra.mxu0 %v1574
    %1607 = vmatpush.bf16.msra.mxu0 %v1573
    %1608 = vmatpush.bf16.msra.mxu0 %v1572
    %1609 = vmatpush.bf16.msra.mxu0 %v1571
    %1610 = vmatpush.bf16.msra.mxu0 %v1570
    %1611 = vmatpush.bf16.msra.mxu0 %v1569
    %1612 = vmatpush.bf16.msra.mxu0 %v1568
    %1613 = vmatmul.bf16.gmra.mxu0 %v1463
    %v1614 = vpop.f32.mrf.mxu0
    %v1615 = vadd.f32 %v1602, %v1614
    %v1616 = vpop.f32.mrf.mxu0
    %1617 = vdwg.mxu0
    %v1618 = vmax.f32 %v1615, 0.0
    %v1619 = vpack.c.bf16 %v1618, %v1618
    %v1620 = vld [vmem:[#allocation13] sm:$0xf]
    %v1621 = vld [vmem:[#allocation13 + $0x4] sm:$0xf]
    %v1622 = vld [vmem:[#allocation13 + $0x8] sm:$0xf]
    %v1623 = vld [vmem:[#allocation13 + $0xc] sm:$0xf]
    %v1624 = vld [vmem:[#allocation13 + $0x10] sm:$0xf]
    %v1625 = vld [vmem:[#allocation13 + $0x14] sm:$0xf]
    %v1626 = vld [vmem:[#allocation13 + $0x18] sm:$0xf]
    %v1627 = vld [vmem:[#allocation13 + $0x1c] sm:$0xf]
    %v1628 = vld [vmem:[#allocation13 + $0x20] sm:$0xf]
    %v1629 = vld [vmem:[#allocation13 + $0x24] sm:$0xf]
    %v1630 = vld [vmem:[#allocation13 + $0x28] sm:$0xf]
    %v1631 = vld [vmem:[#allocation13 + $0x2c] sm:$0xf]
    %v1632 = vld [vmem:[#allocation13 + $0x30] sm:$0xf]
    %v1633 = vld [vmem:[#allocation13 + $0x34] sm:$0xf]
    %v1634 = vld [vmem:[#allocation13 + $0x38] sm:$0xf]
    %v1635 = vld [vmem:[#allocation13 + $0x3c] sm:$0xf]
    %v1652 = vunpack.c.l.b16 %v1620
    %v1653 = vunpack.c.l.b16 %v1621
    %v1654 = vunpack.c.l.b16 %v1622
    %v1655 = vunpack.c.l.b16 %v1623
    %v1656 = vunpack.c.l.b16 %v1624
    %v1657 = vunpack.c.l.b16 %v1625
    %v1658 = vunpack.c.l.b16 %v1626
    %v1659 = vunpack.c.l.b16 %v1627
    %v1660 = vunpack.c.l.b16 %v1628
    %v1661 = vunpack.c.l.b16 %v1629
    %v1662 = vunpack.c.l.b16 %v1630
    %v1663 = vunpack.c.l.b16 %v1631
    %v1664 = vunpack.c.l.b16 %v1632
    %v1665 = vunpack.c.l.b16 %v1633
    %v1666 = vunpack.c.l.b16 %v1634
    %v1667 = vunpack.c.l.b16 %v1635
    %v1668 = vpack.c.b16 %v1653, %v1652
    %v1669 = vpack.c.b16 %v1655, %v1654
    %v1670 = vpack.c.b16 %v1657, %v1656
    %v1671 = vpack.c.b16 %v1659, %v1658
    %v1672 = vpack.c.b16 %v1661, %v1660
    %v1673 = vpack.c.b16 %v1663, %v1662
    %v1674 = vpack.c.b16 %v1665, %v1664
    %v1675 = vpack.c.b16 %v1667, %v1666
    %1684 = vmatpush.bf16.msra.mxu0 %v1675
    %1685 = vmatpush.bf16.msra.mxu0 %v1674
    %1686 = vmatpush.bf16.msra.mxu0 %v1673
    %1687 = vmatpush.bf16.msra.mxu0 %v1672
    %1688 = vmatpush.bf16.msra.mxu0 %v1671
    %1689 = vmatpush.bf16.msra.mxu0 %v1670
    %1690 = vmatpush.bf16.msra.mxu0 %v1669
    %1691 = vmatpush.bf16.msra.mxu0 %v1668
    %1692 = vmatmul.bf16.gmra.mxu0 %v1619
    %v1693 = vpop.f32.mrf.mxu0
    %v1694 = vadd.f32 0.0, %v1693
    %v1695 = vpop.f32.mrf.mxu0
    %1696 = vdwg.mxu0
    %v1697 = vmax.f32 %v1694, 0.0
    %v1698 = vpack.c.bf16 %v1697, %v1697
    %v1699 = vld [vmem:[#allocation14] sm:$0xf]
    %v1700 = vld [vmem:[#allocation14 + $0x4] sm:$0xf]
    %v1701 = vld [vmem:[#allocation14 + $0x8] sm:$0xf]
    %v1702 = vld [vmem:[#allocation14 + $0xc] sm:$0xf]
    %v1703 = vld [vmem:[#allocation14 + $0x10] sm:$0xf]
    %v1704 = vld [vmem:[#allocation14 + $0x14] sm:$0xf]
    %v1705 = vld [vmem:[#allocation14 + $0x18] sm:$0xf]
    %v1706 = vld [vmem:[#allocation14 + $0x1c] sm:$0xf]
    %v1707 = vld [vmem:[#allocation14 + $0x20] sm:$0xf]
    %v1708 = vld [vmem:[#allocation14 + $0x24] sm:$0xf]
    %v1709 = vld [vmem:[#allocation14 + $0x28] sm:$0xf]
    %v1710 = vld [vmem:[#allocation14 + $0x2c] sm:$0xf]
    %v1711 = vld [vmem:[#allocation14 + $0x30] sm:$0xf]
    %v1712 = vld [vmem:[#allocation14 + $0x34] sm:$0xf]
    %v1713 = vld [vmem:[#allocation14 + $0x38] sm:$0xf]
    %v1714 = vld [vmem:[#allocation14 + $0x3c] sm:$0xf]
    %v1731 = vunpack.c.l.b16 %v1699
    %v1732 = vunpack.c.l.b16 %v1700
    %v1733 = vunpack.c.l.b16 %v1701
    %v1734 = vunpack.c.l.b16 %v1702
    %v1735 = vunpack.c.l.b16 %v1703
    %v1736 = vunpack.c.l.b16 %v1704
    %v1737 = vunpack.c.l.b16 %v1705
    %v1738 = vunpack.c.l.b16 %v1706
    %v1739 = vunpack.c.l.b16 %v1707
    %v1740 = vunpack.c.l.b16 %v1708
    %v1741 = vunpack.c.l.b16 %v1709
    %v1742 = vunpack.c.l.b16 %v1710
    %v1743 = vunpack.c.l.b16 %v1711
    %v1744 = vunpack.c.l.b16 %v1712
    %v1745 = vunpack.c.l.b16 %v1713
    %v1746 = vunpack.c.l.b16 %v1714
    %v1747 = vpack.c.b16 %v1732, %v1731
    %v1748 = vpack.c.b16 %v1734, %v1733
    %v1749 = vpack.c.b16 %v1736, %v1735
    %v1750 = vpack.c.b16 %v1738, %v1737
    %v1751 = vpack.c.b16 %v1740, %v1739
    %v1752 = vpack.c.b16 %v1742, %v1741
    %v1753 = vpack.c.b16 %v1744, %v1743
    %v1754 = vpack.c.b16 %v1746, %v1745
    %1763 = vmatpush.bf16.msra.mxu0 %v1754
    %1764 = vmatpush.bf16.msra.mxu0 %v1753
    %1765 = vmatpush.bf16.msra.mxu0 %v1752
    %1766 = vmatpush.bf16.msra.mxu0 %v1751
    %1767 = vmatpush.bf16.msra.mxu0 %v1750
    %1768 = vmatpush.bf16.msra.mxu0 %v1749
    %1769 = vmatpush.bf16.msra.mxu0 %v1748
    %1770 = vmatpush.bf16.msra.mxu0 %v1747
    %1771 = vmatmul.bf16.gmra.mxu0 %v1698
    %v1772 = vpop.f32.mrf.mxu0
    %v1773 = vadd.f32 0.0, %v1772
    %v1774 = vpop.f32.mrf.mxu0
    %1775 = vdwg.mxu0
    %v1776 = vmax.f32 %v1773, 0.0
    %v1777 = vpack.c.bf16 %v1776, %v1776
    %v1778 = vld [vmem:[#allocation16] sm:$0xf]
    %v1779 = vld [vmem:[#allocation16 + $0x4] sm:$0xf]
    %v1780 = vld [vmem:[#allocation16 + $0x8] sm:$0xf]
    %v1781 = vld [vmem:[#allocation16 + $0xc] sm:$0xf]
    %v1782 = vld [vmem:[#allocation16 + $0x10] sm:$0xf]
    %v1783 = vld [vmem:[#allocation16 + $0x14] sm:$0xf]
    %v1784 = vld [vmem:[#allocation16 + $0x18] sm:$0xf]
    %v1785 = vld [vmem:[#allocation16 + $0x1c] sm:$0xf]
    %v1786 = vld [vmem:[#allocation16 + $0x20] sm:$0xf]
    %v1787 = vld [vmem:[#allocation16 + $0x24] sm:$0xf]
    %v1788 = vld [vmem:[#allocation16 + $0x28] sm:$0xf]
    %v1789 = vld [vmem:[#allocation16 + $0x2c] sm:$0xf]
    %v1790 = vld [vmem:[#allocation16 + $0x30] sm:$0xf]
    %v1791 = vld [vmem:[#allocation16 + $0x34] sm:$0xf]
    %v1792 = vld [vmem:[#allocation16 + $0x38] sm:$0xf]
    %v1793 = vld [vmem:[#allocation16 + $0x3c] sm:$0xf]
    %v1810 = vunpack.c.l.b16 %v1778
    %v1811 = vunpack.c.l.b16 %v1779
    %v1812 = vunpack.c.l.b16 %v1780
    %v1813 = vunpack.c.l.b16 %v1781
    %v1814 = vunpack.c.l.b16 %v1782
    %v1815 = vunpack.c.l.b16 %v1783
    %v1816 = vunpack.c.l.b16 %v1784
    %v1817 = vunpack.c.l.b16 %v1785
    %v1818 = vunpack.c.l.b16 %v1786
    %v1819 = vunpack.c.l.b16 %v1787
    %v1820 = vunpack.c.l.b16 %v1788
    %v1821 = vunpack.c.l.b16 %v1789
    %v1822 = vunpack.c.l.b16 %v1790
    %v1823 = vunpack.c.l.b16 %v1791
    %v1824 = vunpack.c.l.b16 %v1792
    %v1825 = vunpack.c.l.b16 %v1793
    %v1826 = vpack.c.b16 %v1811, %v1810
    %v1827 = vpack.c.b16 %v1813, %v1812
    %v1828 = vpack.c.b16 %v1815, %v1814
    %v1829 = vpack.c.b16 %v1817, %v1816
    %v1830 = vpack.c.b16 %v1819, %v1818
    %v1831 = vpack.c.b16 %v1821, %v1820
    %v1832 = vpack.c.b16 %v1823, %v1822
    %v1833 = vpack.c.b16 %v1825, %v1824
    %1842 = vmatpush.bf16.msra.mxu0 %v1833
    %1843 = vmatpush.bf16.msra.mxu0 %v1832
    %1844 = vmatpush.bf16.msra.mxu0 %v1831
    %1845 = vmatpush.bf16.msra.mxu0 %v1830
    %1846 = vmatpush.bf16.msra.mxu0 %v1829
    %1847 = vmatpush.bf16.msra.mxu0 %v1828
    %1848 = vmatpush.bf16.msra.mxu0 %v1827
    %1849 = vmatpush.bf16.msra.mxu0 %v1826
    %1850 = vmatmul.bf16.gmra.mxu0 %v1777
    %v1851 = vpop.f32.mrf.mxu0
    %v1852 = vadd.f32 0.0, %v1851
    %v1853 = vpop.f32.mrf.mxu0
    %1854 = vdwg.mxu0
    %v1855 = vmax.f32 %v1852, 0.0
    %v1856 = vpack.c.bf16 %v1855, %v1855
    %v1857 = vld [vmem:[#allocation17] sm:$0xf]
    %v1858 = vld [vmem:[#allocation17 + $0x4] sm:$0xf]
    %v1859 = vld [vmem:[#allocation17 + $0x8] sm:$0xf]
    %v1860 = vld [vmem:[#allocation17 + $0xc] sm:$0xf]
    %v1861 = vld [vmem:[#allocation17 + $0x10] sm:$0xf]
    %v1862 = vld [vmem:[#allocation17 + $0x14] sm:$0xf]
    %v1863 = vld [vmem:[#allocation17 + $0x18] sm:$0xf]
    %v1864 = vld [vmem:[#allocation17 + $0x1c] sm:$0xf]
    %v1865 = vld [vmem:[#allocation17 + $0x20] sm:$0xf]
    %v1866 = vld [vmem:[#allocation17 + $0x24] sm:$0xf]
    %v1867 = vld [vmem:[#allocation17 + $0x28] sm:$0xf]
    %v1868 = vld [vmem:[#allocation17 + $0x2c] sm:$0xf]
    %v1869 = vld [vmem:[#allocation17 + $0x30] sm:$0xf]
    %v1870 = vld [vmem:[#allocation17 + $0x34] sm:$0xf]
    %v1871 = vld [vmem:[#allocation17 + $0x38] sm:$0xf]
    %v1872 = vld [vmem:[#allocation17 + $0x3c] sm:$0xf]
    %v1889 = vunpack.c.l.b16 %v1857
    %v1890 = vunpack.c.l.b16 %v1858
    %v1891 = vunpack.c.l.b16 %v1859
    %v1892 = vunpack.c.l.b16 %v1860
    %v1893 = vunpack.c.l.b16 %v1861
    %v1894 = vunpack.c.l.b16 %v1862
    %v1895 = vunpack.c.l.b16 %v1863
    %v1896 = vunpack.c.l.b16 %v1864
    %v1897 = vunpack.c.l.b16 %v1865
    %v1898 = vunpack.c.l.b16 %v1866
    %v1899 = vunpack.c.l.b16 %v1867
    %v1900 = vunpack.c.l.b16 %v1868
    %v1901 = vunpack.c.l.b16 %v1869
    %v1902 = vunpack.c.l.b16 %v1870
    %v1903 = vunpack.c.l.b16 %v1871
    %v1904 = vunpack.c.l.b16 %v1872
    %v1905 = vpack.c.b16 %v1890, %v1889
    %v1906 = vpack.c.b16 %v1892, %v1891
    %v1907 = vpack.c.b16 %v1894, %v1893
    %v1908 = vpack.c.b16 %v1896, %v1895
    %v1909 = vpack.c.b16 %v1898, %v1897
    %v1910 = vpack.c.b16 %v1900, %v1899
    %v1911 = vpack.c.b16 %v1902, %v1901
    %v1912 = vpack.c.b16 %v1904, %v1903
    %1921 = vmatpush.bf16.msra.mxu0 %v1912
    %1922 = vmatpush.bf16.msra.mxu0 %v1911
    %1923 = vmatpush.bf16.msra.mxu0 %v1910
    %1924 = vmatpush.bf16.msra.mxu0 %v1909
    %1925 = vmatpush.bf16.msra.mxu0 %v1908
    %1926 = vmatpush.bf16.msra.mxu0 %v1907
    %1927 = vmatpush.bf16.msra.mxu0 %v1906
    %1928 = vmatpush.bf16.msra.mxu0 %v1905
    %1929 = vmatmul.bf16.gmra.mxu0 %v1856
    %v1930 = vpop.f32.mrf.mxu0
    %v1931 = vadd.f32 0.0, %v1930
    %v1932 = vpop.f32.mrf.mxu0
    %1933 = vdwg.mxu0
    %v1934 = vmax.f32 %v1931, 0.0
    %v1935 = vpack.c.bf16 %v1934, %v1934
    %v1936 = vld [vmem:[#allocation19] sm:$0xf]
    %v1937 = vld [vmem:[#allocation19 + $0x4] sm:$0xf]
    %v1938 = vld [vmem:[#allocation19 + $0x8] sm:$0xf]
    %v1939 = vld [vmem:[#allocation19 + $0xc] sm:$0xf]
    %v1940 = vld [vmem:[#allocation19 + $0x10] sm:$0xf]
    %v1941 = vld [vmem:[#allocation19 + $0x14] sm:$0xf]
    %v1942 = vld [vmem:[#allocation19 + $0x18] sm:$0xf]
    %v1943 = vld [vmem:[#allocation19 + $0x1c] sm:$0xf]
    %v1944 = vld [vmem:[#allocation19 + $0x20] sm:$0xf]
    %v1945 = vld [vmem:[#allocation19 + $0x24] sm:$0xf]
    %v1946 = vld [vmem:[#allocation19 + $0x28] sm:$0xf]
    %v1947 = vld [vmem:[#allocation19 + $0x2c] sm:$0xf]
    %v1948 = vld [vmem:[#allocation19 + $0x30] sm:$0xf]
    %v1949 = vld [vmem:[#allocation19 + $0x34] sm:$0xf]
    %v1950 = vld [vmem:[#allocation19 + $0x38] sm:$0xf]
    %v1951 = vld [vmem:[#allocation19 + $0x3c] sm:$0xf]
    %v1968 = vunpack.c.l.b16 %v1936
    %v1969 = vunpack.c.l.b16 %v1937
    %v1970 = vunpack.c.l.b16 %v1938
    %v1971 = vunpack.c.l.b16 %v1939
    %v1972 = vunpack.c.l.b16 %v1940
    %v1973 = vunpack.c.l.b16 %v1941
    %v1974 = vunpack.c.l.b16 %v1942
    %v1975 = vunpack.c.l.b16 %v1943
    %v1976 = vunpack.c.l.b16 %v1944
    %v1977 = vunpack.c.l.b16 %v1945
    %v1978 = vunpack.c.l.b16 %v1946
    %v1979 = vunpack.c.l.b16 %v1947
    %v1980 = vunpack.c.l.b16 %v1948
    %v1981 = vunpack.c.l.b16 %v1949
    %v1982 = vunpack.c.l.b16 %v1950
    %v1983 = vunpack.c.l.b16 %v1951
    %v1984 = vpack.c.b16 %v1969, %v1968
    %v1985 = vpack.c.b16 %v1971, %v1970
    %v1986 = vpack.c.b16 %v1973, %v1972
    %v1987 = vpack.c.b16 %v1975, %v1974
    %v1988 = vpack.c.b16 %v1977, %v1976
    %v1989 = vpack.c.b16 %v1979, %v1978
    %v1990 = vpack.c.b16 %v1981, %v1980
    %v1991 = vpack.c.b16 %v1983, %v1982
    %2000 = vmatpush.bf16.msra.mxu0 %v1991
    %2001 = vmatpush.bf16.msra.mxu0 %v1990
    %2002 = vmatpush.bf16.msra.mxu0 %v1989
    %2003 = vmatpush.bf16.msra.mxu0 %v1988
    %2004 = vmatpush.bf16.msra.mxu0 %v1987
    %2005 = vmatpush.bf16.msra.mxu0 %v1986
    %2006 = vmatpush.bf16.msra.mxu0 %v1985
    %2007 = vmatpush.bf16.msra.mxu0 %v1984
    %2008 = vmatmul.bf16.gmra.mxu0 %v1935
    %v2009 = vpop.f32.mrf.mxu0
    %v2010 = vadd.f32 0.0, %v2009
    %v2011 = vpop.f32.mrf.mxu0
    %2012 = vdwg.mxu0
    %2013 = vst [vmem:[#allocation20] sm:$0xff] %v2010
    // Predicated region
    $region90: #{tpu_custom_call.1} parent=1 // pred_check
      _
    $region91: #{tpu_custom_call.1} parent=1 // pred_check_branch
      %2015 = sbr.rel (0) target = $region93
    $region92: #{tpu_custom_call.1} parent=1 // pred_region
      %2017 = vsyncadd [#allocation4], 0
      %s2019 = sshll.u32 [#allocation20], 4
      %s2020 = int_to_ptr.vmem [resolvable:$true] %s2019
      %s2021 = sshll.u32 %s11, 4
      %s2022 = int_to_ptr.hbm [resolvable:$true] %s2021
      %2024 = dma.vmem_to_hbm [thread:$0]  %s2020, 128, %s2022, [#allocation4]
    $region93: #{tpu_custom_call.1} parent=1 // pred_fallthru
      _
    // Predicated region
    $region94: #{tpu_custom_call.1} parent=1 // pred_check
      _
    $region95: #{tpu_custom_call.1} parent=1 // pred_check_branch
      %2026 = sbr.rel (0) target = $region97
    $region96: #{tpu_custom_call.1} parent=1 // pred_region
      %2028 = dma.done [#allocation4], 128
    $region97: #{tpu_custom_call.1} parent=1 // pred_fallthru
      _
    %2029 = vsyncpa [#allocation3], 1
    %2030 = vsyncpa [#allocation6], 1
    %2031 = vsyncpa [#allocation9], 1
    %2032 = vsyncpa [#allocation12], 1
    %2033 = vsyncpa [#allocation15], 1
    %2034 = vsyncpa [#allocation18], 1
    %2035 = vsyncpa [#allocation4], 1

</llo_original>
